<compile_context>
chip_gen: v5e
topology: v5e:2x2
jax: 0.10.0
libtpu: 0.0.40
codegen_flags: <defaults>
</compile_context>

<pallas_src>
import jax
import jax.numpy as jnp
import numpy as np
from jax.experimental import pallas as pl
from jax.experimental.pallas import tpu as pltpu


# --------------------------------------------------------------------------
# Kernel
# --------------------------------------------------------------------------
def _make_kernel(stride, projection, L, row, Dm, P):
    """L = B*Gout output columns, row = Wo+2 grid row stride, Dm = lane margin."""
    if stride == 1:
        tap_plane = [0] * 9
        tap_shift = [(kh - 1) * row + (kw - 1)
                     for kh in range(3) for kw in range(3)]
    else:  # stride == 2: taps come from one of 4 parity planes, shifts >= 0
        tap_plane = [(kh % 2) * 2 + (kw % 2)
                     for kh in range(3) for kw in range(3)]
        tap_shift = [(kh // 2) * row + (kw // 2)
                     for kh in range(3) for kw in range(3)]
    shift2 = [(kh - 1) * row + (kw - 1) for kh in range(3) for kw in range(3)]

    def kernel(*refs):
        if projection:
            (x_ref, mask_ref, w1_ref, b1_ref, w2_ref, b2_ref, ws_ref,
             o_ref, ys_ref) = refs
        else:
            (x_ref, mask_ref, w1_ref, b1_ref, w2_ref, b2_ref,
             o_ref, ys_ref) = refs
            ws_ref = None

        # ---- conv1 (+ folded BN1): 9 accumulating MXU dots, lane-dense RHS ----
        center = None
        acc1 = None
        for t in range(9):
            tap = x_ref[0, :, tap_plane[t], pl.ds(Dm + tap_shift[t], L)]  # (Cin, L) bf16
            if t == 4:
                center = tap
            c = jnp.dot(w1_ref[t], tap, preferred_element_type=jnp.float32)
            acc1 = c if acc1 is None else acc1 + c

        # relu + zero the grid halo (halo columns are conv2's zero padding)
        out1 = jnp.maximum(acc1 + b1_ref[...], 0.0) * mask_ref[...]       # (P, L) f32

        # ---- shortcut branch (reuses the already-loaded center tap) ----------
        if projection:
            sc = jnp.dot(ws_ref[...], center, preferred_element_type=jnp.float32)
        else:
            sc = center.astype(jnp.float32)

        # ---- stage conv1 output (bf16) into a flat, margin'd VMEM scratch ----
        ys_ref[:, 0:Dm] = jnp.zeros((P, Dm), ys_ref.dtype)
        ys_ref[:, Dm + L:Dm + L + Dm] = jnp.zeros((P, Dm), ys_ref.dtype)
        ys_ref[:, Dm:Dm + L] = out1.astype(ys_ref.dtype)

        # ---- conv2 (+ folded BN2): 9 accumulating MXU dots from shift-slices --
        acc2 = None
        for t in range(9):
            tap = ys_ref[:, pl.ds(Dm + shift2[t], L)]                     # (P, L) bf16
            c = jnp.dot(w2_ref[t], tap, preferred_element_type=jnp.float32)
            acc2 = c if acc2 is None else acc2 + c

        # ---- residual add + relu; single lane-dense bf16 store ---------------
        o_ref[0] = jnp.maximum(acc2 + b2_ref[...] + sc, 0.0).astype(o_ref.dtype)

    return kernel


# --------------------------------------------------------------------------
# Wrapper helpers
# --------------------------------------------------------------------------
def _fold_bn(bn, eps=1e-5):
    gamma, beta, mean, var = bn
    scale = gamma / jnp.sqrt(var + eps)
    bias = beta - mean * scale
    return scale.astype(jnp.float32), bias.astype(jnp.float32)


def _stride2_planes(xp, Ho, Wo):
    """xp: (N, C, H+2, W+2) zero-padded input (channels-first).

    Returns (N, C, 4, Ho+2, Wo+2) with
      planes[:, :, 2*ph+pw, u, v] = xp[:, :, 2*(u-1)+ph, 2*(v-1)+pw]  (0 if OOB),
    so in-kernel stride-2 taps become contiguous lane-offset slices.
    """
    _, _, Hp, Wp = xp.shape
    pad_h = max(0, 2 * Ho + 4 - (Hp + 2))
    pad_w = max(0, 2 * Wo + 4 - (Wp + 2))
    xb = jnp.pad(xp, ((0, 0), (0, 0), (2, pad_h), (2, pad_w)))
    planes = []
    for ph in range(2):
        for pw in range(2):
            planes.append(xb[:, :, ph:ph + 2 * (Ho + 2):2, pw:pw + 2 * (Wo + 2):2])
    return jnp.stack(planes, axis=2)


def _pick_batch(N, Gout, bytes_per_col, vmem_budget=12 << 20, min_lanes=512):
    """Images per grid step: grow lane width to >= min_lanes within VMEM budget."""
    best = 1
    for b in range(1, N + 1):
        if N % b:
            continue
        if b > 1 and b * Gout * bytes_per_col > vmem_budget:
            break
        best = b
        if b * Gout >= min_lanes:
            break
    return best


# --------------------------------------------------------------------------
# BasicBlock forward (NCHW in / NCHW out, matching the PyTorch module)
# --------------------------------------------------------------------------
def basic_block_forward(x_nchw, params, stride, eps=1e-5):
    N, Cin, H, W = x_nchw.shape
    P = params["w1"].shape[0]
    if stride not in (1, 2):
        raise NotImplementedError("BasicBlock stride must be 1 or 2")
    Ho = (H + 2 - 3) // stride + 1
    Wo = (W + 2 - 3) // stride + 1
    projection = (stride != 1) or (Cin != P)

    row = Wo + 2
    Gout = (Ho + 2) * (Wo + 2)          # per-image output grid (incl. 1-px halo)
    Dm = Wo + 3                         # lane margin so all tap shifts stay in-bounds
    nplanes = 1 if stride == 1 else 4

    bytes_per_col = 4 * Cin * nplanes + 24 * P
    B = _pick_batch(N, Gout, bytes_per_col)
    G = N // B
    L = B * Gout
    Lpad = L + 2 * Dm

    # ---- input: channels-first, flat per-image grid + lane margins ----------
    xcf = x_nchw.astype(jnp.bfloat16)                        # (N, Cin, H, W)
    xp = jnp.pad(xcf, ((0, 0), (0, 0), (1, 1), (1, 1)))      # (N, Cin, H+2, W+2)
    if stride == 1:
        grids = xp.reshape(N, Cin, 1, Gout)                  # (H+2)*(W+2) == Gout
    else:
        grids = _stride2_planes(xp, Ho, Wo).reshape(N, Cin, 4, Gout)
    grids = grids.reshape(G, B, Cin, nplanes, Gout)
    grids = jnp.transpose(grids, (0, 2, 3, 1, 4)).reshape(G, Cin, nplanes, L)
    x_in = jnp.pad(grids, ((0, 0), (0, 0), (0, 0), (Dm, Dm)))  # (G, Cin, nplanes, Lpad)

    # ---- interior mask (1 at real output pixels, 0 at grid halo) ------------
    uu = jnp.arange(Ho + 2)
    vv = jnp.arange(Wo + 2)
    m2 = ((uu >= 1) & (uu <= Ho))[:, None] & ((vv >= 1) & (vv <= Wo))[None, :]
    mask = jnp.tile(m2.reshape(-1).astype(jnp.float32), B).reshape(1, L)

    # ---- fold BN into conv weights / biases ---------------------------------
    g1, b1 = _fold_bn(params["bn1"], eps)
    g2, b2 = _fold_bn(params["bn2"], eps)
    w1 = params["w1"] * g1[:, None, None, None]              # (P, Cin, 3, 3)
    w1 = jnp.transpose(w1, (2, 3, 0, 1)).reshape(9, P, Cin).astype(jnp.bfloat16)
    w2 = params["w2"] * g2[:, None, None, None]              # (P, P, 3, 3)
    w2 = jnp.transpose(w2, (2, 3, 0, 1)).reshape(9, P, P).astype(jnp.bfloat16)
    b1 = b1.reshape(P, 1)
    b2 = b2.reshape(P, 1)

    inputs = [x_in, mask, w1, b1, w2]
    in_specs = [
        pl.BlockSpec((1, Cin, nplanes, Lpad), lambda g: (g, 0, 0, 0)),
        pl.BlockSpec((1, L), lambda g: (0, 0)),
        pl.BlockSpec((9, P, Cin), lambda g: (0, 0, 0)),
        pl.BlockSpec((P, 1), lambda g: (0, 0)),
        pl.BlockSpec((9, P, P), lambda g: (0, 0, 0)),
    ]
    if projection:
        gs, bs = _fold_bn(params["bns"], eps)
        ws = (params["ws"].reshape(P, Cin) * gs[:, None]).astype(jnp.bfloat16)
        b2 = b2 + bs.reshape(P, 1)       # shortcut-BN bias folded into conv2 bias
        inputs += [b2, ws]
        in_specs += [pl.BlockSpec((P, 1), lambda g: (0, 0)),
                     pl.BlockSpec((P, Cin), lambda g: (0, 0))]
    else:
        inputs += [b2]
        in_specs += [pl.BlockSpec((P, 1), lambda g: (0, 0))]

    flops = G * L * (18 * Cin * P + 18 * P * P + (2 * Cin * P if projection else 0))
    bytes_accessed = int(x_in.size * 2 + mask.size * 4 + w1.size * 2 + w2.size * 2
                         + b1.size * 4 + b2.size * 4 + G * P * L * 2)

    kernel = _make_kernel(stride, projection, L, row, Dm, P)
    out = pl.pallas_call(
        kernel,
        out_shape=jax.ShapeDtypeStruct((G, P, L), jnp.bfloat16),
        grid=(G,),
        in_specs=in_specs,
        out_specs=pl.BlockSpec((1, P, L), lambda g: (g, 0, 0)),
        scratch_shapes=[pltpu.VMEM((P, Lpad), jnp.bfloat16)],
        compiler_params=pltpu.CompilerParams(
            dimension_semantics=("parallel",)),
        cost_estimate=pl.CostEstimate(flops=int(flops), transcendentals=0,
                                      bytes_accessed=bytes_accessed),
    )(*inputs)

    # ---- drop the halo columns, back to NCHW float32 ------------------------
    out = out.reshape(G, P, B, Ho + 2, Wo + 2)
    out = jnp.transpose(out, (0, 2, 1, 3, 4)).reshape(N, P, Ho + 2, Wo + 2)
    return out[:, :, 1:Ho + 1, 1:Wo + 1].astype(jnp.float32)


# --------------------------------------------------------------------------
# Pure-JAX reference (for checking)
# --------------------------------------------------------------------------
def ref_forward(x_nchw, params, stride):
    x = jnp.transpose(x_nchw, (0, 2, 3, 1)).astype(jnp.float32)

    def conv(x, w_oihw, s):
        pad_h = w_oihw.shape[2] // 2
        pad_w = w_oihw.shape[3] // 2
        return jax.lax.conv_general_dilated(
            x, jnp.transpose(w_oihw, (2, 3, 1, 0)),
            window_strides=(s, s),
            padding=[(pad_h, pad_h), (pad_w, pad_w)],
            dimension_numbers=("NHWC", "HWIO", "NHWC"))

    def bn(x, p, eps=1e-5):
        gamma, beta, mean, var = p
        return (x - mean) / jnp.sqrt(var + eps) * gamma + beta

    out = jax.nn.relu(bn(conv(x, params["w1"], stride), params["bn1"]))
    out = bn(conv(out, params["w2"], 1), params["bn2"])
    if stride != 1 or x.shape[-1] != params["w1"].shape[0]:
        sc = bn(conv(x, params["ws"], stride), params["bns"])
    else:
        sc = x
    out = jax.nn.relu(out + sc)
    return jnp.transpose(out, (0, 3, 1, 2))


# --------------------------------------------------------------------------
# Deterministic parameter init
# --------------------------------------------------------------------------
def init_params(key, in_planes, planes, stride):
    keys = jax.random.split(key, 8)

    def conv_w(k, out_c, in_c, kh, kw):
        fan_in = in_c * kh * kw
        return jax.random.normal(k, (out_c, in_c, kh, kw), jnp.float32) * jnp.sqrt(2.0 / fan_in)

    def bn_p(k, c):
        k1, k2, k3, k4 = jax.random.split(k, 4)
        gamma = 1.0 + 0.1 * jax.random.normal(k1, (c,), jnp.float32)
        beta = 0.1 * jax.random.normal(k2, (c,), jnp.float32)
        mean = 0.1 * jax.random.normal(k3, (c,), jnp.float32)
        var = 0.9 + 0.2 * jax.random.uniform(k4, (c,), jnp.float32)
        return (gamma, beta, mean, var)

    params = {
        "w1": conv_w(keys[0], planes, in_planes, 3, 3),
        "bn1": bn_p(keys[1], planes),
        "w2": conv_w(keys[2], planes, planes, 3, 3),
        "bn2": bn_p(keys[3], planes),
    }
    if stride != 1 or in_planes != planes:
        params["ws"] = conv_w(keys[4], planes, in_planes, 1, 1)
        params["bns"] = bn_p(keys[5], planes)
    return params


if __name__ == "__main__":
    key = jax.random.PRNGKey(0)
    kx, kp1, kp2 = jax.random.split(key, 3)
    x = jax.random.normal(kx, (2, 4, 16, 16), jnp.float32)   # NCHW, like PyTorch

    block_fwd = jax.jit(basic_block_forward, static_argnums=2)

    # Case 1: identity shortcut (stride=1, in_planes == planes == 4)
    p1 = init_params(kp1, in_planes=4, planes=4, stride=1)
    y1 = jax.block_until_ready(block_fwd(x, p1, 1))
    r1 = ref_forward(x, p1, 1)
    assert y1.shape == (2, 4, 16, 16)
    np.testing.assert_allclose(np.asarray(y1), np.asarray(r1), atol=5e-2, rtol=5e-2)

    # Case 2: projection shortcut (stride=2, planes=8 -> conv1x1 + bn shortcut)
    p2 = init_params(kp2, in_planes=4, planes=8, stride=2)
    y2 = jax.block_until_ready(block_fwd(x, p2, 2))
    r2 = ref_forward(x, p2, 2)
    assert y2.shape == (2, 8, 8, 8)
    np.testing.assert_allclose(np.asarray(y2), np.asarray(r2), atol=5e-2, rtol=5e-2)

    print("KERNEL_OK")
</pallas_src>

<mosaic_0001>
module attributes {stable_mosaic.version = 11 : i64} {
  func.func @kernel(%arg0: i32, %arg1: memref<1x4x1x686xbf16, #tpu.memory_space<vmem>>, %arg2: memref<1x648xf32, #tpu.memory_space<vmem>>, %arg3: memref<9x4x4xbf16, #tpu.memory_space<vmem>>, %arg4: memref<4x1xf32, #tpu.memory_space<vmem>>, %arg5: memref<9x4x4xbf16, #tpu.memory_space<vmem>>, %arg6: memref<4x1xf32, #tpu.memory_space<vmem>>, %arg7: memref<1x4x648xbf16, #tpu.memory_space<vmem>>, %arg8: memref<4x686xbf16, #tpu.memory_space<vmem>>) attributes {dimension_semantics = [#tpu.dimension_semantics<parallel>], iteration_bounds = array<i64: 1>, scalar_prefetch = 0 : i64, scratch_operands = 1 : i64, tpu.core_type = #tpu.core_type<tc>, window_params = [{transform_indices = @transform_0, window_bounds = array<i64: 1, 4, 1, 686>}, {pipeline_mode = #tpu.pipeline_mode<synchronous>, transform_indices = @transform_1, window_bounds = array<i64: 1, 648>}, {pipeline_mode = #tpu.pipeline_mode<synchronous>, transform_indices = @transform_2, window_bounds = array<i64: 9, 4, 4>}, {pipeline_mode = #tpu.pipeline_mode<synchronous>, transform_indices = @transform_3, window_bounds = array<i64: 4, 1>}, {pipeline_mode = #tpu.pipeline_mode<synchronous>, transform_indices = @transform_4, window_bounds = array<i64: 9, 4, 4>}, {pipeline_mode = #tpu.pipeline_mode<synchronous>, transform_indices = @transform_5, window_bounds = array<i64: 4, 1>}, {transform_indices = @transform_6, window_bounds = array<i64: 1, 4, 648>}]} {
    %c0 = arith.constant 0 : index
    %c0_0 = arith.constant 0 : index
    %c0_1 = arith.constant 0 : index
    %c0_2 = arith.constant 0 : index
    %0 = vector.load %arg1[%c0, %c0_0, %c0_1, %c0_2] : memref<1x4x1x686xbf16, #tpu.memory_space<vmem>>, vector<1x4x1x648xbf16>
    %1 = vector.shape_cast %0 : vector<1x4x1x648xbf16> to vector<4x648xbf16>
    %c0_3 = arith.constant 0 : index
    %c0_4 = arith.constant 0 : index
    %c0_5 = arith.constant 0 : index
    %2 = vector.load %arg3[%c0_3, %c0_4, %c0_5] : memref<9x4x4xbf16, #tpu.memory_space<vmem>>, vector<1x4x4xbf16>
    %3 = vector.shape_cast %2 : vector<1x4x4xbf16> to vector<4x4xbf16>
    %cst = arith.constant dense<0.000000e+00> : vector<4x648xf32>
    %4 = tpu.matmul %3, %1, %cst {dimension_numbers = #tpu.dot_dimension_numbers<[1], [0], [0], [1], [0, 0, 1, 1], [], []>} : vector<4x4xbf16>, vector<4x648xbf16>, vector<4x648xf32> -> vector<4x648xf32>
    %c0_6 = arith.constant 0 : index
    %c0_7 = arith.constant 0 : index
    %c0_8 = arith.constant 0 : index
    %c1 = arith.constant 1 : index
    %5 = vector.load %arg1[%c0_6, %c0_7, %c0_8, %c1] : memref<1x4x1x686xbf16, #tpu.memory_space<vmem>>, vector<1x4x1x648xbf16>
    %6 = vector.shape_cast %5 : vector<1x4x1x648xbf16> to vector<4x648xbf16>
    %c1_9 = arith.constant 1 : index
    %c0_10 = arith.constant 0 : index
    %c0_11 = arith.constant 0 : index
    %7 = vector.load %arg3[%c1_9, %c0_10, %c0_11] : memref<9x4x4xbf16, #tpu.memory_space<vmem>>, vector<1x4x4xbf16>
    %8 = vector.shape_cast %7 : vector<1x4x4xbf16> to vector<4x4xbf16>
    %cst_12 = arith.constant dense<0.000000e+00> : vector<4x648xf32>
    %9 = tpu.matmul %8, %6, %cst_12 {dimension_numbers = #tpu.dot_dimension_numbers<[1], [0], [0], [1], [0, 0, 1, 1], [], []>} : vector<4x4xbf16>, vector<4x648xbf16>, vector<4x648xf32> -> vector<4x648xf32>
    %10 = arith.addf %4, %9 : vector<4x648xf32>
    %c0_13 = arith.constant 0 : index
    %c0_14 = arith.constant 0 : index
    %c0_15 = arith.constant 0 : index
    %c2 = arith.constant 2 : index
    %11 = vector.load %arg1[%c0_13, %c0_14, %c0_15, %c2] : memref<1x4x1x686xbf16, #tpu.memory_space<vmem>>, vector<1x4x1x648xbf16>
    %12 = vector.shape_cast %11 : vector<1x4x1x648xbf16> to vector<4x648xbf16>
    %c2_16 = arith.constant 2 : index
    %c0_17 = arith.constant 0 : index
    %c0_18 = arith.constant 0 : index
    %13 = vector.load %arg3[%c2_16, %c0_17, %c0_18] : memref<9x4x4xbf16, #tpu.memory_space<vmem>>, vector<1x4x4xbf16>
    %14 = vector.shape_cast %13 : vector<1x4x4xbf16> to vector<4x4xbf16>
    %cst_19 = arith.constant dense<0.000000e+00> : vector<4x648xf32>
    %15 = tpu.matmul %14, %12, %cst_19 {dimension_numbers = #tpu.dot_dimension_numbers<[1], [0], [0], [1], [0, 0, 1, 1], [], []>} : vector<4x4xbf16>, vector<4x648xbf16>, vector<4x648xf32> -> vector<4x648xf32>
    %16 = arith.addf %10, %15 : vector<4x648xf32>
    %c0_20 = arith.constant 0 : index
    %c0_21 = arith.constant 0 : index
    %c0_22 = arith.constant 0 : index
    %c18 = arith.constant 18 : index
    %17 = vector.load %arg1[%c0_20, %c0_21, %c0_22, %c18] : memref<1x4x1x686xbf16, #tpu.memory_space<vmem>>, vector<1x4x1x648xbf16>
    %18 = vector.shape_cast %17 : vector<1x4x1x648xbf16> to vector<4x648xbf16>
    %c3 = arith.constant 3 : index
    %c0_23 = arith.constant 0 : index
    %c0_24 = arith.constant 0 : index
    %19 = vector.load %arg3[%c3, %c0_23, %c0_24] : memref<9x4x4xbf16, #tpu.memory_space<vmem>>, vector<1x4x4xbf16>
    %20 = vector.shape_cast %19 : vector<1x4x4xbf16> to vector<4x4xbf16>
    %cst_25 = arith.constant dense<0.000000e+00> : vector<4x648xf32>
    %21 = tpu.matmul %20, %18, %cst_25 {dimension_numbers = #tpu.dot_dimension_numbers<[1], [0], [0], [1], [0, 0, 1, 1], [], []>} : vector<4x4xbf16>, vector<4x648xbf16>, vector<4x648xf32> -> vector<4x648xf32>
    %22 = arith.addf %16, %21 : vector<4x648xf32>
    %c0_26 = arith.constant 0 : index
    %c0_27 = arith.constant 0 : index
    %c0_28 = arith.constant 0 : index
    %c19 = arith.constant 19 : index
    %23 = vector.load %arg1[%c0_26, %c0_27, %c0_28, %c19] : memref<1x4x1x686xbf16, #tpu.memory_space<vmem>>, vector<1x4x1x648xbf16>
    %24 = vector.shape_cast %23 : vector<1x4x1x648xbf16> to vector<4x648xbf16>
    %c4 = arith.constant 4 : index
    %c0_29 = arith.constant 0 : index
    %c0_30 = arith.constant 0 : index
    %25 = vector.load %arg3[%c4, %c0_29, %c0_30] : memref<9x4x4xbf16, #tpu.memory_space<vmem>>, vector<1x4x4xbf16>
    %26 = vector.shape_cast %25 : vector<1x4x4xbf16> to vector<4x4xbf16>
    %cst_31 = arith.constant dense<0.000000e+00> : vector<4x648xf32>
    %27 = tpu.matmul %26, %24, %cst_31 {dimension_numbers = #tpu.dot_dimension_numbers<[1], [0], [0], [1], [0, 0, 1, 1], [], []>} : vector<4x4xbf16>, vector<4x648xbf16>, vector<4x648xf32> -> vector<4x648xf32>
    %28 = arith.addf %22, %27 : vector<4x648xf32>
    %c0_32 = arith.constant 0 : index
    %c0_33 = arith.constant 0 : index
    %c0_34 = arith.constant 0 : index
    %c20 = arith.constant 20 : index
    %29 = vector.load %arg1[%c0_32, %c0_33, %c0_34, %c20] : memref<1x4x1x686xbf16, #tpu.memory_space<vmem>>, vector<1x4x1x648xbf16>
    %30 = vector.shape_cast %29 : vector<1x4x1x648xbf16> to vector<4x648xbf16>
    %c5 = arith.constant 5 : index
    %c0_35 = arith.constant 0 : index
    %c0_36 = arith.constant 0 : index
    %31 = vector.load %arg3[%c5, %c0_35, %c0_36] : memref<9x4x4xbf16, #tpu.memory_space<vmem>>, vector<1x4x4xbf16>
    %32 = vector.shape_cast %31 : vector<1x4x4xbf16> to vector<4x4xbf16>
    %cst_37 = arith.constant dense<0.000000e+00> : vector<4x648xf32>
    %33 = tpu.matmul %32, %30, %cst_37 {dimension_numbers = #tpu.dot_dimension_numbers<[1], [0], [0], [1], [0, 0, 1, 1], [], []>} : vector<4x4xbf16>, vector<4x648xbf16>, vector<4x648xf32> -> vector<4x648xf32>
    %34 = arith.addf %28, %33 : vector<4x648xf32>
    %c0_38 = arith.constant 0 : index
    %c0_39 = arith.constant 0 : index
    %c0_40 = arith.constant 0 : index
    %c36 = arith.constant 36 : index
    %35 = vector.load %arg1[%c0_38, %c0_39, %c0_40, %c36] : memref<1x4x1x686xbf16, #tpu.memory_space<vmem>>, vector<1x4x1x648xbf16>
    %36 = vector.shape_cast %35 : vector<1x4x1x648xbf16> to vector<4x648xbf16>
    %c6 = arith.constant 6 : index
    %c0_41 = arith.constant 0 : index
    %c0_42 = arith.constant 0 : index
    %37 = vector.load %arg3[%c6, %c0_41, %c0_42] : memref<9x4x4xbf16, #tpu.memory_space<vmem>>, vector<1x4x4xbf16>
    %38 = vector.shape_cast %37 : vector<1x4x4xbf16> to vector<4x4xbf16>
    %cst_43 = arith.constant dense<0.000000e+00> : vector<4x648xf32>
    %39 = tpu.matmul %38, %36, %cst_43 {dimension_numbers = #tpu.dot_dimension_numbers<[1], [0], [0], [1], [0, 0, 1, 1], [], []>} : vector<4x4xbf16>, vector<4x648xbf16>, vector<4x648xf32> -> vector<4x648xf32>
    %40 = arith.addf %34, %39 : vector<4x648xf32>
    %c0_44 = arith.constant 0 : index
    %c0_45 = arith.constant 0 : index
    %c0_46 = arith.constant 0 : index
    %c37 = arith.constant 37 : index
    %41 = vector.load %arg1[%c0_44, %c0_45, %c0_46, %c37] : memref<1x4x1x686xbf16, #tpu.memory_space<vmem>>, vector<1x4x1x648xbf16>
    %42 = vector.shape_cast %41 : vector<1x4x1x648xbf16> to vector<4x648xbf16>
    %c7 = arith.constant 7 : index
    %c0_47 = arith.constant 0 : index
    %c0_48 = arith.constant 0 : index
    %43 = vector.load %arg3[%c7, %c0_47, %c0_48] : memref<9x4x4xbf16, #tpu.memory_space<vmem>>, vector<1x4x4xbf16>
    %44 = vector.shape_cast %43 : vector<1x4x4xbf16> to vector<4x4xbf16>
    %cst_49 = arith.constant dense<0.000000e+00> : vector<4x648xf32>
    %45 = tpu.matmul %44, %42, %cst_49 {dimension_numbers = #tpu.dot_dimension_numbers<[1], [0], [0], [1], [0, 0, 1, 1], [], []>} : vector<4x4xbf16>, vector<4x648xbf16>, vector<4x648xf32> -> vector<4x648xf32>
    %46 = arith.addf %40, %45 : vector<4x648xf32>
    %c0_50 = arith.constant 0 : index
    %c0_51 = arith.constant 0 : index
    %c0_52 = arith.constant 0 : index
    %c38 = arith.constant 38 : index
    %47 = vector.load %arg1[%c0_50, %c0_51, %c0_52, %c38] : memref<1x4x1x686xbf16, #tpu.memory_space<vmem>>, vector<1x4x1x648xbf16>
    %48 = vector.shape_cast %47 : vector<1x4x1x648xbf16> to vector<4x648xbf16>
    %c8 = arith.constant 8 : index
    %c0_53 = arith.constant 0 : index
    %c0_54 = arith.constant 0 : index
    %49 = vector.load %arg3[%c8, %c0_53, %c0_54] : memref<9x4x4xbf16, #tpu.memory_space<vmem>>, vector<1x4x4xbf16>
    %50 = vector.shape_cast %49 : vector<1x4x4xbf16> to vector<4x4xbf16>
    %cst_55 = arith.constant dense<0.000000e+00> : vector<4x648xf32>
    %51 = tpu.matmul %50, %48, %cst_55 {dimension_numbers = #tpu.dot_dimension_numbers<[1], [0], [0], [1], [0, 0, 1, 1], [], []>} : vector<4x4xbf16>, vector<4x648xbf16>, vector<4x648xf32> -> vector<4x648xf32>
    %52 = arith.addf %46, %51 : vector<4x648xf32>
    %c0_56 = arith.constant 0 : index
    %c0_57 = arith.constant 0 : index
    %53 = vector.load %arg4[%c0_56, %c0_57] : memref<4x1xf32, #tpu.memory_space<vmem>>, vector<4x1xf32>
    %54 = vector.broadcast %53 : vector<4x1xf32> to vector<4x648xf32>
    %55 = arith.addf %52, %54 : vector<4x648xf32>
    %cst_58 = arith.constant 0.000000e+00 : f32
    %56 = vector.broadcast %cst_58 : f32 to vector<4x648xf32>
    %57 = arith.maximumf %55, %56 : vector<4x648xf32>
    %c0_59 = arith.constant 0 : index
    %c0_60 = arith.constant 0 : index
    %58 = vector.load %arg2[%c0_59, %c0_60] : memref<1x648xf32, #tpu.memory_space<vmem>>, vector<1x648xf32>
    %59 = vector.broadcast %58 : vector<1x648xf32> to vector<4x648xf32>
    %60 = arith.mulf %57, %59 : vector<4x648xf32>
    %61 = arith.extf %24 : vector<4x648xbf16> to vector<4x648xf32>
    %cst_61 = arith.constant 0.000000e+00 : bf16
    %62 = vector.broadcast %cst_61 : bf16 to vector<4x19xbf16>
    %c0_62 = arith.constant 0 : index
    %c0_63 = arith.constant 0 : index
    %63 = vector.load %arg8[%c0_62, %c0_63] : memref<4x686xbf16, #tpu.memory_space<vmem>>, vector<4x19xbf16>
    tpu.vector_store %arg8[%c0_62, %c0_63], %62 {strides = array<i32>} : memref<4x686xbf16, #tpu.memory_space<vmem>>, vector<4x19xbf16>,
    %cst_64 = arith.constant 0.000000e+00 : bf16
    %64 = vector.broadcast %cst_64 : bf16 to vector<4x19xbf16>
    %c0_65 = arith.constant 0 : index
    %c667 = arith.constant 667 : index
    %65 = vector.load %arg8[%c0_65, %c667] : memref<4x686xbf16, #tpu.memory_space<vmem>>, vector<4x19xbf16>
    tpu.vector_store %arg8[%c0_65, %c667], %64 {strides = array<i32>} : memref<4x686xbf16, #tpu.memory_space<vmem>>, vector<4x19xbf16>,
    %66 = arith.truncf %60 : vector<4x648xf32> to vector<4x648xbf16>
    %c0_66 = arith.constant 0 : index
    %c19_67 = arith.constant 19 : index
    %67 = vector.load %arg8[%c0_66, %c19_67] : memref<4x686xbf16, #tpu.memory_space<vmem>>, vector<4x648xbf16>
    tpu.vector_store %arg8[%c0_66, %c19_67], %66 {strides = array<i32>} : memref<4x686xbf16, #tpu.memory_space<vmem>>, vector<4x648xbf16>,
    %c0_68 = arith.constant 0 : index
    %c0_69 = arith.constant 0 : index
    %68 = vector.load %arg8[%c0_68, %c0_69] : memref<4x686xbf16, #tpu.memory_space<vmem>>, vector<4x648xbf16>
    %c0_70 = arith.constant 0 : index
    %c0_71 = arith.constant 0 : index
    %c0_72 = arith.constant 0 : index
    %69 = vector.load %arg5[%c0_70, %c0_71, %c0_72] : memref<9x4x4xbf16, #tpu.memory_space<vmem>>, vector<1x4x4xbf16>
    %70 = vector.shape_cast %69 : vector<1x4x4xbf16> to vector<4x4xbf16>
    %cst_73 = arith.constant dense<0.000000e+00> : vector<4x648xf32>
    %71 = tpu.matmul %70, %68, %cst_73 {dimension_numbers = #tpu.dot_dimension_numbers<[1], [0], [0], [1], [0, 0, 1, 1], [], []>} : vector<4x4xbf16>, vector<4x648xbf16>, vector<4x648xf32> -> vector<4x648xf32>
    %c0_74 = arith.constant 0 : index
    %c1_75 = arith.constant 1 : index
    %72 = vector.load %arg8[%c0_74, %c1_75] : memref<4x686xbf16, #tpu.memory_space<vmem>>, vector<4x648xbf16>
    %c1_76 = arith.constant 1 : index
    %c0_77 = arith.constant 0 : index
    %c0_78 = arith.constant 0 : index
    %73 = vector.load %arg5[%c1_76, %c0_77, %c0_78] : memref<9x4x4xbf16, #tpu.memory_space<vmem>>, vector<1x4x4xbf16>
    %74 = vector.shape_cast %73 : vector<1x4x4xbf16> to vector<4x4xbf16>
    %cst_79 = arith.constant dense<0.000000e+00> : vector<4x648xf32>
    %75 = tpu.matmul %74, %72, %cst_79 {dimension_numbers = #tpu.dot_dimension_numbers<[1], [0], [0], [1], [0, 0, 1, 1], [], []>} : vector<4x4xbf16>, vector<4x648xbf16>, vector<4x648xf32> -> vector<4x648xf32>
    %76 = arith.addf %71, %75 : vector<4x648xf32>
    %c0_80 = arith.constant 0 : index
    %c2_81 = arith.constant 2 : index
    %77 = vector.load %arg8[%c0_80, %c2_81] : memref<4x686xbf16, #tpu.memory_space<vmem>>, vector<4x648xbf16>
    %c2_82 = arith.constant 2 : index
    %c0_83 = arith.constant 0 : index
    %c0_84 = arith.constant 0 : index
    %78 = vector.load %arg5[%c2_82, %c0_83, %c0_84] : memref<9x4x4xbf16, #tpu.memory_space<vmem>>, vector<1x4x4xbf16>
    %79 = vector.shape_cast %78 : vector<1x4x4xbf16> to vector<4x4xbf16>
    %cst_85 = arith.constant dense<0.000000e+00> : vector<4x648xf32>
    %80 = tpu.matmul %79, %77, %cst_85 {dimension_numbers = #tpu.dot_dimension_numbers<[1], [0], [0], [1], [0, 0, 1, 1], [], []>} : vector<4x4xbf16>, vector<4x648xbf16>, vector<4x648xf32> -> vector<4x648xf32>
    %81 = arith.addf %76, %80 : vector<4x648xf32>
    %c0_86 = arith.constant 0 : index
    %c18_87 = arith.constant 18 : index
    %82 = vector.load %arg8[%c0_86, %c18_87] : memref<4x686xbf16, #tpu.memory_space<vmem>>, vector<4x648xbf16>
    %c3_88 = arith.constant 3 : index
    %c0_89 = arith.constant 0 : index
    %c0_90 = arith.constant 0 : index
    %83 = vector.load %arg5[%c3_88, %c0_89, %c0_90] : memref<9x4x4xbf16, #tpu.memory_space<vmem>>, vector<1x4x4xbf16>
    %84 = vector.shape_cast %83 : vector<1x4x4xbf16> to vector<4x4xbf16>
    %cst_91 = arith.constant dense<0.000000e+00> : vector<4x648xf32>
    %85 = tpu.matmul %84, %82, %cst_91 {dimension_numbers = #tpu.dot_dimension_numbers<[1], [0], [0], [1], [0, 0, 1, 1], [], []>} : vector<4x4xbf16>, vector<4x648xbf16>, vector<4x648xf32> -> vector<4x648xf32>
    %86 = arith.addf %81, %85 : vector<4x648xf32>
    %c0_92 = arith.constant 0 : index
    %c19_93 = arith.constant 19 : index
    %87 = vector.load %arg8[%c0_92, %c19_93] : memref<4x686xbf16, #tpu.memory_space<vmem>>, vector<4x648xbf16>
    %c4_94 = arith.constant 4 : index
    %c0_95 = arith.constant 0 : index
    %c0_96 = arith.constant 0 : index
    %88 = vector.load %arg5[%c4_94, %c0_95, %c0_96] : memref<9x4x4xbf16, #tpu.memory_space<vmem>>, vector<1x4x4xbf16>
    %89 = vector.shape_cast %88 : vector<1x4x4xbf16> to vector<4x4xbf16>
    %cst_97 = arith.constant dense<0.000000e+00> : vector<4x648xf32>
    %90 = tpu.matmul %89, %87, %cst_97 {dimension_numbers = #tpu.dot_dimension_numbers<[1], [0], [0], [1], [0, 0, 1, 1], [], []>} : vector<4x4xbf16>, vector<4x648xbf16>, vector<4x648xf32> -> vector<4x648xf32>
    %91 = arith.addf %86, %90 : vector<4x648xf32>
    %c0_98 = arith.constant 0 : index
    %c20_99 = arith.constant 20 : index
    %92 = vector.load %arg8[%c0_98, %c20_99] : memref<4x686xbf16, #tpu.memory_space<vmem>>, vector<4x648xbf16>
    %c5_100 = arith.constant 5 : index
    %c0_101 = arith.constant 0 : index
    %c0_102 = arith.constant 0 : index
    %93 = vector.load %arg5[%c5_100, %c0_101, %c0_102] : memref<9x4x4xbf16, #tpu.memory_space<vmem>>, vector<1x4x4xbf16>
    %94 = vector.shape_cast %93 : vector<1x4x4xbf16> to vector<4x4xbf16>
    %cst_103 = arith.constant dense<0.000000e+00> : vector<4x648xf32>
    %95 = tpu.matmul %94, %92, %cst_103 {dimension_numbers = #tpu.dot_dimension_numbers<[1], [0], [0], [1], [0, 0, 1, 1], [], []>} : vector<4x4xbf16>, vector<4x648xbf16>, vector<4x648xf32> -> vector<4x648xf32>
    %96 = arith.addf %91, %95 : vector<4x648xf32>
    %c0_104 = arith.constant 0 : index
    %c36_105 = arith.constant 36 : index
    %97 = vector.load %arg8[%c0_104, %c36_105] : memref<4x686xbf16, #tpu.memory_space<vmem>>, vector<4x648xbf16>
    %c6_106 = arith.constant 6 : index
    %c0_107 = arith.constant 0 : index
    %c0_108 = arith.constant 0 : index
    %98 = vector.load %arg5[%c6_106, %c0_107, %c0_108] : memref<9x4x4xbf16, #tpu.memory_space<vmem>>, vector<1x4x4xbf16>
    %99 = vector.shape_cast %98 : vector<1x4x4xbf16> to vector<4x4xbf16>
    %cst_109 = arith.constant dense<0.000000e+00> : vector<4x648xf32>
    %100 = tpu.matmul %99, %97, %cst_109 {dimension_numbers = #tpu.dot_dimension_numbers<[1], [0], [0], [1], [0, 0, 1, 1], [], []>} : vector<4x4xbf16>, vector<4x648xbf16>, vector<4x648xf32> -> vector<4x648xf32>
    %101 = arith.addf %96, %100 : vector<4x648xf32>
    %c0_110 = arith.constant 0 : index
    %c37_111 = arith.constant 37 : index
    %102 = vector.load %arg8[%c0_110, %c37_111] : memref<4x686xbf16, #tpu.memory_space<vmem>>, vector<4x648xbf16>
    %c7_112 = arith.constant 7 : index
    %c0_113 = arith.constant 0 : index
    %c0_114 = arith.constant 0 : index
    %103 = vector.load %arg5[%c7_112, %c0_113, %c0_114] : memref<9x4x4xbf16, #tpu.memory_space<vmem>>, vector<1x4x4xbf16>
    %104 = vector.shape_cast %103 : vector<1x4x4xbf16> to vector<4x4xbf16>
    %cst_115 = arith.constant dense<0.000000e+00> : vector<4x648xf32>
    %105 = tpu.matmul %104, %102, %cst_115 {dimension_numbers = #tpu.dot_dimension_numbers<[1], [0], [0], [1], [0, 0, 1, 1], [], []>} : vector<4x4xbf16>, vector<4x648xbf16>, vector<4x648xf32> -> vector<4x648xf32>
    %106 = arith.addf %101, %105 : vector<4x648xf32>
    %c0_116 = arith.constant 0 : index
    %c38_117 = arith.constant 38 : index
    %107 = vector.load %arg8[%c0_116, %c38_117] : memref<4x686xbf16, #tpu.memory_space<vmem>>, vector<4x648xbf16>
    %c8_118 = arith.constant 8 : index
    %c0_119 = arith.constant 0 : index
    %c0_120 = arith.constant 0 : index
    %108 = vector.load %arg5[%c8_118, %c0_119, %c0_120] : memref<9x4x4xbf16, #tpu.memory_space<vmem>>, vector<1x4x4xbf16>
    %109 = vector.shape_cast %108 : vector<1x4x4xbf16> to vector<4x4xbf16>
    %cst_121 = arith.constant dense<0.000000e+00> : vector<4x648xf32>
    %110 = tpu.matmul %109, %107, %cst_121 {dimension_numbers = #tpu.dot_dimension_numbers<[1], [0], [0], [1], [0, 0, 1, 1], [], []>} : vector<4x4xbf16>, vector<4x648xbf16>, vector<4x648xf32> -> vector<4x648xf32>
    %111 = arith.addf %106, %110 : vector<4x648xf32>
    %c0_122 = arith.constant 0 : index
    %c0_123 = arith.constant 0 : index
    %112 = vector.load %arg6[%c0_122, %c0_123] : memref<4x1xf32, #tpu.memory_space<vmem>>, vector<4x1xf32>
    %113 = vector.broadcast %112 : vector<4x1xf32> to vector<4x648xf32>
    %114 = arith.addf %111, %113 : vector<4x648xf32>
    %115 = arith.addf %114, %61 : vector<4x648xf32>
    %cst_124 = arith.constant 0.000000e+00 : f32
    %116 = vector.broadcast %cst_124 : f32 to vector<4x648xf32>
    %117 = arith.maximumf %115, %116 : vector<4x648xf32>
    %118 = arith.truncf %117 : vector<4x648xf32> to vector<4x648xbf16>
    %c0_125 = arith.constant 0 : index
    %c0_126 = arith.constant 0 : index
    %c0_127 = arith.constant 0 : index
    %119 = vector.load %arg7[%c0_125, %c0_126, %c0_127] : memref<1x4x648xbf16, #tpu.memory_space<vmem>>, vector<1x4x648xbf16>
    %120 = vector.shape_cast %119 : vector<1x4x648xbf16> to vector<4x648xbf16>
    %121 = vector.shape_cast %118 : vector<4x648xbf16> to vector<1x4x648xbf16>
    tpu.vector_store %arg7[%c0_125, %c0_126, %c0_127], %121 {strides = array<i32>} : memref<1x4x648xbf16, #tpu.memory_space<vmem>>, vector<1x4x648xbf16>,
    return
  }
  func.func @transform_0(%arg0: i32) -> (i32, i32, i32, i32) {
    %c0_i32 = arith.constant 0 : i32
    %c0_i32_0 = arith.constant 0 : i32
    %c0_i32_1 = arith.constant 0 : i32
    %c0_i32_2 = arith.constant 0 : i32
    return %arg0, %c0_i32, %c0_i32_0, %c0_i32_1 : i32, i32, i32, i32
  }
  func.func @transform_1(%arg0: i32) -> (i32, i32) {
    %c0_i32 = arith.constant 0 : i32
    %c0_i32_0 = arith.constant 0 : i32
    %c0_i32_1 = arith.constant 0 : i32
    return %c0_i32, %c0_i32_0 : i32, i32
  }
  func.func @transform_2(%arg0: i32) -> (i32, i32, i32) {
    %c0_i32 = arith.constant 0 : i32
    %c0_i32_0 = arith.constant 0 : i32
    %c0_i32_1 = arith.constant 0 : i32
    %c0_i32_2 = arith.constant 0 : i32
    return %c0_i32, %c0_i32_0, %c0_i32_1 : i32, i32, i32
  }
  func.func @transform_3(%arg0: i32) -> (i32, i32) {
    %c0_i32 = arith.constant 0 : i32
    %c0_i32_0 = arith.constant 0 : i32
    %c0_i32_1 = arith.constant 0 : i32
    return %c0_i32, %c0_i32_0 : i32, i32
  }
  func.func @transform_4(%arg0: i32) -> (i32, i32, i32) {
    %c0_i32 = arith.constant 0 : i32
    %c0_i32_0 = arith.constant 0 : i32
    %c0_i32_1 = arith.constant 0 : i32
    %c0_i32_2 = arith.constant 0 : i32
    return %c0_i32, %c0_i32_0, %c0_i32_1 : i32, i32, i32
  }
  func.func @transform_5(%arg0: i32) -> (i32, i32) {
    %c0_i32 = arith.constant 0 : i32
    %c0_i32_0 = arith.constant 0 : i32
    %c0_i32_1 = arith.constant 0 : i32
    return %c0_i32, %c0_i32_0 : i32, i32
  }
  func.func @transform_6(%arg0: i32) -> (i32, i32, i32) {
    %c0_i32 = arith.constant 0 : i32
    %c0_i32_0 = arith.constant 0 : i32
    %c0_i32_1 = arith.constant 0 : i32
    return %arg0, %c0_i32, %c0_i32_0 : i32, i32, i32
  }
}

</mosaic_0001>

<llo_original>
// kernel: tile.8
$region0: #{tile.8}
  #allocation0 [shape = 's32[1]{0}', space=sflag, size = 0x4, scoped, tag = 'scoped memory for tile.8']
  %s0 = inlined_call_operand.vmem [shape: f32[324], index: 0, kind: input, shape index: {}]
  %s1 = inlined_call_operand.vmem [shape: f32[2,324], index: 1, kind: output, shape index: {}]
  // Predicated region
  $region2: #{tile.8} parent=0 // pred_check
    _
  $region3: #{tile.8} parent=0 // pred_check_branch
    %3 = sbr.rel (0) target = $region5
  $region4: #{tile.8} parent=0 // pred_region
    _
  $region5: #{tile.8} parent=0 // pred_fallthru
    _
  %v4 = vld [vmem:[%s0] ss:$0 sm:$0xff]
  %5 = vst [vmem:[%s1] sm:$0x3] %v4
  %s6 = scalar_lea.vmem %s0, 1
  %v7 = vld [vmem:[%s6] ss:$0 sm:$0xff]
  %s8 = scalar_lea.vmem %s1, 2
  %9 = vst [vmem:[%s8] sm:$0x3] %v7
  %s10 = scalar_lea.vmem %s0, 2
  %v11 = vld [vmem:[%s10] ss:$0 sm:$0xff]
  %s12 = scalar_lea.vmem %s1, 4
  %13 = vst [vmem:[%s12] sm:$0x3] %v11

// kernel: tile.9
$region0: #{tile.9}
  %s0 = inlined_call_operand.vmem [shape: f32[2,324], index: 0, kind: input, shape index: {}]
  %s1 = inlined_call_operand.vmem [shape: f32[1,648], index: 1, kind: output, shape index: {}]
  $region1: #{tile.9} parent=0
    #allocation0 [shape = 'u8[24576]{0}', space=vmem, size = 0x6000, scoped, tag = 'scoped mem for output reshape']
    #allocation1 [shape = 'u8[12288]{0}', space=vmem, size = 0x3000, scoped, tag = 'scoped mem for input reshape']
    %s3 = ssub.s32 4, 1
    %s4 = scalar_lea.vmem %s0, 4
    %v5 = vld [vmem:[%s4] sm:%s3]
    %s6 = scalar_lea.vmem [#allocation1], 16
    %7 = vst [vmem:[%s6] sm:%s3] %v5
    %s8 = scalar_lea.vmem %s0, 2
    %v9 = vld [vmem:[%s8] sm:%s3]
    %s10 = scalar_lea.vmem [#allocation1], 8
    %11 = vst [vmem:[%s10] sm:%s3] %v9
    %v12 = vld [vmem:[%s0] sm:%s3]
    %13 = vst [vmem:[#allocation1] sm:%s3] %v12
    %s14 = scalar_lea.vmem [#allocation1], 16
    %v15 = vld [vmem:[%s14] sm:$0x1]
    %vm16 = vcmask 556032
    %s17 = scalar_lea.vmem [#allocation0], 16
    %18 = vst.msk [vmem:[%s17] sm:$0x1] %vm16, %v15
    %s19 = smov 3
    %v20 = vld [vmem:[#allocation1] ss:$8 sm:%s19]
    %21 = vst [vmem:[#allocation0] ss:$8 sm:$0x3] %v20
    %s22 = scalar_lea.vmem [#allocation1], 17
    %v23 = vld [vmem:[%s22] sm:$0x1]
    %s24 = scalar_lea.vmem [#allocation1], 17
    %s25 = smov 3
    %v26 = vld [vmem:[%s24] ss:$-16 sm:%s25]
    %s27 = scalar_lea.vmem [#allocation1], 7
    %v28 = vld [vmem:[%s27] sm:$0x4]
    %vm29 = vcmask 1042434
    %v30 = vsel %vm29, %v28, %v26
    %vm31 = vcmask 490496
    %v32 = vsel %vm31, %v30, %v23
    %33 = vrot.lane.b32.xlu0 %v32, 68
    %v34 = vpop.permute.xlu0 %33
    %vm35 = vcmask 64512
    %s36 = scalar_lea.vmem [#allocation0], 40
    %37 = vst.msk [vmem:[%s36] sm:$0x1] %vm35, %v34
    %vm38 = vcmask 1048096
    %s39 = scalar_lea.vmem [#allocation0], 32
    %40 = vst.msk [vmem:[%s39] ss:$-16 sm:$0x3] %vm38, %v34
    %s41 = scalar_lea.vmem [#allocation0], 22
    %42 = vst.msk [vmem:[%s41] sm:$0x4] %vm38, %v34
    %s43 = scalar_lea.vmem [#allocation1], 9
    %s44 = smov 3
    %v45 = vld [vmem:[%s43] ss:$-8 sm:%s44]
    %46 = vrot.lane.b32.xlu0 %v45, 68
    %v47 = vpop.permute.xlu0 %46
    %vm48 = vcmask 556032
    %s49 = scalar_lea.vmem [#allocation0], 32
    %50 = vst.msk [vmem:[%s49] ss:$-8 sm:$0x3] %vm48, %v47
    %s52 = ssub.s32 2, 1
    %v53 = vld [vmem:[#allocation0] sm:%s52]
    %s55 = ssub.s32 2, 1
    %56 = vst [vmem:[%s1] sm:%s55] %v53
    %s57 = scalar_lea.vmem [#allocation0], 8
    %v58 = vld [vmem:[%s57] sm:%s52]
    %s60 = ssub.s32 2, 1
    %s61 = scalar_lea.vmem %s1, 1
    %62 = vst [vmem:[%s61] sm:%s60] %v58
    %s63 = scalar_lea.vmem [#allocation0], 16
    %v64 = vld [vmem:[%s63] sm:%s52]
    %s66 = ssub.s32 2, 1
    %s67 = scalar_lea.vmem %s1, 2
    %68 = vst [vmem:[%s67] sm:%s66] %v64
    %s69 = scalar_lea.vmem [#allocation0], 24
    %v70 = vld [vmem:[%s69] sm:%s52]
    %s72 = ssub.s32 2, 1
    %s73 = scalar_lea.vmem %s1, 3
    %74 = vst [vmem:[%s73] sm:%s72] %v70
    %s75 = scalar_lea.vmem [#allocation0], 32
    %v76 = vld [vmem:[%s75] sm:%s52]
    %s78 = ssub.s32 2, 1
    %s79 = scalar_lea.vmem %s1, 4
    %80 = vst [vmem:[%s79] sm:%s78] %v76
    %s81 = scalar_lea.vmem [#allocation0], 40
    %v82 = vld [vmem:[%s81] sm:%s52]
    %s84 = ssub.s32 2, 1
    %s85 = scalar_lea.vmem %s1, 5
    %86 = vst [vmem:[%s85] sm:%s84] %v82

// kernel: basic_block_forward.1
$region0: #{basic_block_forward.1}
  #allocation0 [shape = 'u32[]', space=smem, size = 0x4, offset = 0x4, fixed_abs, tag = 'smem constant byte address 0x4 - core index']
  #allocation1 [shape = 'u32[72,128]{1,0:T(1,128)}', space=vmem, size = 0x9000, scoped, tag = 'internal scratch']
  #allocation2 [shape = 'bf16[4,686]{1,0:T(4,128)(2,1)}', space=vmem, size = 0x1800, scoped, tag = 'scratch operand']
  %s0 = inlined_call_operand.vmem [shape: bf16[1,4,1,686], index: 0, kind: input, shape index: {}]
  %s1 = inlined_call_operand.vmem [shape: f32[1,648], index: 1, kind: input, shape index: {}]
  %s2 = inlined_call_operand.vmem [shape: bf16[9,4,4], index: 2, kind: input, shape index: {}]
  %s3 = inlined_call_operand.vmem [shape: f32[4,1], index: 3, kind: input, shape index: {}]
  %s4 = inlined_call_operand.vmem [shape: bf16[9,4,4], index: 4, kind: input, shape index: {}]
  %s5 = inlined_call_operand.vmem [shape: f32[4,1], index: 5, kind: input, shape index: {}]
  %s6 = inlined_call_operand.vmem [shape: bf16[1,4,648], index: 6, kind: output, shape index: {}]
  %s7 = sld [smem:[#allocation0]]
  $region34: #{basic_block_forward.1} parent=0
    _
  %s9 = ssub.s32 1, %s7
  %s10 = scalar_select 0, %s9, %s7
  // Predicated region
  $region2: #{basic_block_forward.1} parent=0 // pred_check
    _
  $region3: #{basic_block_forward.1} parent=0 // pred_check_branch
    %12 = sbr.rel (0) target = $region5
  $region4: #{basic_block_forward.1} parent=0 // pred_region
    _
  $region5: #{basic_block_forward.1} parent=0 // pred_fallthru
    _
  // Predicated region
  $region6: #{basic_block_forward.1} parent=0 // pred_check
    _
  $region7: #{basic_block_forward.1} parent=0 // pred_check_branch
    %14 = sbr.rel (0) target = $region9
  $region8: #{basic_block_forward.1} parent=0 // pred_region
    _
  $region9: #{basic_block_forward.1} parent=0 // pred_fallthru
    _
  // Predicated region
  $region10: #{basic_block_forward.1} parent=0 // pred_check
    _
  $region11: #{basic_block_forward.1} parent=0 // pred_check_branch
    %16 = sbr.rel (0) target = $region13
  $region12: #{basic_block_forward.1} parent=0 // pred_region
    _
  $region13: #{basic_block_forward.1} parent=0 // pred_fallthru
    _
  // Predicated region
  $region14: #{basic_block_forward.1} parent=0 // pred_check
    _
  $region15: #{basic_block_forward.1} parent=0 // pred_check_branch
    %18 = sbr.rel (0) target = $region17
  $region16: #{basic_block_forward.1} parent=0 // pred_region
    _
  $region17: #{basic_block_forward.1} parent=0 // pred_fallthru
    _
  // Predicated region
  $region18: #{basic_block_forward.1} parent=0 // pred_check
    _
  $region19: #{basic_block_forward.1} parent=0 // pred_check_branch
    %20 = sbr.rel (0) target = $region21
  $region20: #{basic_block_forward.1} parent=0 // pred_region
    _
  $region21: #{basic_block_forward.1} parent=0 // pred_fallthru
    _
  // Predicated region
  $region22: #{basic_block_forward.1} parent=0 // pred_check
    _
  $region23: #{basic_block_forward.1} parent=0 // pred_check_branch
    %22 = sbr.rel (0) target = $region25
  $region24: #{basic_block_forward.1} parent=0 // pred_region
    _
  $region25: #{basic_block_forward.1} parent=0 // pred_fallthru
    _
  %v24 = vld [vmem:[%s0] sm:$0x3f]
  %v25 = vld [vmem:[%s0 + $0x6] sm:$0x3f]
  %v26 = vld [vmem:[%s0 + $0xc] sm:$0x3f]
  %v27 = vld [vmem:[%s0 + $0x12] sm:$0x3f]
  %v28 = vld [vmem:[%s2] sm:$0x3]
  %s29 = scalar_lea.vmem %s2, 2
  %v30 = vld [vmem:[%s29] sm:$0x3]
  %32 = vst [vmem:[#allocation1] ss:$9 sm:$0xff] %v24
  %v33 = vld [vmem:[#allocation1] sm:$0xff]
  %v35 = vld [vmem:[#allocation1 + $0x9] sm:$0xff]
  %v37 = vld [vmem:[#allocation1 + $0x12] sm:$0xff]
  %v39 = vld [vmem:[#allocation1 + $0x1b] sm:$0xff]
  %v41 = vld [vmem:[#allocation1 + $0x24] sm:$0xff]
  %v43 = vld [vmem:[#allocation1 + $0x2d] sm:$0xff]
  %46 = vst [vmem:[#allocation1] ss:$9 sm:$0xff] %v25
  %v47 = vld [vmem:[#allocation1] sm:$0xff]
  %v49 = vld [vmem:[#allocation1 + $0x9] sm:$0xff]
  %v51 = vld [vmem:[#allocation1 + $0x12] sm:$0xff]
  %v53 = vld [vmem:[#allocation1 + $0x1b] sm:$0xff]
  %v55 = vld [vmem:[#allocation1 + $0x24] sm:$0xff]
  %v57 = vld [vmem:[#allocation1 + $0x2d] sm:$0xff]
  %60 = vst [vmem:[#allocation1] ss:$9 sm:$0xff] %v26
  %v61 = vld [vmem:[#allocation1] sm:$0xff]
  %v63 = vld [vmem:[#allocation1 + $0x9] sm:$0xff]
  %v65 = vld [vmem:[#allocation1 + $0x12] sm:$0xff]
  %v67 = vld [vmem:[#allocation1 + $0x1b] sm:$0xff]
  %v69 = vld [vmem:[#allocation1 + $0x24] sm:$0xff]
  %v71 = vld [vmem:[#allocation1 + $0x2d] sm:$0xff]
  %74 = vst [vmem:[#allocation1] ss:$9 sm:$0xff] %v27
  %v75 = vld [vmem:[#allocation1] sm:$0xff]
  %v77 = vld [vmem:[#allocation1 + $0x9] sm:$0xff]
  %v79 = vld [vmem:[#allocation1 + $0x12] sm:$0xff]
  %v81 = vld [vmem:[#allocation1 + $0x1b] sm:$0xff]
  %v83 = vld [vmem:[#allocation1 + $0x24] sm:$0xff]
  %v85 = vld [vmem:[#allocation1 + $0x2d] sm:$0xff]
  %v87 = vunpack.c.l.b16 %v33
  %v88 = vunpack.c.l.b16 %v35
  %v89 = vunpack.c.l.b16 %v37
  %v90 = vunpack.c.l.b16 %v39
  %v91 = vunpack.c.l.b16 %v41
  %v92 = vunpack.c.l.b16 %v43
  %v93 = vunpack.c.l.b16 %v47
  %v94 = vunpack.c.l.b16 %v49
  %v95 = vunpack.c.l.b16 %v51
  %v96 = vunpack.c.l.b16 %v53
  %v97 = vunpack.c.l.b16 %v55
  %v98 = vunpack.c.l.b16 %v57
  %v99 = vunpack.c.l.b16 %v61
  %v100 = vunpack.c.l.b16 %v63
  %v101 = vunpack.c.l.b16 %v65
  %v102 = vunpack.c.l.b16 %v67
  %v103 = vunpack.c.l.b16 %v69
  %v104 = vunpack.c.l.b16 %v71
  %v105 = vunpack.c.l.b16 %v75
  %v106 = vunpack.c.l.b16 %v77
  %v107 = vunpack.c.l.b16 %v79
  %v108 = vunpack.c.l.b16 %v81
  %v109 = vunpack.c.l.b16 %v83
  %v110 = vunpack.c.l.b16 %v85
  %v111 = vrot.slane %v93, 7
  %vm112 = vcmask 1041409
  %v113 = vsel %vm112, %v111, %v87
  %v114 = vrot.slane %v99, 6
  %vm115 = vcmask 1042434
  %v116 = vsel %vm115, %v114, %v113
  %v117 = vrot.slane %v105, 5
  %vm118 = vcmask 1043459
  %v119 = vsel %vm118, %v117, %v116
  %v120 = vrot.slane %v94, 7
  %v121 = vsel %vm112, %v120, %v88
  %v122 = vrot.slane %v100, 6
  %v123 = vsel %vm115, %v122, %v121
  %v124 = vrot.slane %v106, 5
  %v125 = vsel %vm118, %v124, %v123
  %v126 = vrot.slane %v95, 7
  %v127 = vsel %vm112, %v126, %v89
  %v128 = vrot.slane %v101, 6
  %v129 = vsel %vm115, %v128, %v127
  %v130 = vrot.slane %v107, 5
  %v131 = vsel %vm118, %v130, %v129
  %v132 = vrot.slane %v96, 7
  %v133 = vsel %vm112, %v132, %v90
  %v134 = vrot.slane %v102, 6
  %v135 = vsel %vm115, %v134, %v133
  %v136 = vrot.slane %v108, 5
  %v137 = vsel %vm118, %v136, %v135
  %v138 = vrot.slane %v97, 7
  %v139 = vsel %vm112, %v138, %v91
  %v140 = vrot.slane %v103, 6
  %v141 = vsel %vm115, %v140, %v139
  %v142 = vrot.slane %v109, 5
  %v143 = vsel %vm118, %v142, %v141
  %v144 = vrot.slane %v98, 7
  %v145 = vsel %vm112, %v144, %v92
  %v146 = vrot.slane %v104, 6
  %v147 = vsel %vm115, %v146, %v145
  %v148 = vrot.slane %v110, 5
  %v149 = vsel %vm118, %v148, %v147
  %v150 = vpack.c.b16 %v119, %v119
  %v151 = vpack.c.b16 %v125, %v125
  %v152 = vpack.c.b16 %v131, %v131
  %v153 = vpack.c.b16 %v137, %v137
  %v154 = vpack.c.b16 %v143, %v143
  %v155 = vpack.c.b16 %v149, %v149
  %156 = vrot.lane.b32.xlu0 %v150, 127
  %v157 = vpop.permute.xlu0 %156
  %158 = vrot.lane.b32.xlu0 %v151, 127
  %v159 = vpop.permute.xlu0 %158
  %160 = vrot.lane.b32.xlu0 %v152, 127
  %v161 = vpop.permute.xlu0 %160
  %162 = vrot.lane.b32.xlu0 %v153, 127
  %v163 = vpop.permute.xlu0 %162
  %164 = vrot.lane.b32.xlu0 %v154, 127
  %v165 = vpop.permute.xlu0 %164
  %166 = vrot.lane.b32.xlu0 %v155, 127
  %v167 = vpop.permute.xlu0 %166
  %vm168 = vcmask 1039360
  %v169 = vsel %vm168, %v157, %v159
  %v170 = vsel %vm168, %v159, %v161
  %v171 = vsel %vm168, %v161, %v163
  %v172 = vsel %vm168, %v163, %v165
  %v173 = vsel %vm168, %v165, %v167
  %vm174 = vcmask 31744
  %v176 = vsel %vm174, %v30, 0
  %vm178 = vcmask 1041408
  %v180 = vsel %vm178, %v169, 0
  %v183 = vsel %vm178, %v170, 0
  %v186 = vsel %vm178, %v171, 0
  %v189 = vsel %vm178, %v172, 0
  %v192 = vsel %vm178, %v173, 0
  %v195 = vsel %vm178, %v167, 0
  %197 = vmatpush.bf16.msra.mxu0 0
  %198 = vmatpush.bf16.msra.mxu0 0
  %199 = vmatpush.bf16.msra.mxu0 0
  %200 = vmatpush.bf16.msra.mxu0 0
  %201 = vmatpush.bf16.msra.mxu0 0
  %202 = vmatpush.bf16.msra.mxu0 0
  %203 = vmatpush.bf16.msra.mxu0 0
  %204 = vmatpush.bf16.msra.mxu0 %v180
  %205 = vmatmul.bf16.gmra.mxu0 %v176
  %v206 = vpop.f32.mrf.mxu0
  %v207 = vadd.f32 0.0, %v206
  %v208 = vpop.f32.mrf.mxu0
  %209 = vdwg.mxu0
  %210 = vmatpush.bf16.msra.mxu0 0
  %211 = vmatpush.bf16.msra.mxu0 0
  %212 = vmatpush.bf16.msra.mxu0 0
  %213 = vmatpush.bf16.msra.mxu0 0
  %214 = vmatpush.bf16.msra.mxu0 0
  %215 = vmatpush.bf16.msra.mxu0 0
  %216 = vmatpush.bf16.msra.mxu0 0
  %217 = vmatpush.bf16.msra.mxu0 %v183
  %218 = vmatmul.bf16.gmra.mxu0 %v176
  %v219 = vpop.f32.mrf.mxu0
  %v220 = vadd.f32 0.0, %v219
  %v221 = vpop.f32.mrf.mxu0
  %222 = vdwg.mxu0
  %223 = vmatpush.bf16.msra.mxu0 0
  %224 = vmatpush.bf16.msra.mxu0 0
  %225 = vmatpush.bf16.msra.mxu0 0
  %226 = vmatpush.bf16.msra.mxu0 0
  %227 = vmatpush.bf16.msra.mxu0 0
  %228 = vmatpush.bf16.msra.mxu0 0
  %229 = vmatpush.bf16.msra.mxu0 0
  %230 = vmatpush.bf16.msra.mxu0 %v186
  %231 = vmatmul.bf16.gmra.mxu0 %v176
  %v232 = vpop.f32.mrf.mxu0
  %v233 = vadd.f32 0.0, %v232
  %v234 = vpop.f32.mrf.mxu0
  %235 = vdwg.mxu0
  %236 = vmatpush.bf16.msra.mxu0 0
  %237 = vmatpush.bf16.msra.mxu0 0
  %238 = vmatpush.bf16.msra.mxu0 0
  %239 = vmatpush.bf16.msra.mxu0 0
  %240 = vmatpush.bf16.msra.mxu0 0
  %241 = vmatpush.bf16.msra.mxu0 0
  %242 = vmatpush.bf16.msra.mxu0 0
  %243 = vmatpush.bf16.msra.mxu0 %v189
  %244 = vmatmul.bf16.gmra.mxu0 %v176
  %v245 = vpop.f32.mrf.mxu0
  %v246 = vadd.f32 0.0, %v245
  %v247 = vpop.f32.mrf.mxu0
  %248 = vdwg.mxu0
  %249 = vmatpush.bf16.msra.mxu0 0
  %250 = vmatpush.bf16.msra.mxu0 0
  %251 = vmatpush.bf16.msra.mxu0 0
  %252 = vmatpush.bf16.msra.mxu0 0
  %253 = vmatpush.bf16.msra.mxu0 0
  %254 = vmatpush.bf16.msra.mxu0 0
  %255 = vmatpush.bf16.msra.mxu0 0
  %256 = vmatpush.bf16.msra.mxu0 %v192
  %257 = vmatmul.bf16.gmra.mxu0 %v176
  %v258 = vpop.f32.mrf.mxu0
  %v259 = vadd.f32 0.0, %v258
  %v260 = vpop.f32.mrf.mxu0
  %261 = vdwg.mxu0
  %262 = vmatpush.bf16.msra.mxu0 0
  %263 = vmatpush.bf16.msra.mxu0 0
  %264 = vmatpush.bf16.msra.mxu0 0
  %265 = vmatpush.bf16.msra.mxu0 0
  %266 = vmatpush.bf16.msra.mxu0 0
  %267 = vmatpush.bf16.msra.mxu0 0
  %268 = vmatpush.bf16.msra.mxu0 0
  %269 = vmatpush.bf16.msra.mxu0 %v195
  %270 = vmatmul.bf16.gmra.mxu0 %v176
  %v271 = vpop.f32.mrf.mxu0
  %v272 = vadd.f32 0.0, %v271
  %v273 = vpop.f32.mrf.mxu0
  %274 = vdwg.mxu0
  %275 = vst [vmem:[#allocation1] ss:$9 sm:$0xff] %v24
  %v276 = vld [vmem:[#allocation1] sm:$0xff]
  %v278 = vld [vmem:[#allocation1 + $0x9] sm:$0xff]
  %v280 = vld [vmem:[#allocation1 + $0x12] sm:$0xff]
  %v282 = vld [vmem:[#allocation1 + $0x1b] sm:$0xff]
  %v284 = vld [vmem:[#allocation1 + $0x24] sm:$0xff]
  %v286 = vld [vmem:[#allocation1 + $0x2d] sm:$0xff]
  %288 = vst [vmem:[#allocation1] ss:$9 sm:$0xff] %v25
  %v289 = vld [vmem:[#allocation1] sm:$0xff]
  %v291 = vld [vmem:[#allocation1 + $0x9] sm:$0xff]
  %v293 = vld [vmem:[#allocation1 + $0x12] sm:$0xff]
  %v295 = vld [vmem:[#allocation1 + $0x1b] sm:$0xff]
  %v297 = vld [vmem:[#allocation1 + $0x24] sm:$0xff]
  %v299 = vld [vmem:[#allocation1 + $0x2d] sm:$0xff]
  %301 = vst [vmem:[#allocation1] ss:$9 sm:$0xff] %v26
  %v302 = vld [vmem:[#allocation1] sm:$0xff]
  %v304 = vld [vmem:[#allocation1 + $0x9] sm:$0xff]
  %v306 = vld [vmem:[#allocation1 + $0x12] sm:$0xff]
  %v308 = vld [vmem:[#allocation1 + $0x1b] sm:$0xff]
  %v310 = vld [vmem:[#allocation1 + $0x24] sm:$0xff]
  %v312 = vld [vmem:[#allocation1 + $0x2d] sm:$0xff]
  %314 = vst [vmem:[#allocation1] ss:$9 sm:$0xff] %v27
  %v315 = vld [vmem:[#allocation1] sm:$0xff]
  %v317 = vld [vmem:[#allocation1 + $0x9] sm:$0xff]
  %v319 = vld [vmem:[#allocation1 + $0x12] sm:$0xff]
  %v321 = vld [vmem:[#allocation1 + $0x1b] sm:$0xff]
  %v323 = vld [vmem:[#allocation1 + $0x24] sm:$0xff]
  %v325 = vld [vmem:[#allocation1 + $0x2d] sm:$0xff]
  %v327 = vunpack.c.l.b16 %v276
  %v328 = vunpack.c.l.b16 %v278
  %v329 = vunpack.c.l.b16 %v280
  %v330 = vunpack.c.l.b16 %v282
  %v331 = vunpack.c.l.b16 %v284
  %v332 = vunpack.c.l.b16 %v286
  %v333 = vunpack.c.l.b16 %v289
  %v334 = vunpack.c.l.b16 %v291
  %v335 = vunpack.c.l.b16 %v293
  %v336 = vunpack.c.l.b16 %v295
  %v337 = vunpack.c.l.b16 %v297
  %v338 = vunpack.c.l.b16 %v299
  %v339 = vunpack.c.l.b16 %v302
  %v340 = vunpack.c.l.b16 %v304
  %v341 = vunpack.c.l.b16 %v306
  %v342 = vunpack.c.l.b16 %v308
  %v343 = vunpack.c.l.b16 %v310
  %v344 = vunpack.c.l.b16 %v312
  %v345 = vunpack.c.l.b16 %v315
  %v346 = vunpack.c.l.b16 %v317
  %v347 = vunpack.c.l.b16 %v319
  %v348 = vunpack.c.l.b16 %v321
  %v349 = vunpack.c.l.b16 %v323
  %v350 = vunpack.c.l.b16 %v325
  %v351 = vrot.slane %v333, 7
  %v352 = vsel %vm112, %v351, %v327
  %v353 = vrot.slane %v339, 6
  %v354 = vsel %vm115, %v353, %v352
  %v355 = vrot.slane %v345, 5
  %v356 = vsel %vm118, %v355, %v354
  %v357 = vrot.slane %v334, 7
  %v358 = vsel %vm112, %v357, %v328
  %v359 = vrot.slane %v340, 6
  %v360 = vsel %vm115, %v359, %v358
  %v361 = vrot.slane %v346, 5
  %v362 = vsel %vm118, %v361, %v360
  %v363 = vrot.slane %v335, 7
  %v364 = vsel %vm112, %v363, %v329
  %v365 = vrot.slane %v341, 6
  %v366 = vsel %vm115, %v365, %v364
  %v367 = vrot.slane %v347, 5
  %v368 = vsel %vm118, %v367, %v366
  %v369 = vrot.slane %v336, 7
  %v370 = vsel %vm112, %v369, %v330
  %v371 = vrot.slane %v342, 6
  %v372 = vsel %vm115, %v371, %v370
  %v373 = vrot.slane %v348, 5
  %v374 = vsel %vm118, %v373, %v372
  %v375 = vrot.slane %v337, 7
  %v376 = vsel %vm112, %v375, %v331
  %v377 = vrot.slane %v343, 6
  %v378 = vsel %vm115, %v377, %v376
  %v379 = vrot.slane %v349, 5
  %v380 = vsel %vm118, %v379, %v378
  %v381 = vrot.slane %v338, 7
  %v382 = vsel %vm112, %v381, %v332
  %v383 = vrot.slane %v344, 6
  %v384 = vsel %vm115, %v383, %v382
  %v385 = vrot.slane %v350, 5
  %v386 = vsel %vm118, %v385, %v384
  %v387 = vpack.c.b16 %v356, %v356
  %v388 = vpack.c.b16 %v362, %v362
  %v389 = vpack.c.b16 %v368, %v368
  %v390 = vpack.c.b16 %v374, %v374
  %v391 = vpack.c.b16 %v380, %v380
  %v392 = vpack.c.b16 %v386, %v386
  %v394 = vsel %vm174, %v28, 0
  %v397 = vsel %vm178, %v387, 0
  %v400 = vsel %vm178, %v388, 0
  %v403 = vsel %vm178, %v389, 0
  %v406 = vsel %vm178, %v390, 0
  %v409 = vsel %vm178, %v391, 0
  %v412 = vsel %vm178, %v392, 0
  %414 = vmatpush.bf16.msra.mxu0 0
  %415 = vmatpush.bf16.msra.mxu0 0
  %416 = vmatpush.bf16.msra.mxu0 0
  %417 = vmatpush.bf16.msra.mxu0 0
  %418 = vmatpush.bf16.msra.mxu0 0
  %419 = vmatpush.bf16.msra.mxu0 0
  %420 = vmatpush.bf16.msra.mxu0 0
  %421 = vmatpush.bf16.msra.mxu0 %v397
  %422 = vmatmul.bf16.gmra.mxu0 %v394
  %v423 = vpop.f32.mrf.mxu0
  %v424 = vadd.f32 %v207, %v423
  %v425 = vpop.f32.mrf.mxu0
  %426 = vdwg.mxu0
  %427 = vmatpush.bf16.msra.mxu0 0
  %428 = vmatpush.bf16.msra.mxu0 0
  %429 = vmatpush.bf16.msra.mxu0 0
  %430 = vmatpush.bf16.msra.mxu0 0
  %431 = vmatpush.bf16.msra.mxu0 0
  %432 = vmatpush.bf16.msra.mxu0 0
  %433 = vmatpush.bf16.msra.mxu0 0
  %434 = vmatpush.bf16.msra.mxu0 %v400
  %435 = vmatmul.bf16.gmra.mxu0 %v394
  %v436 = vpop.f32.mrf.mxu0
  %v437 = vadd.f32 %v220, %v436
  %v438 = vpop.f32.mrf.mxu0
  %439 = vdwg.mxu0
  %440 = vmatpush.bf16.msra.mxu0 0
  %441 = vmatpush.bf16.msra.mxu0 0
  %442 = vmatpush.bf16.msra.mxu0 0
  %443 = vmatpush.bf16.msra.mxu0 0
  %444 = vmatpush.bf16.msra.mxu0 0
  %445 = vmatpush.bf16.msra.mxu0 0
  %446 = vmatpush.bf16.msra.mxu0 0
  %447 = vmatpush.bf16.msra.mxu0 %v403
  %448 = vmatmul.bf16.gmra.mxu0 %v394
  %v449 = vpop.f32.mrf.mxu0
  %v450 = vadd.f32 %v233, %v449
  %v451 = vpop.f32.mrf.mxu0
  %452 = vdwg.mxu0
  %453 = vmatpush.bf16.msra.mxu0 0
  %454 = vmatpush.bf16.msra.mxu0 0
  %455 = vmatpush.bf16.msra.mxu0 0
  %456 = vmatpush.bf16.msra.mxu0 0
  %457 = vmatpush.bf16.msra.mxu0 0
  %458 = vmatpush.bf16.msra.mxu0 0
  %459 = vmatpush.bf16.msra.mxu0 0
  %460 = vmatpush.bf16.msra.mxu0 %v406
  %461 = vmatmul.bf16.gmra.mxu0 %v394
  %v462 = vpop.f32.mrf.mxu0
  %v463 = vadd.f32 %v246, %v462
  %v464 = vpop.f32.mrf.mxu0
  %465 = vdwg.mxu0
  %466 = vmatpush.bf16.msra.mxu0 0
  %467 = vmatpush.bf16.msra.mxu0 0
  %468 = vmatpush.bf16.msra.mxu0 0
  %469 = vmatpush.bf16.msra.mxu0 0
  %470 = vmatpush.bf16.msra.mxu0 0
  %471 = vmatpush.bf16.msra.mxu0 0
  %472 = vmatpush.bf16.msra.mxu0 0
  %473 = vmatpush.bf16.msra.mxu0 %v409
  %474 = vmatmul.bf16.gmra.mxu0 %v394
  %v475 = vpop.f32.mrf.mxu0
  %v476 = vadd.f32 %v259, %v475
  %v477 = vpop.f32.mrf.mxu0
  %478 = vdwg.mxu0
  %479 = vmatpush.bf16.msra.mxu0 0
  %480 = vmatpush.bf16.msra.mxu0 0
  %481 = vmatpush.bf16.msra.mxu0 0
  %482 = vmatpush.bf16.msra.mxu0 0
  %483 = vmatpush.bf16.msra.mxu0 0
  %484 = vmatpush.bf16.msra.mxu0 0
  %485 = vmatpush.bf16.msra.mxu0 0
  %486 = vmatpush.bf16.msra.mxu0 %v412
  %487 = vmatmul.bf16.gmra.mxu0 %v394
  %v488 = vpop.f32.mrf.mxu0
  %v489 = vadd.f32 %v272, %v488
  %v490 = vpop.f32.mrf.mxu0
  %491 = vdwg.mxu0
  %v492 = vld [vmem:[%s0] sm:$0x3f]
  %v493 = vld [vmem:[%s0 + $0x6] sm:$0x3f]
  %v494 = vld [vmem:[%s0 + $0xc] sm:$0x3f]
  %v495 = vld [vmem:[%s0 + $0x12] sm:$0x3f]
  %s496 = scalar_lea.vmem %s2, 4
  %v497 = vld [vmem:[%s496] sm:$0x3]
  %499 = vst [vmem:[#allocation1] ss:$9 sm:$0xff] %v492
  %v500 = vld [vmem:[#allocation1] sm:$0xff]
  %v502 = vld [vmem:[#allocation1 + $0x9] sm:$0xff]
  %v504 = vld [vmem:[#allocation1 + $0x12] sm:$0xff]
  %v506 = vld [vmem:[#allocation1 + $0x1b] sm:$0xff]
  %v508 = vld [vmem:[#allocation1 + $0x24] sm:$0xff]
  %v510 = vld [vmem:[#allocation1 + $0x2d] sm:$0xff]
  %513 = vst [vmem:[#allocation1] ss:$9 sm:$0xff] %v493
  %v514 = vld [vmem:[#allocation1] sm:$0xff]
  %v516 = vld [vmem:[#allocation1 + $0x9] sm:$0xff]
  %v518 = vld [vmem:[#allocation1 + $0x12] sm:$0xff]
  %v520 = vld [vmem:[#allocation1 + $0x1b] sm:$0xff]
  %v522 = vld [vmem:[#allocation1 + $0x24] sm:$0xff]
  %v524 = vld [vmem:[#allocation1 + $0x2d] sm:$0xff]
  %527 = vst [vmem:[#allocation1] ss:$9 sm:$0xff] %v494
  %v528 = vld [vmem:[#allocation1] sm:$0xff]
  %v530 = vld [vmem:[#allocation1 + $0x9] sm:$0xff]
  %v532 = vld [vmem:[#allocation1 + $0x12] sm:$0xff]
  %v534 = vld [vmem:[#allocation1 + $0x1b] sm:$0xff]
  %v536 = vld [vmem:[#allocation1 + $0x24] sm:$0xff]
  %v538 = vld [vmem:[#allocation1 + $0x2d] sm:$0xff]
  %541 = vst [vmem:[#allocation1] ss:$9 sm:$0xff] %v495
  %v542 = vld [vmem:[#allocation1] sm:$0xff]
  %v544 = vld [vmem:[#allocation1 + $0x9] sm:$0xff]
  %v546 = vld [vmem:[#allocation1 + $0x12] sm:$0xff]
  %v548 = vld [vmem:[#allocation1 + $0x1b] sm:$0xff]
  %v550 = vld [vmem:[#allocation1 + $0x24] sm:$0xff]
  %v552 = vld [vmem:[#allocation1 + $0x2d] sm:$0xff]
  %v554 = vunpack.c.l.b16 %v500
  %v555 = vunpack.c.l.b16 %v502
  %v556 = vunpack.c.l.b16 %v504
  %v557 = vunpack.c.l.b16 %v506
  %v558 = vunpack.c.l.b16 %v508
  %v559 = vunpack.c.l.b16 %v510
  %v560 = vunpack.c.l.b16 %v514
  %v561 = vunpack.c.l.b16 %v516
  %v562 = vunpack.c.l.b16 %v518
  %v563 = vunpack.c.l.b16 %v520
  %v564 = vunpack.c.l.b16 %v522
  %v565 = vunpack.c.l.b16 %v524
  %v566 = vunpack.c.l.b16 %v528
  %v567 = vunpack.c.l.b16 %v530
  %v568 = vunpack.c.l.b16 %v532
  %v569 = vunpack.c.l.b16 %v534
  %v570 = vunpack.c.l.b16 %v536
  %v571 = vunpack.c.l.b16 %v538
  %v572 = vunpack.c.l.b16 %v542
  %v573 = vunpack.c.l.b16 %v544
  %v574 = vunpack.c.l.b16 %v546
  %v575 = vunpack.c.l.b16 %v548
  %v576 = vunpack.c.l.b16 %v550
  %v577 = vunpack.c.l.b16 %v552
  %v578 = vrot.slane %v560, 7
  %v579 = vsel %vm112, %v578, %v554
  %v580 = vrot.slane %v566, 6
  %v581 = vsel %vm115, %v580, %v579
  %v582 = vrot.slane %v572, 5
  %v583 = vsel %vm118, %v582, %v581
  %v584 = vrot.slane %v561, 7
  %v585 = vsel %vm112, %v584, %v555
  %v586 = vrot.slane %v567, 6
  %v587 = vsel %vm115, %v586, %v585
  %v588 = vrot.slane %v573, 5
  %v589 = vsel %vm118, %v588, %v587
  %v590 = vrot.slane %v562, 7
  %v591 = vsel %vm112, %v590, %v556
  %v592 = vrot.slane %v568, 6
  %v593 = vsel %vm115, %v592, %v591
  %v594 = vrot.slane %v574, 5
  %v595 = vsel %vm118, %v594, %v593
  %v596 = vrot.slane %v563, 7
  %v597 = vsel %vm112, %v596, %v557
  %v598 = vrot.slane %v569, 6
  %v599 = vsel %vm115, %v598, %v597
  %v600 = vrot.slane %v575, 5
  %v601 = vsel %vm118, %v600, %v599
  %v602 = vrot.slane %v564, 7
  %v603 = vsel %vm112, %v602, %v558
  %v604 = vrot.slane %v570, 6
  %v605 = vsel %vm115, %v604, %v603
  %v606 = vrot.slane %v576, 5
  %v607 = vsel %vm118, %v606, %v605
  %v608 = vrot.slane %v565, 7
  %v609 = vsel %vm112, %v608, %v559
  %v610 = vrot.slane %v571, 6
  %v611 = vsel %vm115, %v610, %v609
  %v612 = vrot.slane %v577, 5
  %v613 = vsel %vm118, %v612, %v611
  %v614 = vpack.c.b16 %v583, %v583
  %v615 = vpack.c.b16 %v589, %v589
  %v616 = vpack.c.b16 %v595, %v595
  %v617 = vpack.c.b16 %v601, %v601
  %v618 = vpack.c.b16 %v607, %v607
  %v619 = vpack.c.b16 %v613, %v613
  %620 = vrot.lane.b32.xlu0 %v614, 126
  %v621 = vpop.permute.xlu0 %620
  %622 = vrot.lane.b32.xlu0 %v615, 126
  %v623 = vpop.permute.xlu0 %622
  %624 = vrot.lane.b32.xlu0 %v616, 126
  %v625 = vpop.permute.xlu0 %624
  %626 = vrot.lane.b32.xlu0 %v617, 126
  %v627 = vpop.permute.xlu0 %626
  %628 = vrot.lane.b32.xlu0 %v618, 126
  %v629 = vpop.permute.xlu0 %628
  %630 = vrot.lane.b32.xlu0 %v619, 126
  %v631 = vpop.permute.xlu0 %630
  %vm632 = vcmask 1031168
  %v633 = vsel %vm632, %v621, %v623
  %v634 = vsel %vm632, %v623, %v625
  %v635 = vsel %vm632, %v625, %v627
  %v636 = vsel %vm632, %v627, %v629
  %v637 = vsel %vm632, %v629, %v631
  %v639 = vsel %vm174, %v497, 0
  %v642 = vsel %vm178, %v633, 0
  %v645 = vsel %vm178, %v634, 0
  %v648 = vsel %vm178, %v635, 0
  %v651 = vsel %vm178, %v636, 0
  %v654 = vsel %vm178, %v637, 0
  %v657 = vsel %vm178, %v631, 0
  %659 = vmatpush.bf16.msra.mxu0 0
  %660 = vmatpush.bf16.msra.mxu0 0
  %661 = vmatpush.bf16.msra.mxu0 0
  %662 = vmatpush.bf16.msra.mxu0 0
  %663 = vmatpush.bf16.msra.mxu0 0
  %664 = vmatpush.bf16.msra.mxu0 0
  %665 = vmatpush.bf16.msra.mxu0 0
  %666 = vmatpush.bf16.msra.mxu0 %v642
  %667 = vmatmul.bf16.gmra.mxu0 %v639
  %v668 = vpop.f32.mrf.mxu0
  %v669 = vadd.f32 0.0, %v668
  %v670 = vpop.f32.mrf.mxu0
  %671 = vdwg.mxu0
  %672 = vmatpush.bf16.msra.mxu0 0
  %673 = vmatpush.bf16.msra.mxu0 0
  %674 = vmatpush.bf16.msra.mxu0 0
  %675 = vmatpush.bf16.msra.mxu0 0
  %676 = vmatpush.bf16.msra.mxu0 0
  %677 = vmatpush.bf16.msra.mxu0 0
  %678 = vmatpush.bf16.msra.mxu0 0
  %679 = vmatpush.bf16.msra.mxu0 %v645
  %680 = vmatmul.bf16.gmra.mxu0 %v639
  %v681 = vpop.f32.mrf.mxu0
  %v682 = vadd.f32 0.0, %v681
  %v683 = vpop.f32.mrf.mxu0
  %684 = vdwg.mxu0
  %685 = vmatpush.bf16.msra.mxu0 0
  %686 = vmatpush.bf16.msra.mxu0 0
  %687 = vmatpush.bf16.msra.mxu0 0
  %688 = vmatpush.bf16.msra.mxu0 0
  %689 = vmatpush.bf16.msra.mxu0 0
  %690 = vmatpush.bf16.msra.mxu0 0
  %691 = vmatpush.bf16.msra.mxu0 0
  %692 = vmatpush.bf16.msra.mxu0 %v648
  %693 = vmatmul.bf16.gmra.mxu0 %v639
  %v694 = vpop.f32.mrf.mxu0
  %v695 = vadd.f32 0.0, %v694
  %v696 = vpop.f32.mrf.mxu0
  %697 = vdwg.mxu0
  %698 = vmatpush.bf16.msra.mxu0 0
  %699 = vmatpush.bf16.msra.mxu0 0
  %700 = vmatpush.bf16.msra.mxu0 0
  %701 = vmatpush.bf16.msra.mxu0 0
  %702 = vmatpush.bf16.msra.mxu0 0
  %703 = vmatpush.bf16.msra.mxu0 0
  %704 = vmatpush.bf16.msra.mxu0 0
  %705 = vmatpush.bf16.msra.mxu0 %v651
  %706 = vmatmul.bf16.gmra.mxu0 %v639
  %v707 = vpop.f32.mrf.mxu0
  %v708 = vadd.f32 0.0, %v707
  %v709 = vpop.f32.mrf.mxu0
  %710 = vdwg.mxu0
  %711 = vmatpush.bf16.msra.mxu0 0
  %712 = vmatpush.bf16.msra.mxu0 0
  %713 = vmatpush.bf16.msra.mxu0 0
  %714 = vmatpush.bf16.msra.mxu0 0
  %715 = vmatpush.bf16.msra.mxu0 0
  %716 = vmatpush.bf16.msra.mxu0 0
  %717 = vmatpush.bf16.msra.mxu0 0
  %718 = vmatpush.bf16.msra.mxu0 %v654
  %719 = vmatmul.bf16.gmra.mxu0 %v639
  %v720 = vpop.f32.mrf.mxu0
  %v721 = vadd.f32 0.0, %v720
  %v722 = vpop.f32.mrf.mxu0
  %723 = vdwg.mxu0
  %724 = vmatpush.bf16.msra.mxu0 0
  %725 = vmatpush.bf16.msra.mxu0 0
  %726 = vmatpush.bf16.msra.mxu0 0
  %727 = vmatpush.bf16.msra.mxu0 0
  %728 = vmatpush.bf16.msra.mxu0 0
  %729 = vmatpush.bf16.msra.mxu0 0
  %730 = vmatpush.bf16.msra.mxu0 0
  %731 = vmatpush.bf16.msra.mxu0 %v657
  %732 = vmatmul.bf16.gmra.mxu0 %v639
  %v733 = vpop.f32.mrf.mxu0
  %v734 = vadd.f32 0.0, %v733
  %v735 = vpop.f32.mrf.mxu0
  %736 = vdwg.mxu0
  %v737 = vadd.f32 %v424, %v669
  %v738 = vadd.f32 %v437, %v682
  %v739 = vadd.f32 %v450, %v695
  %v740 = vadd.f32 %v463, %v708
  %v741 = vadd.f32 %v476, %v721
  %v742 = vadd.f32 %v489, %v734
  %v743 = vld [vmem:[%s0] sm:$0x3f]
  %v744 = vld [vmem:[%s0 + $0x6] sm:$0x3f]
  %v745 = vld [vmem:[%s0 + $0xc] sm:$0x3f]
  %v746 = vld [vmem:[%s0 + $0x12] sm:$0x3f]
  %s747 = scalar_lea.vmem %s2, 6
  %v748 = vld [vmem:[%s747] sm:$0x3]
  %750 = vst [vmem:[#allocation1] ss:$9 sm:$0xff] %v743
  %v751 = vld [vmem:[#allocation1] sm:$0xff]
  %v753 = vld [vmem:[#allocation1 + $0x9] sm:$0xff]
  %v755 = vld [vmem:[#allocation1 + $0x12] sm:$0xff]
  %v757 = vld [vmem:[#allocation1 + $0x1b] sm:$0xff]
  %v759 = vld [vmem:[#allocation1 + $0x24] sm:$0xff]
  %v761 = vld [vmem:[#allocation1 + $0x2d] sm:$0xff]
  %764 = vst [vmem:[#allocation1] ss:$9 sm:$0xff] %v744
  %v765 = vld [vmem:[#allocation1] sm:$0xff]
  %v767 = vld [vmem:[#allocation1 + $0x9] sm:$0xff]
  %v769 = vld [vmem:[#allocation1 + $0x12] sm:$0xff]
  %v771 = vld [vmem:[#allocation1 + $0x1b] sm:$0xff]
  %v773 = vld [vmem:[#allocation1 + $0x24] sm:$0xff]
  %v775 = vld [vmem:[#allocation1 + $0x2d] sm:$0xff]
  %778 = vst [vmem:[#allocation1] ss:$9 sm:$0xff] %v745
  %v779 = vld [vmem:[#allocation1] sm:$0xff]
  %v781 = vld [vmem:[#allocation1 + $0x9] sm:$0xff]
  %v783 = vld [vmem:[#allocation1 + $0x12] sm:$0xff]
  %v785 = vld [vmem:[#allocation1 + $0x1b] sm:$0xff]
  %v787 = vld [vmem:[#allocation1 + $0x24] sm:$0xff]
  %v789 = vld [vmem:[#allocation1 + $0x2d] sm:$0xff]
  %792 = vst [vmem:[#allocation1] ss:$9 sm:$0xff] %v746
  %v793 = vld [vmem:[#allocation1] sm:$0xff]
  %v795 = vld [vmem:[#allocation1 + $0x9] sm:$0xff]
  %v797 = vld [vmem:[#allocation1 + $0x12] sm:$0xff]
  %v799 = vld [vmem:[#allocation1 + $0x1b] sm:$0xff]
  %v801 = vld [vmem:[#allocation1 + $0x24] sm:$0xff]
  %v803 = vld [vmem:[#allocation1 + $0x2d] sm:$0xff]
  %v805 = vunpack.c.l.b16 %v751
  %v806 = vunpack.c.l.b16 %v753
  %v807 = vunpack.c.l.b16 %v755
  %v808 = vunpack.c.l.b16 %v757
  %v809 = vunpack.c.l.b16 %v759
  %v810 = vunpack.c.l.b16 %v761
  %v811 = vunpack.c.l.b16 %v765
  %v812 = vunpack.c.l.b16 %v767
  %v813 = vunpack.c.l.b16 %v769
  %v814 = vunpack.c.l.b16 %v771
  %v815 = vunpack.c.l.b16 %v773
  %v816 = vunpack.c.l.b16 %v775
  %v817 = vunpack.c.l.b16 %v779
  %v818 = vunpack.c.l.b16 %v781
  %v819 = vunpack.c.l.b16 %v783
  %v820 = vunpack.c.l.b16 %v785
  %v821 = vunpack.c.l.b16 %v787
  %v822 = vunpack.c.l.b16 %v789
  %v823 = vunpack.c.l.b16 %v793
  %v824 = vunpack.c.l.b16 %v795
  %v825 = vunpack.c.l.b16 %v797
  %v826 = vunpack.c.l.b16 %v799
  %v827 = vunpack.c.l.b16 %v801
  %v828 = vunpack.c.l.b16 %v803
  %v829 = vrot.slane %v811, 7
  %v830 = vsel %vm112, %v829, %v805
  %v831 = vrot.slane %v817, 6
  %v832 = vsel %vm115, %v831, %v830
  %v833 = vrot.slane %v823, 5
  %v834 = vsel %vm118, %v833, %v832
  %v835 = vrot.slane %v812, 7
  %v836 = vsel %vm112, %v835, %v806
  %v837 = vrot.slane %v818, 6
  %v838 = vsel %vm115, %v837, %v836
  %v839 = vrot.slane %v824, 5
  %v840 = vsel %vm118, %v839, %v838
  %v841 = vrot.slane %v813, 7
  %v842 = vsel %vm112, %v841, %v807
  %v843 = vrot.slane %v819, 6
  %v844 = vsel %vm115, %v843, %v842
  %v845 = vrot.slane %v825, 5
  %v846 = vsel %vm118, %v845, %v844
  %v847 = vrot.slane %v814, 7
  %v848 = vsel %vm112, %v847, %v808
  %v849 = vrot.slane %v820, 6
  %v850 = vsel %vm115, %v849, %v848
  %v851 = vrot.slane %v826, 5
  %v852 = vsel %vm118, %v851, %v850
  %v853 = vrot.slane %v815, 7
  %v854 = vsel %vm112, %v853, %v809
  %v855 = vrot.slane %v821, 6
  %v856 = vsel %vm115, %v855, %v854
  %v857 = vrot.slane %v827, 5
  %v858 = vsel %vm118, %v857, %v856
  %v859 = vrot.slane %v816, 7
  %v860 = vsel %vm112, %v859, %v810
  %v861 = vrot.slane %v822, 6
  %v862 = vsel %vm115, %v861, %v860
  %v863 = vrot.slane %v828, 5
  %v864 = vsel %vm118, %v863, %v862
  %v865 = vpack.c.b16 %v834, %v834
  %v866 = vpack.c.b16 %v840, %v840
  %v867 = vpack.c.b16 %v846, %v846
  %v868 = vpack.c.b16 %v852, %v852
  %v869 = vpack.c.b16 %v858, %v858
  %v870 = vpack.c.b16 %v864, %v864
  %871 = vrot.lane.b32.xlu0 %v865, 110
  %v872 = vpop.permute.xlu0 %871
  %873 = vrot.lane.b32.xlu0 %v866, 110
  %v874 = vpop.permute.xlu0 %873
  %875 = vrot.lane.b32.xlu0 %v867, 110
  %v876 = vpop.permute.xlu0 %875
  %877 = vrot.lane.b32.xlu0 %v868, 110
  %v878 = vpop.permute.xlu0 %877
  %879 = vrot.lane.b32.xlu0 %v869, 110
  %v880 = vpop.permute.xlu0 %879
  %881 = vrot.lane.b32.xlu0 %v870, 110
  %v882 = vpop.permute.xlu0 %881
  %vm883 = vcmask 900096
  %v884 = vsel %vm883, %v872, %v874
  %v885 = vsel %vm883, %v874, %v876
  %v886 = vsel %vm883, %v876, %v878
  %v887 = vsel %vm883, %v878, %v880
  %v888 = vsel %vm883, %v880, %v882
  %v890 = vsel %vm174, %v748, 0
  %v893 = vsel %vm178, %v884, 0
  %v896 = vsel %vm178, %v885, 0
  %v899 = vsel %vm178, %v886, 0
  %v902 = vsel %vm178, %v887, 0
  %v905 = vsel %vm178, %v888, 0
  %v908 = vsel %vm178, %v882, 0
  %910 = vmatpush.bf16.msra.mxu0 0
  %911 = vmatpush.bf16.msra.mxu0 0
  %912 = vmatpush.bf16.msra.mxu0 0
  %913 = vmatpush.bf16.msra.mxu0 0
  %914 = vmatpush.bf16.msra.mxu0 0
  %915 = vmatpush.bf16.msra.mxu0 0
  %916 = vmatpush.bf16.msra.mxu0 0
  %917 = vmatpush.bf16.msra.mxu0 %v893
  %918 = vmatmul.bf16.gmra.mxu0 %v890
  %v919 = vpop.f32.mrf.mxu0
  %v920 = vadd.f32 0.0, %v919
  %v921 = vpop.f32.mrf.mxu0
  %922 = vdwg.mxu0
  %923 = vmatpush.bf16.msra.mxu0 0
  %924 = vmatpush.bf16.msra.mxu0 0
  %925 = vmatpush.bf16.msra.mxu0 0
  %926 = vmatpush.bf16.msra.mxu0 0
  %927 = vmatpush.bf16.msra.mxu0 0
  %928 = vmatpush.bf16.msra.mxu0 0
  %929 = vmatpush.bf16.msra.mxu0 0
  %930 = vmatpush.bf16.msra.mxu0 %v896
  %931 = vmatmul.bf16.gmra.mxu0 %v890
  %v932 = vpop.f32.mrf.mxu0
  %v933 = vadd.f32 0.0, %v932
  %v934 = vpop.f32.mrf.mxu0
  %935 = vdwg.mxu0
  %936 = vmatpush.bf16.msra.mxu0 0
  %937 = vmatpush.bf16.msra.mxu0 0
  %938 = vmatpush.bf16.msra.mxu0 0
  %939 = vmatpush.bf16.msra.mxu0 0
  %940 = vmatpush.bf16.msra.mxu0 0
  %941 = vmatpush.bf16.msra.mxu0 0
  %942 = vmatpush.bf16.msra.mxu0 0
  %943 = vmatpush.bf16.msra.mxu0 %v899
  %944 = vmatmul.bf16.gmra.mxu0 %v890
  %v945 = vpop.f32.mrf.mxu0
  %v946 = vadd.f32 0.0, %v945
  %v947 = vpop.f32.mrf.mxu0
  %948 = vdwg.mxu0
  %949 = vmatpush.bf16.msra.mxu0 0
  %950 = vmatpush.bf16.msra.mxu0 0
  %951 = vmatpush.bf16.msra.mxu0 0
  %952 = vmatpush.bf16.msra.mxu0 0
  %953 = vmatpush.bf16.msra.mxu0 0
  %954 = vmatpush.bf16.msra.mxu0 0
  %955 = vmatpush.bf16.msra.mxu0 0
  %956 = vmatpush.bf16.msra.mxu0 %v902
  %957 = vmatmul.bf16.gmra.mxu0 %v890
  %v958 = vpop.f32.mrf.mxu0
  %v959 = vadd.f32 0.0, %v958
  %v960 = vpop.f32.mrf.mxu0
  %961 = vdwg.mxu0
  %962 = vmatpush.bf16.msra.mxu0 0
  %963 = vmatpush.bf16.msra.mxu0 0
  %964 = vmatpush.bf16.msra.mxu0 0
  %965 = vmatpush.bf16.msra.mxu0 0
  %966 = vmatpush.bf16.msra.mxu0 0
  %967 = vmatpush.bf16.msra.mxu0 0
  %968 = vmatpush.bf16.msra.mxu0 0
  %969 = vmatpush.bf16.msra.mxu0 %v905
  %970 = vmatmul.bf16.gmra.mxu0 %v890
  %v971 = vpop.f32.mrf.mxu0
  %v972 = vadd.f32 0.0, %v971
  %v973 = vpop.f32.mrf.mxu0
  %974 = vdwg.mxu0
  %975 = vmatpush.bf16.msra.mxu0 0
  %976 = vmatpush.bf16.msra.mxu0 0
  %977 = vmatpush.bf16.msra.mxu0 0
  %978 = vmatpush.bf16.msra.mxu0 0
  %979 = vmatpush.bf16.msra.mxu0 0
  %980 = vmatpush.bf16.msra.mxu0 0
  %981 = vmatpush.bf16.msra.mxu0 0
  %982 = vmatpush.bf16.msra.mxu0 %v908
  %983 = vmatmul.bf16.gmra.mxu0 %v890
  %v984 = vpop.f32.mrf.mxu0
  %v985 = vadd.f32 0.0, %v984
  %v986 = vpop.f32.mrf.mxu0
  %987 = vdwg.mxu0
  %v988 = vadd.f32 %v737, %v920
  %v989 = vadd.f32 %v738, %v933
  %v990 = vadd.f32 %v739, %v946
  %v991 = vadd.f32 %v740, %v959
  %v992 = vadd.f32 %v741, %v972
  %v993 = vadd.f32 %v742, %v985
  %v994 = vld [vmem:[%s0] sm:$0x3f]
  %v995 = vld [vmem:[%s0 + $0x6] sm:$0x3f]
  %v996 = vld [vmem:[%s0 + $0xc] sm:$0x3f]
  %v997 = vld [vmem:[%s0 + $0x12] sm:$0x3f]
  %s998 = scalar_lea.vmem %s2, 8
  %v999 = vld [vmem:[%s998] sm:$0x3]
  %1001 = vst [vmem:[#allocation1] ss:$9 sm:$0xff] %v994
  %v1002 = vld [vmem:[#allocation1] sm:$0xff]
  %v1004 = vld [vmem:[#allocation1 + $0x9] sm:$0xff]
  %v1006 = vld [vmem:[#allocation1 + $0x12] sm:$0xff]
  %v1008 = vld [vmem:[#allocation1 + $0x1b] sm:$0xff]
  %v1010 = vld [vmem:[#allocation1 + $0x24] sm:$0xff]
  %v1012 = vld [vmem:[#allocation1 + $0x2d] sm:$0xff]
  %1015 = vst [vmem:[#allocation1] ss:$9 sm:$0xff] %v995
  %v1016 = vld [vmem:[#allocation1] sm:$0xff]
  %v1018 = vld [vmem:[#allocation1 + $0x9] sm:$0xff]
  %v1020 = vld [vmem:[#allocation1 + $0x12] sm:$0xff]
  %v1022 = vld [vmem:[#allocation1 + $0x1b] sm:$0xff]
  %v1024 = vld [vmem:[#allocation1 + $0x24] sm:$0xff]
  %v1026 = vld [vmem:[#allocation1 + $0x2d] sm:$0xff]
  %1029 = vst [vmem:[#allocation1] ss:$9 sm:$0xff] %v996
  %v1030 = vld [vmem:[#allocation1] sm:$0xff]
  %v1032 = vld [vmem:[#allocation1 + $0x9] sm:$0xff]
  %v1034 = vld [vmem:[#allocation1 + $0x12] sm:$0xff]
  %v1036 = vld [vmem:[#allocation1 + $0x1b] sm:$0xff]
  %v1038 = vld [vmem:[#allocation1 + $0x24] sm:$0xff]
  %v1040 = vld [vmem:[#allocation1 + $0x2d] sm:$0xff]
  %1043 = vst [vmem:[#allocation1] ss:$9 sm:$0xff] %v997
  %v1044 = vld [vmem:[#allocation1] sm:$0xff]
  %v1046 = vld [vmem:[#allocation1 + $0x9] sm:$0xff]
  %v1048 = vld [vmem:[#allocation1 + $0x12] sm:$0xff]
  %v1050 = vld [vmem:[#allocation1 + $0x1b] sm:$0xff]
  %v1052 = vld [vmem:[#allocation1 + $0x24] sm:$0xff]
  %v1054 = vld [vmem:[#allocation1 + $0x2d] sm:$0xff]
  %v1056 = vunpack.c.l.b16 %v1002
  %v1057 = vunpack.c.l.b16 %v1004
  %v1058 = vunpack.c.l.b16 %v1006
  %v1059 = vunpack.c.l.b16 %v1008
  %v1060 = vunpack.c.l.b16 %v1010
  %v1061 = vunpack.c.l.b16 %v1012
  %v1062 = vunpack.c.l.b16 %v1016
  %v1063 = vunpack.c.l.b16 %v1018
  %v1064 = vunpack.c.l.b16 %v1020
  %v1065 = vunpack.c.l.b16 %v1022
  %v1066 = vunpack.c.l.b16 %v1024
  %v1067 = vunpack.c.l.b16 %v1026
  %v1068 = vunpack.c.l.b16 %v1030
  %v1069 = vunpack.c.l.b16 %v1032
  %v1070 = vunpack.c.l.b16 %v1034
  %v1071 = vunpack.c.l.b16 %v1036
  %v1072 = vunpack.c.l.b16 %v1038
  %v1073 = vunpack.c.l.b16 %v1040
  %v1074 = vunpack.c.l.b16 %v1044
  %v1075 = vunpack.c.l.b16 %v1046
  %v1076 = vunpack.c.l.b16 %v1048
  %v1077 = vunpack.c.l.b16 %v1050
  %v1078 = vunpack.c.l.b16 %v1052
  %v1079 = vunpack.c.l.b16 %v1054
  %v1080 = vrot.slane %v1062, 7
  %v1081 = vsel %vm112, %v1080, %v1056
  %v1082 = vrot.slane %v1068, 6
  %v1083 = vsel %vm115, %v1082, %v1081
  %v1084 = vrot.slane %v1074, 5
  %v1085 = vsel %vm118, %v1084, %v1083
  %v1086 = vrot.slane %v1063, 7
  %v1087 = vsel %vm112, %v1086, %v1057
  %v1088 = vrot.slane %v1069, 6
  %v1089 = vsel %vm115, %v1088, %v1087
  %v1090 = vrot.slane %v1075, 5
  %v1091 = vsel %vm118, %v1090, %v1089
  %v1092 = vrot.slane %v1064, 7
  %v1093 = vsel %vm112, %v1092, %v1058
  %v1094 = vrot.slane %v1070, 6
  %v1095 = vsel %vm115, %v1094, %v1093
  %v1096 = vrot.slane %v1076, 5
  %v1097 = vsel %vm118, %v1096, %v1095
  %v1098 = vrot.slane %v1065, 7
  %v1099 = vsel %vm112, %v1098, %v1059
  %v1100 = vrot.slane %v1071, 6
  %v1101 = vsel %vm115, %v1100, %v1099
  %v1102 = vrot.slane %v1077, 5
  %v1103 = vsel %vm118, %v1102, %v1101
  %v1104 = vrot.slane %v1066, 7
  %v1105 = vsel %vm112, %v1104, %v1060
  %v1106 = vrot.slane %v1072, 6
  %v1107 = vsel %vm115, %v1106, %v1105
  %v1108 = vrot.slane %v1078, 5
  %v1109 = vsel %vm118, %v1108, %v1107
  %v1110 = vrot.slane %v1067, 7
  %v1111 = vsel %vm112, %v1110, %v1061
  %v1112 = vrot.slane %v1073, 6
  %v1113 = vsel %vm115, %v1112, %v1111
  %v1114 = vrot.slane %v1079, 5
  %v1115 = vsel %vm118, %v1114, %v1113
  %v1116 = vpack.c.b16 %v1085, %v1085
  %v1117 = vpack.c.b16 %v1091, %v1091
  %v1118 = vpack.c.b16 %v1097, %v1097
  %v1119 = vpack.c.b16 %v1103, %v1103
  %v1120 = vpack.c.b16 %v1109, %v1109
  %v1121 = vpack.c.b16 %v1115, %v1115
  %1122 = vrot.lane.b32.xlu0 %v1116, 109
  %v1123 = vpop.permute.xlu0 %1122
  %1124 = vrot.lane.b32.xlu0 %v1117, 109
  %v1125 = vpop.permute.xlu0 %1124
  %1126 = vrot.lane.b32.xlu0 %v1118, 109
  %v1127 = vpop.permute.xlu0 %1126
  %1128 = vrot.lane.b32.xlu0 %v1119, 109
  %v1129 = vpop.permute.xlu0 %1128
  %1130 = vrot.lane.b32.xlu0 %v1120, 109
  %v1131 = vpop.permute.xlu0 %1130
  %1132 = vrot.lane.b32.xlu0 %v1121, 109
  %v1133 = vpop.permute.xlu0 %1132
  %vm1134 = vcmask 891904
  %v1135 = vsel %vm1134, %v1123, %v1125
  %v1136 = vsel %vm1134, %v1125, %v1127
  %v1137 = vsel %vm1134, %v1127, %v1129
  %v1138 = vsel %vm1134, %v1129, %v1131
  %v1139 = vsel %vm1134, %v1131, %v1133
  %v1141 = vsel %vm174, %v999, 0
  %v1144 = vsel %vm178, %v1135, 0
  %v1147 = vsel %vm178, %v1136, 0
  %v1150 = vsel %vm178, %v1137, 0
  %v1153 = vsel %vm178, %v1138, 0
  %v1156 = vsel %vm178, %v1139, 0
  %v1159 = vsel %vm178, %v1133, 0
  %1161 = vmatpush.bf16.msra.mxu0 0
  %1162 = vmatpush.bf16.msra.mxu0 0
  %1163 = vmatpush.bf16.msra.mxu0 0
  %1164 = vmatpush.bf16.msra.mxu0 0
  %1165 = vmatpush.bf16.msra.mxu0 0
  %1166 = vmatpush.bf16.msra.mxu0 0
  %1167 = vmatpush.bf16.msra.mxu0 0
  %1168 = vmatpush.bf16.msra.mxu0 %v1144
  %1169 = vmatmul.bf16.gmra.mxu0 %v1141
  %v1170 = vpop.f32.mrf.mxu0
  %v1171 = vadd.f32 0.0, %v1170
  %v1172 = vpop.f32.mrf.mxu0
  %1173 = vdwg.mxu0
  %1174 = vmatpush.bf16.msra.mxu0 0
  %1175 = vmatpush.bf16.msra.mxu0 0
  %1176 = vmatpush.bf16.msra.mxu0 0
  %1177 = vmatpush.bf16.msra.mxu0 0
  %1178 = vmatpush.bf16.msra.mxu0 0
  %1179 = vmatpush.bf16.msra.mxu0 0
  %1180 = vmatpush.bf16.msra.mxu0 0
  %1181 = vmatpush.bf16.msra.mxu0 %v1147
  %1182 = vmatmul.bf16.gmra.mxu0 %v1141
  %v1183 = vpop.f32.mrf.mxu0
  %v1184 = vadd.f32 0.0, %v1183
  %v1185 = vpop.f32.mrf.mxu0
  %1186 = vdwg.mxu0
  %1187 = vmatpush.bf16.msra.mxu0 0
  %1188 = vmatpush.bf16.msra.mxu0 0
  %1189 = vmatpush.bf16.msra.mxu0 0
  %1190 = vmatpush.bf16.msra.mxu0 0
  %1191 = vmatpush.bf16.msra.mxu0 0
  %1192 = vmatpush.bf16.msra.mxu0 0
  %1193 = vmatpush.bf16.msra.mxu0 0
  %1194 = vmatpush.bf16.msra.mxu0 %v1150
  %1195 = vmatmul.bf16.gmra.mxu0 %v1141
  %v1196 = vpop.f32.mrf.mxu0
  %v1197 = vadd.f32 0.0, %v1196
  %v1198 = vpop.f32.mrf.mxu0
  %1199 = vdwg.mxu0
  %1200 = vmatpush.bf16.msra.mxu0 0
  %1201 = vmatpush.bf16.msra.mxu0 0
  %1202 = vmatpush.bf16.msra.mxu0 0
  %1203 = vmatpush.bf16.msra.mxu0 0
  %1204 = vmatpush.bf16.msra.mxu0 0
  %1205 = vmatpush.bf16.msra.mxu0 0
  %1206 = vmatpush.bf16.msra.mxu0 0
  %1207 = vmatpush.bf16.msra.mxu0 %v1153
  %1208 = vmatmul.bf16.gmra.mxu0 %v1141
  %v1209 = vpop.f32.mrf.mxu0
  %v1210 = vadd.f32 0.0, %v1209
  %v1211 = vpop.f32.mrf.mxu0
  %1212 = vdwg.mxu0
  %1213 = vmatpush.bf16.msra.mxu0 0
  %1214 = vmatpush.bf16.msra.mxu0 0
  %1215 = vmatpush.bf16.msra.mxu0 0
  %1216 = vmatpush.bf16.msra.mxu0 0
  %1217 = vmatpush.bf16.msra.mxu0 0
  %1218 = vmatpush.bf16.msra.mxu0 0
  %1219 = vmatpush.bf16.msra.mxu0 0
  %1220 = vmatpush.bf16.msra.mxu0 %v1156
  %1221 = vmatmul.bf16.gmra.mxu0 %v1141
  %v1222 = vpop.f32.mrf.mxu0
  %v1223 = vadd.f32 0.0, %v1222
  %v1224 = vpop.f32.mrf.mxu0
  %1225 = vdwg.mxu0
  %1226 = vmatpush.bf16.msra.mxu0 0
  %1227 = vmatpush.bf16.msra.mxu0 0
  %1228 = vmatpush.bf16.msra.mxu0 0
  %1229 = vmatpush.bf16.msra.mxu0 0
  %1230 = vmatpush.bf16.msra.mxu0 0
  %1231 = vmatpush.bf16.msra.mxu0 0
  %1232 = vmatpush.bf16.msra.mxu0 0
  %1233 = vmatpush.bf16.msra.mxu0 %v1159
  %1234 = vmatmul.bf16.gmra.mxu0 %v1141
  %v1235 = vpop.f32.mrf.mxu0
  %v1236 = vadd.f32 0.0, %v1235
  %v1237 = vpop.f32.mrf.mxu0
  %1238 = vdwg.mxu0
  %v1239 = vadd.f32 %v988, %v1171
  %v1240 = vadd.f32 %v989, %v1184
  %v1241 = vadd.f32 %v990, %v1197
  %v1242 = vadd.f32 %v991, %v1210
  %v1243 = vadd.f32 %v992, %v1223
  %v1244 = vadd.f32 %v993, %v1236
  %v1245 = vld [vmem:[%s0] sm:$0x3f]
  %v1246 = vld [vmem:[%s0 + $0x6] sm:$0x3f]
  %v1247 = vld [vmem:[%s0 + $0xc] sm:$0x3f]
  %v1248 = vld [vmem:[%s0 + $0x12] sm:$0x3f]
  %s1249 = scalar_lea.vmem %s2, 10
  %v1250 = vld [vmem:[%s1249] sm:$0x3]
  %1252 = vst [vmem:[#allocation1] ss:$9 sm:$0xff] %v1245
  %v1253 = vld [vmem:[#allocation1] sm:$0xff]
  %v1255 = vld [vmem:[#allocation1 + $0x9] sm:$0xff]
  %v1257 = vld [vmem:[#allocation1 + $0x12] sm:$0xff]
  %v1259 = vld [vmem:[#allocation1 + $0x1b] sm:$0xff]
  %v1261 = vld [vmem:[#allocation1 + $0x24] sm:$0xff]
  %v1263 = vld [vmem:[#allocation1 + $0x2d] sm:$0xff]
  %1266 = vst [vmem:[#allocation1] ss:$9 sm:$0xff] %v1246
  %v1267 = vld [vmem:[#allocation1] sm:$0xff]
  %v1269 = vld [vmem:[#allocation1 + $0x9] sm:$0xff]
  %v1271 = vld [vmem:[#allocation1 + $0x12] sm:$0xff]
  %v1273 = vld [vmem:[#allocation1 + $0x1b] sm:$0xff]
  %v1275 = vld [vmem:[#allocation1 + $0x24] sm:$0xff]
  %v1277 = vld [vmem:[#allocation1 + $0x2d] sm:$0xff]
  %1280 = vst [vmem:[#allocation1] ss:$9 sm:$0xff] %v1247
  %v1281 = vld [vmem:[#allocation1] sm:$0xff]
  %v1283 = vld [vmem:[#allocation1 + $0x9] sm:$0xff]
  %v1285 = vld [vmem:[#allocation1 + $0x12] sm:$0xff]
  %v1287 = vld [vmem:[#allocation1 + $0x1b] sm:$0xff]
  %v1289 = vld [vmem:[#allocation1 + $0x24] sm:$0xff]
  %v1291 = vld [vmem:[#allocation1 + $0x2d] sm:$0xff]
  %1294 = vst [vmem:[#allocation1] ss:$9 sm:$0xff] %v1248
  %v1295 = vld [vmem:[#allocation1] sm:$0xff]
  %v1297 = vld [vmem:[#allocation1 + $0x9] sm:$0xff]
  %v1299 = vld [vmem:[#allocation1 + $0x12] sm:$0xff]
  %v1301 = vld [vmem:[#allocation1 + $0x1b] sm:$0xff]
  %v1303 = vld [vmem:[#allocation1 + $0x24] sm:$0xff]
  %v1305 = vld [vmem:[#allocation1 + $0x2d] sm:$0xff]
  %v1307 = vunpack.c.l.b16 %v1253
  %v1308 = vunpack.c.l.b16 %v1255
  %v1309 = vunpack.c.l.b16 %v1257
  %v1310 = vunpack.c.l.b16 %v1259
  %v1311 = vunpack.c.l.b16 %v1261
  %v1312 = vunpack.c.l.b16 %v1263
  %v1313 = vunpack.c.l.b16 %v1267
  %v1314 = vunpack.c.l.b16 %v1269
  %v1315 = vunpack.c.l.b16 %v1271
  %v1316 = vunpack.c.l.b16 %v1273
  %v1317 = vunpack.c.l.b16 %v1275
  %v1318 = vunpack.c.l.b16 %v1277
  %v1319 = vunpack.c.l.b16 %v1281
  %v1320 = vunpack.c.l.b16 %v1283
  %v1321 = vunpack.c.l.b16 %v1285
  %v1322 = vunpack.c.l.b16 %v1287
  %v1323 = vunpack.c.l.b16 %v1289
  %v1324 = vunpack.c.l.b16 %v1291
  %v1325 = vunpack.c.l.b16 %v1295
  %v1326 = vunpack.c.l.b16 %v1297
  %v1327 = vunpack.c.l.b16 %v1299
  %v1328 = vunpack.c.l.b16 %v1301
  %v1329 = vunpack.c.l.b16 %v1303
  %v1330 = vunpack.c.l.b16 %v1305
  %v1331 = vrot.slane %v1313, 7
  %v1332 = vsel %vm112, %v1331, %v1307
  %v1333 = vrot.slane %v1319, 6
  %v1334 = vsel %vm115, %v1333, %v1332
  %v1335 = vrot.slane %v1325, 5
  %v1336 = vsel %vm118, %v1335, %v1334
  %v1337 = vrot.slane %v1314, 7
  %v1338 = vsel %vm112, %v1337, %v1308
  %v1339 = vrot.slane %v1320, 6
  %v1340 = vsel %vm115, %v1339, %v1338
  %v1341 = vrot.slane %v1326, 5
  %v1342 = vsel %vm118, %v1341, %v1340
  %v1343 = vrot.slane %v1315, 7
  %v1344 = vsel %vm112, %v1343, %v1309
  %v1345 = vrot.slane %v1321, 6
  %v1346 = vsel %vm115, %v1345, %v1344
  %v1347 = vrot.slane %v1327, 5
  %v1348 = vsel %vm118, %v1347, %v1346
  %v1349 = vrot.slane %v1316, 7
  %v1350 = vsel %vm112, %v1349, %v1310
  %v1351 = vrot.slane %v1322, 6
  %v1352 = vsel %vm115, %v1351, %v1350
  %v1353 = vrot.slane %v1328, 5
  %v1354 = vsel %vm118, %v1353, %v1352
  %v1355 = vrot.slane %v1317, 7
  %v1356 = vsel %vm112, %v1355, %v1311
  %v1357 = vrot.slane %v1323, 6
  %v1358 = vsel %vm115, %v1357, %v1356
  %v1359 = vrot.slane %v1329, 5
  %v1360 = vsel %vm118, %v1359, %v1358
  %v1361 = vrot.slane %v1318, 7
  %v1362 = vsel %vm112, %v1361, %v1312
  %v1363 = vrot.slane %v1324, 6
  %v1364 = vsel %vm115, %v1363, %v1362
  %v1365 = vrot.slane %v1330, 5
  %v1366 = vsel %vm118, %v1365, %v1364
  %v1367 = vpack.c.b16 %v1336, %v1336
  %v1368 = vpack.c.b16 %v1342, %v1342
  %v1369 = vpack.c.b16 %v1348, %v1348
  %v1370 = vpack.c.b16 %v1354, %v1354
  %v1371 = vpack.c.b16 %v1360, %v1360
  %v1372 = vpack.c.b16 %v1366, %v1366
  %1373 = vrot.lane.b32.xlu0 %v1367, 108
  %v1374 = vpop.permute.xlu0 %1373
  %1375 = vrot.lane.b32.xlu0 %v1368, 108
  %v1376 = vpop.permute.xlu0 %1375
  %1377 = vrot.lane.b32.xlu0 %v1369, 108
  %v1378 = vpop.permute.xlu0 %1377
  %1379 = vrot.lane.b32.xlu0 %v1370, 108
  %v1380 = vpop.permute.xlu0 %1379
  %1381 = vrot.lane.b32.xlu0 %v1371, 108
  %v1382 = vpop.permute.xlu0 %1381
  %1383 = vrot.lane.b32.xlu0 %v1372, 108
  %v1384 = vpop.permute.xlu0 %1383
  %vm1385 = vcmask 883712
  %v1386 = vsel %vm1385, %v1374, %v1376
  %v1387 = vsel %vm1385, %v1376, %v1378
  %v1388 = vsel %vm1385, %v1378, %v1380
  %v1389 = vsel %vm1385, %v1380, %v1382
  %v1390 = vsel %vm1385, %v1382, %v1384
  %v1392 = vsel %vm174, %v1250, 0
  %v1395 = vsel %vm178, %v1386, 0
  %v1398 = vsel %vm178, %v1387, 0
  %v1401 = vsel %vm178, %v1388, 0
  %v1404 = vsel %vm178, %v1389, 0
  %v1407 = vsel %vm178, %v1390, 0
  %v1410 = vsel %vm178, %v1384, 0
  %1412 = vmatpush.bf16.msra.mxu0 0
  %1413 = vmatpush.bf16.msra.mxu0 0
  %1414 = vmatpush.bf16.msra.mxu0 0
  %1415 = vmatpush.bf16.msra.mxu0 0
  %1416 = vmatpush.bf16.msra.mxu0 0
  %1417 = vmatpush.bf16.msra.mxu0 0
  %1418 = vmatpush.bf16.msra.mxu0 0
  %1419 = vmatpush.bf16.msra.mxu0 %v1395
  %1420 = vmatmul.bf16.gmra.mxu0 %v1392
  %v1421 = vpop.f32.mrf.mxu0
  %v1422 = vadd.f32 0.0, %v1421
  %v1423 = vpop.f32.mrf.mxu0
  %1424 = vdwg.mxu0
  %1425 = vmatpush.bf16.msra.mxu0 0
  %1426 = vmatpush.bf16.msra.mxu0 0
  %1427 = vmatpush.bf16.msra.mxu0 0
  %1428 = vmatpush.bf16.msra.mxu0 0
  %1429 = vmatpush.bf16.msra.mxu0 0
  %1430 = vmatpush.bf16.msra.mxu0 0
  %1431 = vmatpush.bf16.msra.mxu0 0
  %1432 = vmatpush.bf16.msra.mxu0 %v1398
  %1433 = vmatmul.bf16.gmra.mxu0 %v1392
  %v1434 = vpop.f32.mrf.mxu0
  %v1435 = vadd.f32 0.0, %v1434
  %v1436 = vpop.f32.mrf.mxu0
  %1437 = vdwg.mxu0
  %1438 = vmatpush.bf16.msra.mxu0 0
  %1439 = vmatpush.bf16.msra.mxu0 0
  %1440 = vmatpush.bf16.msra.mxu0 0
  %1441 = vmatpush.bf16.msra.mxu0 0
  %1442 = vmatpush.bf16.msra.mxu0 0
  %1443 = vmatpush.bf16.msra.mxu0 0
  %1444 = vmatpush.bf16.msra.mxu0 0
  %1445 = vmatpush.bf16.msra.mxu0 %v1401
  %1446 = vmatmul.bf16.gmra.mxu0 %v1392
  %v1447 = vpop.f32.mrf.mxu0
  %v1448 = vadd.f32 0.0, %v1447
  %v1449 = vpop.f32.mrf.mxu0
  %1450 = vdwg.mxu0
  %1451 = vmatpush.bf16.msra.mxu0 0
  %1452 = vmatpush.bf16.msra.mxu0 0
  %1453 = vmatpush.bf16.msra.mxu0 0
  %1454 = vmatpush.bf16.msra.mxu0 0
  %1455 = vmatpush.bf16.msra.mxu0 0
  %1456 = vmatpush.bf16.msra.mxu0 0
  %1457 = vmatpush.bf16.msra.mxu0 0
  %1458 = vmatpush.bf16.msra.mxu0 %v1404
  %1459 = vmatmul.bf16.gmra.mxu0 %v1392
  %v1460 = vpop.f32.mrf.mxu0
  %v1461 = vadd.f32 0.0, %v1460
  %v1462 = vpop.f32.mrf.mxu0
  %1463 = vdwg.mxu0
  %1464 = vmatpush.bf16.msra.mxu0 0
  %1465 = vmatpush.bf16.msra.mxu0 0
  %1466 = vmatpush.bf16.msra.mxu0 0
  %1467 = vmatpush.bf16.msra.mxu0 0
  %1468 = vmatpush.bf16.msra.mxu0 0
  %1469 = vmatpush.bf16.msra.mxu0 0
  %1470 = vmatpush.bf16.msra.mxu0 0
  %1471 = vmatpush.bf16.msra.mxu0 %v1407
  %1472 = vmatmul.bf16.gmra.mxu0 %v1392
  %v1473 = vpop.f32.mrf.mxu0
  %v1474 = vadd.f32 0.0, %v1473
  %v1475 = vpop.f32.mrf.mxu0
  %1476 = vdwg.mxu0
  %1477 = vmatpush.bf16.msra.mxu0 0
  %1478 = vmatpush.bf16.msra.mxu0 0
  %1479 = vmatpush.bf16.msra.mxu0 0
  %1480 = vmatpush.bf16.msra.mxu0 0
  %1481 = vmatpush.bf16.msra.mxu0 0
  %1482 = vmatpush.bf16.msra.mxu0 0
  %1483 = vmatpush.bf16.msra.mxu0 0
  %1484 = vmatpush.bf16.msra.mxu0 %v1410
  %1485 = vmatmul.bf16.gmra.mxu0 %v1392
  %v1486 = vpop.f32.mrf.mxu0
  %v1487 = vadd.f32 0.0, %v1486
  %v1488 = vpop.f32.mrf.mxu0
  %1489 = vdwg.mxu0
  %v1490 = vadd.f32 %v1239, %v1422
  %v1491 = vadd.f32 %v1240, %v1435
  %v1492 = vadd.f32 %v1241, %v1448
  %v1493 = vadd.f32 %v1242, %v1461
  %v1494 = vadd.f32 %v1243, %v1474
  %v1495 = vadd.f32 %v1244, %v1487
  %v1496 = vld [vmem:[%s0] sm:$0x3f]
  %v1497 = vld [vmem:[%s0 + $0x6] sm:$0x3f]
  %v1498 = vld [vmem:[%s0 + $0xc] sm:$0x3f]
  %v1499 = vld [vmem:[%s0 + $0x12] sm:$0x3f]
  %s1500 = scalar_lea.vmem %s2, 12
  %v1501 = vld [vmem:[%s1500] sm:$0x3]
  %1503 = vst [vmem:[#allocation1] ss:$9 sm:$0xff] %v1496
  %v1504 = vld [vmem:[#allocation1] sm:$0xff]
  %v1506 = vld [vmem:[#allocation1 + $0x9] sm:$0xff]
  %v1508 = vld [vmem:[#allocation1 + $0x12] sm:$0xff]
  %v1510 = vld [vmem:[#allocation1 + $0x1b] sm:$0xff]
  %v1512 = vld [vmem:[#allocation1 + $0x24] sm:$0xff]
  %v1514 = vld [vmem:[#allocation1 + $0x2d] sm:$0xff]
  %1517 = vst [vmem:[#allocation1] ss:$9 sm:$0xff] %v1497
  %v1518 = vld [vmem:[#allocation1] sm:$0xff]
  %v1520 = vld [vmem:[#allocation1 + $0x9] sm:$0xff]
  %v1522 = vld [vmem:[#allocation1 + $0x12] sm:$0xff]
  %v1524 = vld [vmem:[#allocation1 + $0x1b] sm:$0xff]
  %v1526 = vld [vmem:[#allocation1 + $0x24] sm:$0xff]
  %v1528 = vld [vmem:[#allocation1 + $0x2d] sm:$0xff]
  %1531 = vst [vmem:[#allocation1] ss:$9 sm:$0xff] %v1498
  %v1532 = vld [vmem:[#allocation1] sm:$0xff]
  %v1534 = vld [vmem:[#allocation1 + $0x9] sm:$0xff]
  %v1536 = vld [vmem:[#allocation1 + $0x12] sm:$0xff]
  %v1538 = vld [vmem:[#allocation1 + $0x1b] sm:$0xff]
  %v1540 = vld [vmem:[#allocation1 + $0x24] sm:$0xff]
  %v1542 = vld [vmem:[#allocation1 + $0x2d] sm:$0xff]
  %1545 = vst [vmem:[#allocation1] ss:$9 sm:$0xff] %v1499
  %v1546 = vld [vmem:[#allocation1] sm:$0xff]
  %v1548 = vld [vmem:[#allocation1 + $0x9] sm:$0xff]
  %v1550 = vld [vmem:[#allocation1 + $0x12] sm:$0xff]
  %v1552 = vld [vmem:[#allocation1 + $0x1b] sm:$0xff]
  %v1554 = vld [vmem:[#allocation1 + $0x24] sm:$0xff]
  %v1556 = vld [vmem:[#allocation1 + $0x2d] sm:$0xff]
  %v1558 = vunpack.c.l.b16 %v1504
  %v1559 = vunpack.c.l.b16 %v1506
  %v1560 = vunpack.c.l.b16 %v1508
  %v1561 = vunpack.c.l.b16 %v1510
  %v1562 = vunpack.c.l.b16 %v1512
  %v1563 = vunpack.c.l.b16 %v1514
  %v1564 = vunpack.c.l.b16 %v1518
  %v1565 = vunpack.c.l.b16 %v1520
  %v1566 = vunpack.c.l.b16 %v1522
  %v1567 = vunpack.c.l.b16 %v1524
  %v1568 = vunpack.c.l.b16 %v1526
  %v1569 = vunpack.c.l.b16 %v1528
  %v1570 = vunpack.c.l.b16 %v1532
  %v1571 = vunpack.c.l.b16 %v1534
  %v1572 = vunpack.c.l.b16 %v1536
  %v1573 = vunpack.c.l.b16 %v1538
  %v1574 = vunpack.c.l.b16 %v1540
  %v1575 = vunpack.c.l.b16 %v1542
  %v1576 = vunpack.c.l.b16 %v1546
  %v1577 = vunpack.c.l.b16 %v1548
  %v1578 = vunpack.c.l.b16 %v1550
  %v1579 = vunpack.c.l.b16 %v1552
  %v1580 = vunpack.c.l.b16 %v1554
  %v1581 = vunpack.c.l.b16 %v1556
  %v1582 = vrot.slane %v1564, 7
  %v1583 = vsel %vm112, %v1582, %v1558
  %v1584 = vrot.slane %v1570, 6
  %v1585 = vsel %vm115, %v1584, %v1583
  %v1586 = vrot.slane %v1576, 5
  %v1587 = vsel %vm118, %v1586, %v1585
  %v1588 = vrot.slane %v1565, 7
  %v1589 = vsel %vm112, %v1588, %v1559
  %v1590 = vrot.slane %v1571, 6
  %v1591 = vsel %vm115, %v1590, %v1589
  %v1592 = vrot.slane %v1577, 5
  %v1593 = vsel %vm118, %v1592, %v1591
  %v1594 = vrot.slane %v1566, 7
  %v1595 = vsel %vm112, %v1594, %v1560
  %v1596 = vrot.slane %v1572, 6
  %v1597 = vsel %vm115, %v1596, %v1595
  %v1598 = vrot.slane %v1578, 5
  %v1599 = vsel %vm118, %v1598, %v1597
  %v1600 = vrot.slane %v1567, 7
  %v1601 = vsel %vm112, %v1600, %v1561
  %v1602 = vrot.slane %v1573, 6
  %v1603 = vsel %vm115, %v1602, %v1601
  %v1604 = vrot.slane %v1579, 5
  %v1605 = vsel %vm118, %v1604, %v1603
  %v1606 = vrot.slane %v1568, 7
  %v1607 = vsel %vm112, %v1606, %v1562
  %v1608 = vrot.slane %v1574, 6
  %v1609 = vsel %vm115, %v1608, %v1607
  %v1610 = vrot.slane %v1580, 5
  %v1611 = vsel %vm118, %v1610, %v1609
  %v1612 = vrot.slane %v1569, 7
  %v1613 = vsel %vm112, %v1612, %v1563
  %v1614 = vrot.slane %v1575, 6
  %v1615 = vsel %vm115, %v1614, %v1613
  %v1616 = vrot.slane %v1581, 5
  %v1617 = vsel %vm118, %v1616, %v1615
  %v1618 = vpack.c.b16 %v1587, %v1587
  %v1619 = vpack.c.b16 %v1593, %v1593
  %v1620 = vpack.c.b16 %v1599, %v1599
  %v1621 = vpack.c.b16 %v1605, %v1605
  %v1622 = vpack.c.b16 %v1611, %v1611
  %v1623 = vpack.c.b16 %v1617, %v1617
  %1624 = vrot.lane.b32.xlu0 %v1618, 92
  %v1625 = vpop.permute.xlu0 %1624
  %1626 = vrot.lane.b32.xlu0 %v1619, 92
  %v1627 = vpop.permute.xlu0 %1626
  %1628 = vrot.lane.b32.xlu0 %v1620, 92
  %v1629 = vpop.permute.xlu0 %1628
  %1630 = vrot.lane.b32.xlu0 %v1621, 92
  %v1631 = vpop.permute.xlu0 %1630
  %1632 = vrot.lane.b32.xlu0 %v1622, 92
  %v1633 = vpop.permute.xlu0 %1632
  %1634 = vrot.lane.b32.xlu0 %v1623, 92
  %v1635 = vpop.permute.xlu0 %1634
  %vm1636 = vcmask 752640
  %v1637 = vsel %vm1636, %v1625, %v1627
  %v1638 = vsel %vm1636, %v1627, %v1629
  %v1639 = vsel %vm1636, %v1629, %v1631
  %v1640 = vsel %vm1636, %v1631, %v1633
  %v1641 = vsel %vm1636, %v1633, %v1635
  %v1643 = vsel %vm174, %v1501, 0
  %v1646 = vsel %vm178, %v1637, 0
  %v1649 = vsel %vm178, %v1638, 0
  %v1652 = vsel %vm178, %v1639, 0
  %v1655 = vsel %vm178, %v1640, 0
  %v1658 = vsel %vm178, %v1641, 0
  %v1661 = vsel %vm178, %v1635, 0
  %1663 = vmatpush.bf16.msra.mxu0 0
  %1664 = vmatpush.bf16.msra.mxu0 0
  %1665 = vmatpush.bf16.msra.mxu0 0
  %1666 = vmatpush.bf16.msra.mxu0 0
  %1667 = vmatpush.bf16.msra.mxu0 0
  %1668 = vmatpush.bf16.msra.mxu0 0
  %1669 = vmatpush.bf16.msra.mxu0 0
  %1670 = vmatpush.bf16.msra.mxu0 %v1646
  %1671 = vmatmul.bf16.gmra.mxu0 %v1643
  %v1672 = vpop.f32.mrf.mxu0
  %v1673 = vadd.f32 0.0, %v1672
  %v1674 = vpop.f32.mrf.mxu0
  %1675 = vdwg.mxu0
  %1676 = vmatpush.bf16.msra.mxu0 0
  %1677 = vmatpush.bf16.msra.mxu0 0
  %1678 = vmatpush.bf16.msra.mxu0 0
  %1679 = vmatpush.bf16.msra.mxu0 0
  %1680 = vmatpush.bf16.msra.mxu0 0
  %1681 = vmatpush.bf16.msra.mxu0 0
  %1682 = vmatpush.bf16.msra.mxu0 0
  %1683 = vmatpush.bf16.msra.mxu0 %v1649
  %1684 = vmatmul.bf16.gmra.mxu0 %v1643
  %v1685 = vpop.f32.mrf.mxu0
  %v1686 = vadd.f32 0.0, %v1685
  %v1687 = vpop.f32.mrf.mxu0
  %1688 = vdwg.mxu0
  %1689 = vmatpush.bf16.msra.mxu0 0
  %1690 = vmatpush.bf16.msra.mxu0 0
  %1691 = vmatpush.bf16.msra.mxu0 0
  %1692 = vmatpush.bf16.msra.mxu0 0
  %1693 = vmatpush.bf16.msra.mxu0 0
  %1694 = vmatpush.bf16.msra.mxu0 0
  %1695 = vmatpush.bf16.msra.mxu0 0
  %1696 = vmatpush.bf16.msra.mxu0 %v1652
  %1697 = vmatmul.bf16.gmra.mxu0 %v1643
  %v1698 = vpop.f32.mrf.mxu0
  %v1699 = vadd.f32 0.0, %v1698
  %v1700 = vpop.f32.mrf.mxu0
  %1701 = vdwg.mxu0
  %1702 = vmatpush.bf16.msra.mxu0 0
  %1703 = vmatpush.bf16.msra.mxu0 0
  %1704 = vmatpush.bf16.msra.mxu0 0
  %1705 = vmatpush.bf16.msra.mxu0 0
  %1706 = vmatpush.bf16.msra.mxu0 0
  %1707 = vmatpush.bf16.msra.mxu0 0
  %1708 = vmatpush.bf16.msra.mxu0 0
  %1709 = vmatpush.bf16.msra.mxu0 %v1655
  %1710 = vmatmul.bf16.gmra.mxu0 %v1643
  %v1711 = vpop.f32.mrf.mxu0
  %v1712 = vadd.f32 0.0, %v1711
  %v1713 = vpop.f32.mrf.mxu0
  %1714 = vdwg.mxu0
  %1715 = vmatpush.bf16.msra.mxu0 0
  %1716 = vmatpush.bf16.msra.mxu0 0
  %1717 = vmatpush.bf16.msra.mxu0 0
  %1718 = vmatpush.bf16.msra.mxu0 0
  %1719 = vmatpush.bf16.msra.mxu0 0
  %1720 = vmatpush.bf16.msra.mxu0 0
  %1721 = vmatpush.bf16.msra.mxu0 0
  %1722 = vmatpush.bf16.msra.mxu0 %v1658
  %1723 = vmatmul.bf16.gmra.mxu0 %v1643
  %v1724 = vpop.f32.mrf.mxu0
  %v1725 = vadd.f32 0.0, %v1724
  %v1726 = vpop.f32.mrf.mxu0
  %1727 = vdwg.mxu0
  %1728 = vmatpush.bf16.msra.mxu0 0
  %1729 = vmatpush.bf16.msra.mxu0 0
  %1730 = vmatpush.bf16.msra.mxu0 0
  %1731 = vmatpush.bf16.msra.mxu0 0
  %1732 = vmatpush.bf16.msra.mxu0 0
  %1733 = vmatpush.bf16.msra.mxu0 0
  %1734 = vmatpush.bf16.msra.mxu0 0
  %1735 = vmatpush.bf16.msra.mxu0 %v1661
  %1736 = vmatmul.bf16.gmra.mxu0 %v1643
  %v1737 = vpop.f32.mrf.mxu0
  %v1738 = vadd.f32 0.0, %v1737
  %v1739 = vpop.f32.mrf.mxu0
  %1740 = vdwg.mxu0
  %v1741 = vadd.f32 %v1490, %v1673
  %v1742 = vadd.f32 %v1491, %v1686
  %v1743 = vadd.f32 %v1492, %v1699
  %v1744 = vadd.f32 %v1493, %v1712
  %v1745 = vadd.f32 %v1494, %v1725
  %v1746 = vadd.f32 %v1495, %v1738
  %v1747 = vld [vmem:[%s0] sm:$0x3f]
  %v1748 = vld [vmem:[%s0 + $0x6] sm:$0x3f]
  %v1749 = vld [vmem:[%s0 + $0xc] sm:$0x3f]
  %v1750 = vld [vmem:[%s0 + $0x12] sm:$0x3f]
  %s1751 = scalar_lea.vmem %s2, 14
  %v1752 = vld [vmem:[%s1751] sm:$0x3]
  %1754 = vst [vmem:[#allocation1] ss:$9 sm:$0xff] %v1747
  %v1755 = vld [vmem:[#allocation1] sm:$0xff]
  %v1757 = vld [vmem:[#allocation1 + $0x9] sm:$0xff]
  %v1759 = vld [vmem:[#allocation1 + $0x12] sm:$0xff]
  %v1761 = vld [vmem:[#allocation1 + $0x1b] sm:$0xff]
  %v1763 = vld [vmem:[#allocation1 + $0x24] sm:$0xff]
  %v1765 = vld [vmem:[#allocation1 + $0x2d] sm:$0xff]
  %1768 = vst [vmem:[#allocation1] ss:$9 sm:$0xff] %v1748
  %v1769 = vld [vmem:[#allocation1] sm:$0xff]
  %v1771 = vld [vmem:[#allocation1 + $0x9] sm:$0xff]
  %v1773 = vld [vmem:[#allocation1 + $0x12] sm:$0xff]
  %v1775 = vld [vmem:[#allocation1 + $0x1b] sm:$0xff]
  %v1777 = vld [vmem:[#allocation1 + $0x24] sm:$0xff]
  %v1779 = vld [vmem:[#allocation1 + $0x2d] sm:$0xff]
  %1782 = vst [vmem:[#allocation1] ss:$9 sm:$0xff] %v1749
  %v1783 = vld [vmem:[#allocation1] sm:$0xff]
  %v1785 = vld [vmem:[#allocation1 + $0x9] sm:$0xff]
  %v1787 = vld [vmem:[#allocation1 + $0x12] sm:$0xff]
  %v1789 = vld [vmem:[#allocation1 + $0x1b] sm:$0xff]
  %v1791 = vld [vmem:[#allocation1 + $0x24] sm:$0xff]
  %v1793 = vld [vmem:[#allocation1 + $0x2d] sm:$0xff]
  %1796 = vst [vmem:[#allocation1] ss:$9 sm:$0xff] %v1750
  %v1797 = vld [vmem:[#allocation1] sm:$0xff]
  %v1799 = vld [vmem:[#allocation1 + $0x9] sm:$0xff]
  %v1801 = vld [vmem:[#allocation1 + $0x12] sm:$0xff]
  %v1803 = vld [vmem:[#allocation1 + $0x1b] sm:$0xff]
  %v1805 = vld [vmem:[#allocation1 + $0x24] sm:$0xff]
  %v1807 = vld [vmem:[#allocation1 + $0x2d] sm:$0xff]
  %v1809 = vunpack.c.l.b16 %v1755
  %v1810 = vunpack.c.l.b16 %v1757
  %v1811 = vunpack.c.l.b16 %v1759
  %v1812 = vunpack.c.l.b16 %v1761
  %v1813 = vunpack.c.l.b16 %v1763
  %v1814 = vunpack.c.l.b16 %v1765
  %v1815 = vunpack.c.l.b16 %v1769
  %v1816 = vunpack.c.l.b16 %v1771
  %v1817 = vunpack.c.l.b16 %v1773
  %v1818 = vunpack.c.l.b16 %v1775
  %v1819 = vunpack.c.l.b16 %v1777
  %v1820 = vunpack.c.l.b16 %v1779
  %v1821 = vunpack.c.l.b16 %v1783
  %v1822 = vunpack.c.l.b16 %v1785
  %v1823 = vunpack.c.l.b16 %v1787
  %v1824 = vunpack.c.l.b16 %v1789
  %v1825 = vunpack.c.l.b16 %v1791
  %v1826 = vunpack.c.l.b16 %v1793
  %v1827 = vunpack.c.l.b16 %v1797
  %v1828 = vunpack.c.l.b16 %v1799
  %v1829 = vunpack.c.l.b16 %v1801
  %v1830 = vunpack.c.l.b16 %v1803
  %v1831 = vunpack.c.l.b16 %v1805
  %v1832 = vunpack.c.l.b16 %v1807
  %v1833 = vrot.slane %v1815, 7
  %v1834 = vsel %vm112, %v1833, %v1809
  %v1835 = vrot.slane %v1821, 6
  %v1836 = vsel %vm115, %v1835, %v1834
  %v1837 = vrot.slane %v1827, 5
  %v1838 = vsel %vm118, %v1837, %v1836
  %v1839 = vrot.slane %v1816, 7
  %v1840 = vsel %vm112, %v1839, %v1810
  %v1841 = vrot.slane %v1822, 6
  %v1842 = vsel %vm115, %v1841, %v1840
  %v1843 = vrot.slane %v1828, 5
  %v1844 = vsel %vm118, %v1843, %v1842
  %v1845 = vrot.slane %v1817, 7
  %v1846 = vsel %vm112, %v1845, %v1811
  %v1847 = vrot.slane %v1823, 6
  %v1848 = vsel %vm115, %v1847, %v1846
  %v1849 = vrot.slane %v1829, 5
  %v1850 = vsel %vm118, %v1849, %v1848
  %v1851 = vrot.slane %v1818, 7
  %v1852 = vsel %vm112, %v1851, %v1812
  %v1853 = vrot.slane %v1824, 6
  %v1854 = vsel %vm115, %v1853, %v1852
  %v1855 = vrot.slane %v1830, 5
  %v1856 = vsel %vm118, %v1855, %v1854
  %v1857 = vrot.slane %v1819, 7
  %v1858 = vsel %vm112, %v1857, %v1813
  %v1859 = vrot.slane %v1825, 6
  %v1860 = vsel %vm115, %v1859, %v1858
  %v1861 = vrot.slane %v1831, 5
  %v1862 = vsel %vm118, %v1861, %v1860
  %v1863 = vrot.slane %v1820, 7
  %v1864 = vsel %vm112, %v1863, %v1814
  %v1865 = vrot.slane %v1826, 6
  %v1866 = vsel %vm115, %v1865, %v1864
  %v1867 = vrot.slane %v1832, 5
  %v1868 = vsel %vm118, %v1867, %v1866
  %v1869 = vpack.c.b16 %v1838, %v1838
  %v1870 = vpack.c.b16 %v1844, %v1844
  %v1871 = vpack.c.b16 %v1850, %v1850
  %v1872 = vpack.c.b16 %v1856, %v1856
  %v1873 = vpack.c.b16 %v1862, %v1862
  %v1874 = vpack.c.b16 %v1868, %v1868
  %1875 = vrot.lane.b32.xlu0 %v1869, 91
  %v1876 = vpop.permute.xlu0 %1875
  %1877 = vrot.lane.b32.xlu0 %v1870, 91
  %v1878 = vpop.permute.xlu0 %1877
  %1879 = vrot.lane.b32.xlu0 %v1871, 91
  %v1880 = vpop.permute.xlu0 %1879
  %1881 = vrot.lane.b32.xlu0 %v1872, 91
  %v1882 = vpop.permute.xlu0 %1881
  %1883 = vrot.lane.b32.xlu0 %v1873, 91
  %v1884 = vpop.permute.xlu0 %1883
  %1885 = vrot.lane.b32.xlu0 %v1874, 91
  %v1886 = vpop.permute.xlu0 %1885
  %vm1887 = vcmask 744448
  %v1888 = vsel %vm1887, %v1876, %v1878
  %v1889 = vsel %vm1887, %v1878, %v1880
  %v1890 = vsel %vm1887, %v1880, %v1882
  %v1891 = vsel %vm1887, %v1882, %v1884
  %v1892 = vsel %vm1887, %v1884, %v1886
  %v1894 = vsel %vm174, %v1752, 0
  %v1897 = vsel %vm178, %v1888, 0
  %v1900 = vsel %vm178, %v1889, 0
  %v1903 = vsel %vm178, %v1890, 0
  %v1906 = vsel %vm178, %v1891, 0
  %v1909 = vsel %vm178, %v1892, 0
  %v1912 = vsel %vm178, %v1886, 0
  %1914 = vmatpush.bf16.msra.mxu0 0
  %1915 = vmatpush.bf16.msra.mxu0 0
  %1916 = vmatpush.bf16.msra.mxu0 0
  %1917 = vmatpush.bf16.msra.mxu0 0
  %1918 = vmatpush.bf16.msra.mxu0 0
  %1919 = vmatpush.bf16.msra.mxu0 0
  %1920 = vmatpush.bf16.msra.mxu0 0
  %1921 = vmatpush.bf16.msra.mxu0 %v1897
  %1922 = vmatmul.bf16.gmra.mxu0 %v1894
  %v1923 = vpop.f32.mrf.mxu0
  %v1924 = vadd.f32 0.0, %v1923
  %v1925 = vpop.f32.mrf.mxu0
  %1926 = vdwg.mxu0
  %1927 = vmatpush.bf16.msra.mxu0 0
  %1928 = vmatpush.bf16.msra.mxu0 0
  %1929 = vmatpush.bf16.msra.mxu0 0
  %1930 = vmatpush.bf16.msra.mxu0 0
  %1931 = vmatpush.bf16.msra.mxu0 0
  %1932 = vmatpush.bf16.msra.mxu0 0
  %1933 = vmatpush.bf16.msra.mxu0 0
  %1934 = vmatpush.bf16.msra.mxu0 %v1900
  %1935 = vmatmul.bf16.gmra.mxu0 %v1894
  %v1936 = vpop.f32.mrf.mxu0
  %v1937 = vadd.f32 0.0, %v1936
  %v1938 = vpop.f32.mrf.mxu0
  %1939 = vdwg.mxu0
  %1940 = vmatpush.bf16.msra.mxu0 0
  %1941 = vmatpush.bf16.msra.mxu0 0
  %1942 = vmatpush.bf16.msra.mxu0 0
  %1943 = vmatpush.bf16.msra.mxu0 0
  %1944 = vmatpush.bf16.msra.mxu0 0
  %1945 = vmatpush.bf16.msra.mxu0 0
  %1946 = vmatpush.bf16.msra.mxu0 0
  %1947 = vmatpush.bf16.msra.mxu0 %v1903
  %1948 = vmatmul.bf16.gmra.mxu0 %v1894
  %v1949 = vpop.f32.mrf.mxu0
  %v1950 = vadd.f32 0.0, %v1949
  %v1951 = vpop.f32.mrf.mxu0
  %1952 = vdwg.mxu0
  %1953 = vmatpush.bf16.msra.mxu0 0
  %1954 = vmatpush.bf16.msra.mxu0 0
  %1955 = vmatpush.bf16.msra.mxu0 0
  %1956 = vmatpush.bf16.msra.mxu0 0
  %1957 = vmatpush.bf16.msra.mxu0 0
  %1958 = vmatpush.bf16.msra.mxu0 0
  %1959 = vmatpush.bf16.msra.mxu0 0
  %1960 = vmatpush.bf16.msra.mxu0 %v1906
  %1961 = vmatmul.bf16.gmra.mxu0 %v1894
  %v1962 = vpop.f32.mrf.mxu0
  %v1963 = vadd.f32 0.0, %v1962
  %v1964 = vpop.f32.mrf.mxu0
  %1965 = vdwg.mxu0
  %1966 = vmatpush.bf16.msra.mxu0 0
  %1967 = vmatpush.bf16.msra.mxu0 0
  %1968 = vmatpush.bf16.msra.mxu0 0
  %1969 = vmatpush.bf16.msra.mxu0 0
  %1970 = vmatpush.bf16.msra.mxu0 0
  %1971 = vmatpush.bf16.msra.mxu0 0
  %1972 = vmatpush.bf16.msra.mxu0 0
  %1973 = vmatpush.bf16.msra.mxu0 %v1909
  %1974 = vmatmul.bf16.gmra.mxu0 %v1894
  %v1975 = vpop.f32.mrf.mxu0
  %v1976 = vadd.f32 0.0, %v1975
  %v1977 = vpop.f32.mrf.mxu0
  %1978 = vdwg.mxu0
  %1979 = vmatpush.bf16.msra.mxu0 0
  %1980 = vmatpush.bf16.msra.mxu0 0
  %1981 = vmatpush.bf16.msra.mxu0 0
  %1982 = vmatpush.bf16.msra.mxu0 0
  %1983 = vmatpush.bf16.msra.mxu0 0
  %1984 = vmatpush.bf16.msra.mxu0 0
  %1985 = vmatpush.bf16.msra.mxu0 0
  %1986 = vmatpush.bf16.msra.mxu0 %v1912
  %1987 = vmatmul.bf16.gmra.mxu0 %v1894
  %v1988 = vpop.f32.mrf.mxu0
  %v1989 = vadd.f32 0.0, %v1988
  %v1990 = vpop.f32.mrf.mxu0
  %1991 = vdwg.mxu0
  %v1992 = vadd.f32 %v1741, %v1924
  %v1993 = vadd.f32 %v1742, %v1937
  %v1994 = vadd.f32 %v1743, %v1950
  %v1995 = vadd.f32 %v1744, %v1963
  %v1996 = vadd.f32 %v1745, %v1976
  %v1997 = vadd.f32 %v1746, %v1989
  %v1998 = vld [vmem:[%s0] sm:$0x3f]
  %v1999 = vld [vmem:[%s0 + $0x6] sm:$0x3f]
  %v2000 = vld [vmem:[%s0 + $0xc] sm:$0x3f]
  %v2001 = vld [vmem:[%s0 + $0x12] sm:$0x3f]
  %s2002 = scalar_lea.vmem %s2, 16
  %v2003 = vld [vmem:[%s2002] sm:$0x3]
  %2005 = vst [vmem:[#allocation1] ss:$9 sm:$0xff] %v1998
  %v2006 = vld [vmem:[#allocation1] sm:$0xff]
  %v2008 = vld [vmem:[#allocation1 + $0x9] sm:$0xff]
  %v2010 = vld [vmem:[#allocation1 + $0x12] sm:$0xff]
  %v2012 = vld [vmem:[#allocation1 + $0x1b] sm:$0xff]
  %v2014 = vld [vmem:[#allocation1 + $0x24] sm:$0xff]
  %v2016 = vld [vmem:[#allocation1 + $0x2d] sm:$0xff]
  %2019 = vst [vmem:[#allocation1] ss:$9 sm:$0xff] %v1999
  %v2020 = vld [vmem:[#allocation1] sm:$0xff]
  %v2022 = vld [vmem:[#allocation1 + $0x9] sm:$0xff]
  %v2024 = vld [vmem:[#allocation1 + $0x12] sm:$0xff]
  %v2026 = vld [vmem:[#allocation1 + $0x1b] sm:$0xff]
  %v2028 = vld [vmem:[#allocation1 + $0x24] sm:$0xff]
  %v2030 = vld [vmem:[#allocation1 + $0x2d] sm:$0xff]
  %2033 = vst [vmem:[#allocation1] ss:$9 sm:$0xff] %v2000
  %v2034 = vld [vmem:[#allocation1] sm:$0xff]
  %v2036 = vld [vmem:[#allocation1 + $0x9] sm:$0xff]
  %v2038 = vld [vmem:[#allocation1 + $0x12] sm:$0xff]
  %v2040 = vld [vmem:[#allocation1 + $0x1b] sm:$0xff]
  %v2042 = vld [vmem:[#allocation1 + $0x24] sm:$0xff]
  %v2044 = vld [vmem:[#allocation1 + $0x2d] sm:$0xff]
  %2047 = vst [vmem:[#allocation1] ss:$9 sm:$0xff] %v2001
  %v2048 = vld [vmem:[#allocation1] sm:$0xff]
  %v2050 = vld [vmem:[#allocation1 + $0x9] sm:$0xff]
  %v2052 = vld [vmem:[#allocation1 + $0x12] sm:$0xff]
  %v2054 = vld [vmem:[#allocation1 + $0x1b] sm:$0xff]
  %v2056 = vld [vmem:[#allocation1 + $0x24] sm:$0xff]
  %v2058 = vld [vmem:[#allocation1 + $0x2d] sm:$0xff]
  %v2060 = vunpack.c.l.b16 %v2006
  %v2061 = vunpack.c.l.b16 %v2008
  %v2062 = vunpack.c.l.b16 %v2010
  %v2063 = vunpack.c.l.b16 %v2012
  %v2064 = vunpack.c.l.b16 %v2014
  %v2065 = vunpack.c.l.b16 %v2016
  %v2066 = vunpack.c.l.b16 %v2020
  %v2067 = vunpack.c.l.b16 %v2022
  %v2068 = vunpack.c.l.b16 %v2024
  %v2069 = vunpack.c.l.b16 %v2026
  %v2070 = vunpack.c.l.b16 %v2028
  %v2071 = vunpack.c.l.b16 %v2030
  %v2072 = vunpack.c.l.b16 %v2034
  %v2073 = vunpack.c.l.b16 %v2036
  %v2074 = vunpack.c.l.b16 %v2038
  %v2075 = vunpack.c.l.b16 %v2040
  %v2076 = vunpack.c.l.b16 %v2042
  %v2077 = vunpack.c.l.b16 %v2044
  %v2078 = vunpack.c.l.b16 %v2048
  %v2079 = vunpack.c.l.b16 %v2050
  %v2080 = vunpack.c.l.b16 %v2052
  %v2081 = vunpack.c.l.b16 %v2054
  %v2082 = vunpack.c.l.b16 %v2056
  %v2083 = vunpack.c.l.b16 %v2058
  %v2084 = vrot.slane %v2066, 7
  %v2085 = vsel %vm112, %v2084, %v2060
  %v2086 = vrot.slane %v2072, 6
  %v2087 = vsel %vm115, %v2086, %v2085
  %v2088 = vrot.slane %v2078, 5
  %v2089 = vsel %vm118, %v2088, %v2087
  %v2090 = vrot.slane %v2067, 7
  %v2091 = vsel %vm112, %v2090, %v2061
  %v2092 = vrot.slane %v2073, 6
  %v2093 = vsel %vm115, %v2092, %v2091
  %v2094 = vrot.slane %v2079, 5
  %v2095 = vsel %vm118, %v2094, %v2093
  %v2096 = vrot.slane %v2068, 7
  %v2097 = vsel %vm112, %v2096, %v2062
  %v2098 = vrot.slane %v2074, 6
  %v2099 = vsel %vm115, %v2098, %v2097
  %v2100 = vrot.slane %v2080, 5
  %v2101 = vsel %vm118, %v2100, %v2099
  %v2102 = vrot.slane %v2069, 7
  %v2103 = vsel %vm112, %v2102, %v2063
  %v2104 = vrot.slane %v2075, 6
  %v2105 = vsel %vm115, %v2104, %v2103
  %v2106 = vrot.slane %v2081, 5
  %v2107 = vsel %vm118, %v2106, %v2105
  %v2108 = vrot.slane %v2070, 7
  %v2109 = vsel %vm112, %v2108, %v2064
  %v2110 = vrot.slane %v2076, 6
  %v2111 = vsel %vm115, %v2110, %v2109
  %v2112 = vrot.slane %v2082, 5
  %v2113 = vsel %vm118, %v2112, %v2111
  %v2114 = vrot.slane %v2071, 7
  %v2115 = vsel %vm112, %v2114, %v2065
  %v2116 = vrot.slane %v2077, 6
  %v2117 = vsel %vm115, %v2116, %v2115
  %v2118 = vrot.slane %v2083, 5
  %v2119 = vsel %vm118, %v2118, %v2117
  %v2120 = vpack.c.b16 %v2089, %v2089
  %v2121 = vpack.c.b16 %v2095, %v2095
  %v2122 = vpack.c.b16 %v2101, %v2101
  %v2123 = vpack.c.b16 %v2107, %v2107
  %v2124 = vpack.c.b16 %v2113, %v2113
  %v2125 = vpack.c.b16 %v2119, %v2119
  %2126 = vrot.lane.b32.xlu0 %v2120, 90
  %v2127 = vpop.permute.xlu0 %2126
  %2128 = vrot.lane.b32.xlu0 %v2121, 90
  %v2129 = vpop.permute.xlu0 %2128
  %2130 = vrot.lane.b32.xlu0 %v2122, 90
  %v2131 = vpop.permute.xlu0 %2130
  %2132 = vrot.lane.b32.xlu0 %v2123, 90
  %v2133 = vpop.permute.xlu0 %2132
  %2134 = vrot.lane.b32.xlu0 %v2124, 90
  %v2135 = vpop.permute.xlu0 %2134
  %2136 = vrot.lane.b32.xlu0 %v2125, 90
  %v2137 = vpop.permute.xlu0 %2136
  %vm2138 = vcmask 736256
  %v2139 = vsel %vm2138, %v2127, %v2129
  %v2140 = vsel %vm2138, %v2129, %v2131
  %v2141 = vsel %vm2138, %v2131, %v2133
  %v2142 = vsel %vm2138, %v2133, %v2135
  %v2143 = vsel %vm2138, %v2135, %v2137
  %v2145 = vsel %vm174, %v2003, 0
  %v2148 = vsel %vm178, %v2139, 0
  %v2151 = vsel %vm178, %v2140, 0
  %v2154 = vsel %vm178, %v2141, 0
  %v2157 = vsel %vm178, %v2142, 0
  %v2160 = vsel %vm178, %v2143, 0
  %v2163 = vsel %vm178, %v2137, 0
  %2165 = vmatpush.bf16.msra.mxu0 0
  %2166 = vmatpush.bf16.msra.mxu0 0
  %2167 = vmatpush.bf16.msra.mxu0 0
  %2168 = vmatpush.bf16.msra.mxu0 0
  %2169 = vmatpush.bf16.msra.mxu0 0
  %2170 = vmatpush.bf16.msra.mxu0 0
  %2171 = vmatpush.bf16.msra.mxu0 0
  %2172 = vmatpush.bf16.msra.mxu0 %v2148
  %2173 = vmatmul.bf16.gmra.mxu0 %v2145
  %v2174 = vpop.f32.mrf.mxu0
  %v2175 = vadd.f32 0.0, %v2174
  %v2176 = vpop.f32.mrf.mxu0
  %2177 = vdwg.mxu0
  %2178 = vmatpush.bf16.msra.mxu0 0
  %2179 = vmatpush.bf16.msra.mxu0 0
  %2180 = vmatpush.bf16.msra.mxu0 0
  %2181 = vmatpush.bf16.msra.mxu0 0
  %2182 = vmatpush.bf16.msra.mxu0 0
  %2183 = vmatpush.bf16.msra.mxu0 0
  %2184 = vmatpush.bf16.msra.mxu0 0
  %2185 = vmatpush.bf16.msra.mxu0 %v2151
  %2186 = vmatmul.bf16.gmra.mxu0 %v2145
  %v2187 = vpop.f32.mrf.mxu0
  %v2188 = vadd.f32 0.0, %v2187
  %v2189 = vpop.f32.mrf.mxu0
  %2190 = vdwg.mxu0
  %2191 = vmatpush.bf16.msra.mxu0 0
  %2192 = vmatpush.bf16.msra.mxu0 0
  %2193 = vmatpush.bf16.msra.mxu0 0
  %2194 = vmatpush.bf16.msra.mxu0 0
  %2195 = vmatpush.bf16.msra.mxu0 0
  %2196 = vmatpush.bf16.msra.mxu0 0
  %2197 = vmatpush.bf16.msra.mxu0 0
  %2198 = vmatpush.bf16.msra.mxu0 %v2154
  %2199 = vmatmul.bf16.gmra.mxu0 %v2145
  %v2200 = vpop.f32.mrf.mxu0
  %v2201 = vadd.f32 0.0, %v2200
  %v2202 = vpop.f32.mrf.mxu0
  %2203 = vdwg.mxu0
  %2204 = vmatpush.bf16.msra.mxu0 0
  %2205 = vmatpush.bf16.msra.mxu0 0
  %2206 = vmatpush.bf16.msra.mxu0 0
  %2207 = vmatpush.bf16.msra.mxu0 0
  %2208 = vmatpush.bf16.msra.mxu0 0
  %2209 = vmatpush.bf16.msra.mxu0 0
  %2210 = vmatpush.bf16.msra.mxu0 0
  %2211 = vmatpush.bf16.msra.mxu0 %v2157
  %2212 = vmatmul.bf16.gmra.mxu0 %v2145
  %v2213 = vpop.f32.mrf.mxu0
  %v2214 = vadd.f32 0.0, %v2213
  %v2215 = vpop.f32.mrf.mxu0
  %2216 = vdwg.mxu0
  %2217 = vmatpush.bf16.msra.mxu0 0
  %2218 = vmatpush.bf16.msra.mxu0 0
  %2219 = vmatpush.bf16.msra.mxu0 0
  %2220 = vmatpush.bf16.msra.mxu0 0
  %2221 = vmatpush.bf16.msra.mxu0 0
  %2222 = vmatpush.bf16.msra.mxu0 0
  %2223 = vmatpush.bf16.msra.mxu0 0
  %2224 = vmatpush.bf16.msra.mxu0 %v2160
  %2225 = vmatmul.bf16.gmra.mxu0 %v2145
  %v2226 = vpop.f32.mrf.mxu0
  %v2227 = vadd.f32 0.0, %v2226
  %v2228 = vpop.f32.mrf.mxu0
  %2229 = vdwg.mxu0
  %2230 = vmatpush.bf16.msra.mxu0 0
  %2231 = vmatpush.bf16.msra.mxu0 0
  %2232 = vmatpush.bf16.msra.mxu0 0
  %2233 = vmatpush.bf16.msra.mxu0 0
  %2234 = vmatpush.bf16.msra.mxu0 0
  %2235 = vmatpush.bf16.msra.mxu0 0
  %2236 = vmatpush.bf16.msra.mxu0 0
  %2237 = vmatpush.bf16.msra.mxu0 %v2163
  %2238 = vmatmul.bf16.gmra.mxu0 %v2145
  %v2239 = vpop.f32.mrf.mxu0
  %v2240 = vadd.f32 0.0, %v2239
  %v2241 = vpop.f32.mrf.mxu0
  %2242 = vdwg.mxu0
  %v2243 = vadd.f32 %v1992, %v2175
  %v2244 = vadd.f32 %v1993, %v2188
  %v2245 = vadd.f32 %v1994, %v2201
  %v2246 = vadd.f32 %v1995, %v2214
  %v2247 = vadd.f32 %v1996, %v2227
  %v2248 = vadd.f32 %v1997, %v2240
  %v2249 = vld [vmem:[%s3] sm:$0xf]
  %2251 = vset.pattern.permute.xlu0 0
  %2252 = vperm.xlu0 %2251, %v2249
  %v2253 = vpop.permute.xlu0 %2252
  %v2255 = vadd.f32 %v2243, %v2253
  %v2256 = vadd.f32 %v2244, %v2253
  %v2257 = vadd.f32 %v2245, %v2253
  %v2258 = vadd.f32 %v2246, %v2253
  %v2259 = vadd.f32 %v2247, %v2253
  %v2260 = vadd.f32 %v2248, %v2253
  %v2261 = vmax.f32 %v2255, 0.0
  %v2262 = vmax.f32 %v2256, 0.0
  %v2263 = vmax.f32 %v2257, 0.0
  %v2264 = vmax.f32 %v2258, 0.0
  %v2265 = vmax.f32 %v2259, 0.0
  %v2266 = vmax.f32 %v2260, 0.0
  %v2267 = vld [vmem:[%s1] sm:$0x3f]
  %v2269 = vperm.slane %v2267, 0
  %v2270 = vperm.slane %v2267, 1
  %v2271 = vperm.slane %v2267, 2
  %v2272 = vperm.slane %v2267, 3
  %v2273 = vperm.slane %v2267, 4
  %v2274 = vperm.slane %v2267, 5
  %v2281 = vmul.f32 %v2261, %v2269
  %v2282 = vmul.f32 %v2262, %v2270
  %v2283 = vmul.f32 %v2263, %v2271
  %v2284 = vmul.f32 %v2264, %v2272
  %v2285 = vmul.f32 %v2265, %v2273
  %v2286 = vmul.f32 %v2266, %v2274
  %v2287 = vunpack.c.l.bf16 %v994
  %v2288 = vunpack.c.h.bf16 %v994
  %v2289 = vunpack.c.l.bf16 %v995
  %v2290 = vunpack.c.h.bf16 %v995
  %v2291 = vunpack.c.l.bf16 %v996
  %v2292 = vunpack.c.h.bf16 %v996
  %v2293 = vunpack.c.l.bf16 %v997
  %v2294 = vunpack.c.h.bf16 %v997
  %vm2295 = vcmask 148480
  %2296 = vst.msk [vmem:[#allocation2] sm:$0x3] %vm2295, 0
  %vm2297 = vcmask 369880
  %2298 = vst.msk [vmem:[#allocation2 + $0xa] sm:$0x3] %vm2297, 0
  %v2299 = vpack.c.bf16 %v2282, %v2281
  %v2300 = vpack.c.bf16 %v2284, %v2283
  %v2301 = vpack.c.bf16 %v2286, %v2285
  %v2305 = vrot.slane %v2299, 2
  %v2306 = vrot.slane %v2300, 4
  %v2307 = vrot.slane %v2300, 6
  %v2308 = vrot.slane %v2301, 2
  %v2311 = vsel %vm178, %v2299, %v2305
  %vm2312 = vcmask 1045508
  %v2315 = vsel %vm2312, %v2306, %v2307
  %vm2316 = vcmask 1043456
  %v2317 = vsel %vm2316, %v2311, %v2315
  %v2321 = vsel %vm178, %v2301, %v2308
  %2323 = vrot.lane.b32.xlu0 %v2317, 19
  %v2324 = vpop.permute.xlu0 %2323
  %2325 = vrot.lane.b32.xlu0 %v2321, 19
  %v2326 = vpop.permute.xlu0 %2325
  %v2327 = vrot.slane %v2324, 6
  %v2328 = vrot.slane %v2326, 6
  %vm2329 = vcmask 154624
  %v2330 = vsel %vm2329, %v2327, %v2324
  %vm2331 = vcmask 1041408
  %v2332 = vsel %vm2331, %v2327, %v2328
  %v2333 = vsel %vm2329, %v2332, %v2326
  %vm2336 = vcmask 1041560
  %vm2337 = vcmask 1043458
  %vm2338 = vmor %vm2337, %vm2336
  %vm2339 = vmor %vm2312, %vm2338
  %vm2340 = vcmask 1047558
  %vm2341 = vmor %vm2340, %vm2339
  %2342 = vst.msk [vmem:[#allocation2] sm:$0xff] %vm2341, %v2330
  %vm2343 = vcmask 216066
  %vm2344 = vmor %vm2343, %vm178
  %2345 = vst.msk [vmem:[#allocation2 + $0x8] sm:$0xf] %vm2344, %v2333
  %v2346 = vld [vmem:[#allocation2] sm:$0xff]
  %v2347 = vld [vmem:[#allocation2 + $0x8] sm:$0xf]
  %v2348 = vld [vmem:[%s4] sm:$0x3]
  %s2349 = scalar_lea.vmem %s4, 2
  %v2350 = vld [vmem:[%s2349] sm:$0x3]
  %2352 = vst [vmem:[#allocation1] ss:$4 sm:$0xff] %v2346
  %s2354 = scalar_lea.vmem [#allocation1], 32
  %2355 = vst [vmem:[%s2354] ss:$4 sm:$0xff] %v2347
  %v2356 = vld.sshfl [vmem:[#allocation1] sm:$0xff pattern:$0x73625140]
  %v2358 = vld.sshfl [vmem:[#allocation1 + $0x8] sm:$0xff pattern:$0x73625140]
  %v2360 = vld.sshfl [vmem:[#allocation1 + $0x10] sm:$0xff pattern:$0x73625140]
  %v2362 = vld.sshfl [vmem:[#allocation1 + $0x18] sm:$0xff pattern:$0x73625140]
  %v2364 = vld.sshfl [vmem:[#allocation1 + $0x20] sm:$0xff pattern:$0x73625140]
  %v2366 = vld.sshfl [vmem:[#allocation1 + $0x28] sm:$0xff pattern:$0x73625140]
  %2368 = vrot.lane.b32.xlu0 %v2356, 127
  %v2369 = vpop.permute.xlu0 %2368
  %2370 = vrot.lane.b32.xlu0 %v2358, 127
  %v2371 = vpop.permute.xlu0 %2370
  %2372 = vrot.lane.b32.xlu0 %v2360, 127
  %v2373 = vpop.permute.xlu0 %2372
  %2374 = vrot.lane.b32.xlu0 %v2362, 127
  %v2375 = vpop.permute.xlu0 %2374
  %2376 = vrot.lane.b32.xlu0 %v2364, 127
  %v2377 = vpop.permute.xlu0 %2376
  %2378 = vrot.lane.b32.xlu0 %v2366, 127
  %v2379 = vpop.permute.xlu0 %2378
  %v2380 = vsel %vm168, %v2369, %v2371
  %v2381 = vsel %vm168, %v2371, %v2373
  %v2382 = vsel %vm168, %v2373, %v2375
  %v2383 = vsel %vm168, %v2375, %v2377
  %v2384 = vsel %vm168, %v2377, %v2379
  %v2386 = vsel %vm174, %v2350, 0
  %v2389 = vsel %vm178, %v2380, 0
  %v2392 = vsel %vm178, %v2381, 0
  %v2395 = vsel %vm178, %v2382, 0
  %v2398 = vsel %vm178, %v2383, 0
  %v2401 = vsel %vm178, %v2384, 0
  %v2404 = vsel %vm178, %v2379, 0
  %2406 = vmatpush.bf16.msra.mxu0 0
  %2407 = vmatpush.bf16.msra.mxu0 0
  %2408 = vmatpush.bf16.msra.mxu0 0
  %2409 = vmatpush.bf16.msra.mxu0 0
  %2410 = vmatpush.bf16.msra.mxu0 0
  %2411 = vmatpush.bf16.msra.mxu0 0
  %2412 = vmatpush.bf16.msra.mxu0 0
  %2413 = vmatpush.bf16.msra.mxu0 %v2389
  %2414 = vmatmul.bf16.gmra.mxu0 %v2386
  %v2415 = vpop.f32.mrf.mxu0
  %v2416 = vadd.f32 0.0, %v2415
  %v2417 = vpop.f32.mrf.mxu0
  %2418 = vdwg.mxu0
  %2419 = vmatpush.bf16.msra.mxu0 0
  %2420 = vmatpush.bf16.msra.mxu0 0
  %2421 = vmatpush.bf16.msra.mxu0 0
  %2422 = vmatpush.bf16.msra.mxu0 0
  %2423 = vmatpush.bf16.msra.mxu0 0
  %2424 = vmatpush.bf16.msra.mxu0 0
  %2425 = vmatpush.bf16.msra.mxu0 0
  %2426 = vmatpush.bf16.msra.mxu0 %v2392
  %2427 = vmatmul.bf16.gmra.mxu0 %v2386
  %v2428 = vpop.f32.mrf.mxu0
  %v2429 = vadd.f32 0.0, %v2428
  %v2430 = vpop.f32.mrf.mxu0
  %2431 = vdwg.mxu0
  %2432 = vmatpush.bf16.msra.mxu0 0
  %2433 = vmatpush.bf16.msra.mxu0 0
  %2434 = vmatpush.bf16.msra.mxu0 0
  %2435 = vmatpush.bf16.msra.mxu0 0
  %2436 = vmatpush.bf16.msra.mxu0 0
  %2437 = vmatpush.bf16.msra.mxu0 0
  %2438 = vmatpush.bf16.msra.mxu0 0
  %2439 = vmatpush.bf16.msra.mxu0 %v2395
  %2440 = vmatmul.bf16.gmra.mxu0 %v2386
  %v2441 = vpop.f32.mrf.mxu0
  %v2442 = vadd.f32 0.0, %v2441
  %v2443 = vpop.f32.mrf.mxu0
  %2444 = vdwg.mxu0
  %2445 = vmatpush.bf16.msra.mxu0 0
  %2446 = vmatpush.bf16.msra.mxu0 0
  %2447 = vmatpush.bf16.msra.mxu0 0
  %2448 = vmatpush.bf16.msra.mxu0 0
  %2449 = vmatpush.bf16.msra.mxu0 0
  %2450 = vmatpush.bf16.msra.mxu0 0
  %2451 = vmatpush.bf16.msra.mxu0 0
  %2452 = vmatpush.bf16.msra.mxu0 %v2398
  %2453 = vmatmul.bf16.gmra.mxu0 %v2386
  %v2454 = vpop.f32.mrf.mxu0
  %v2455 = vadd.f32 0.0, %v2454
  %v2456 = vpop.f32.mrf.mxu0
  %2457 = vdwg.mxu0
  %2458 = vmatpush.bf16.msra.mxu0 0
  %2459 = vmatpush.bf16.msra.mxu0 0
  %2460 = vmatpush.bf16.msra.mxu0 0
  %2461 = vmatpush.bf16.msra.mxu0 0
  %2462 = vmatpush.bf16.msra.mxu0 0
  %2463 = vmatpush.bf16.msra.mxu0 0
  %2464 = vmatpush.bf16.msra.mxu0 0
  %2465 = vmatpush.bf16.msra.mxu0 %v2401
  %2466 = vmatmul.bf16.gmra.mxu0 %v2386
  %v2467 = vpop.f32.mrf.mxu0
  %v2468 = vadd.f32 0.0, %v2467
  %v2469 = vpop.f32.mrf.mxu0
  %2470 = vdwg.mxu0
  %2471 = vmatpush.bf16.msra.mxu0 0
  %2472 = vmatpush.bf16.msra.mxu0 0
  %2473 = vmatpush.bf16.msra.mxu0 0
  %2474 = vmatpush.bf16.msra.mxu0 0
  %2475 = vmatpush.bf16.msra.mxu0 0
  %2476 = vmatpush.bf16.msra.mxu0 0
  %2477 = vmatpush.bf16.msra.mxu0 0
  %2478 = vmatpush.bf16.msra.mxu0 %v2404
  %2479 = vmatmul.bf16.gmra.mxu0 %v2386
  %v2480 = vpop.f32.mrf.mxu0
  %v2481 = vadd.f32 0.0, %v2480
  %v2482 = vpop.f32.mrf.mxu0
  %2483 = vdwg.mxu0
  %2484 = vst [vmem:[#allocation1] ss:$4 sm:$0xff] %v2346
  %s2485 = scalar_lea.vmem [#allocation1], 32
  %2486 = vst [vmem:[%s2485] ss:$4 sm:$0xff] %v2347
  %v2487 = vld.sshfl [vmem:[#allocation1] sm:$0xff pattern:$0x73625140]
  %v2488 = vld.sshfl [vmem:[#allocation1 + $0x8] sm:$0xff pattern:$0x73625140]
  %v2489 = vld.sshfl [vmem:[#allocation1 + $0x10] sm:$0xff pattern:$0x73625140]
  %v2490 = vld.sshfl [vmem:[#allocation1 + $0x18] sm:$0xff pattern:$0x73625140]
  %v2491 = vld.sshfl [vmem:[#allocation1 + $0x20] sm:$0xff pattern:$0x73625140]
  %v2492 = vld.sshfl [vmem:[#allocation1 + $0x28] sm:$0xff pattern:$0x73625140]
  %v2494 = vsel %vm174, %v2348, 0
  %v2496 = vsel %vm178, %v2487, 0
  %v2498 = vsel %vm178, %v2488, 0
  %v2500 = vsel %vm178, %v2489, 0
  %v2502 = vsel %vm178, %v2490, 0
  %v2504 = vsel %vm178, %v2491, 0
  %v2506 = vsel %vm178, %v2492, 0
  %2508 = vmatpush.bf16.msra.mxu0 0
  %2509 = vmatpush.bf16.msra.mxu0 0
  %2510 = vmatpush.bf16.msra.mxu0 0
  %2511 = vmatpush.bf16.msra.mxu0 0
  %2512 = vmatpush.bf16.msra.mxu0 0
  %2513 = vmatpush.bf16.msra.mxu0 0
  %2514 = vmatpush.bf16.msra.mxu0 0
  %2515 = vmatpush.bf16.msra.mxu0 %v2496
  %2516 = vmatmul.bf16.gmra.mxu0 %v2494
  %v2517 = vpop.f32.mrf.mxu0
  %v2518 = vadd.f32 %v2416, %v2517
  %v2519 = vpop.f32.mrf.mxu0
  %2520 = vdwg.mxu0
  %2521 = vmatpush.bf16.msra.mxu0 0
  %2522 = vmatpush.bf16.msra.mxu0 0
  %2523 = vmatpush.bf16.msra.mxu0 0
  %2524 = vmatpush.bf16.msra.mxu0 0
  %2525 = vmatpush.bf16.msra.mxu0 0
  %2526 = vmatpush.bf16.msra.mxu0 0
  %2527 = vmatpush.bf16.msra.mxu0 0
  %2528 = vmatpush.bf16.msra.mxu0 %v2498
  %2529 = vmatmul.bf16.gmra.mxu0 %v2494
  %v2530 = vpop.f32.mrf.mxu0
  %v2531 = vadd.f32 %v2429, %v2530
  %v2532 = vpop.f32.mrf.mxu0
  %2533 = vdwg.mxu0
  %2534 = vmatpush.bf16.msra.mxu0 0
  %2535 = vmatpush.bf16.msra.mxu0 0
  %2536 = vmatpush.bf16.msra.mxu0 0
  %2537 = vmatpush.bf16.msra.mxu0 0
  %2538 = vmatpush.bf16.msra.mxu0 0
  %2539 = vmatpush.bf16.msra.mxu0 0
  %2540 = vmatpush.bf16.msra.mxu0 0
  %2541 = vmatpush.bf16.msra.mxu0 %v2500
  %2542 = vmatmul.bf16.gmra.mxu0 %v2494
  %v2543 = vpop.f32.mrf.mxu0
  %v2544 = vadd.f32 %v2442, %v2543
  %v2545 = vpop.f32.mrf.mxu0
  %2546 = vdwg.mxu0
  %2547 = vmatpush.bf16.msra.mxu0 0
  %2548 = vmatpush.bf16.msra.mxu0 0
  %2549 = vmatpush.bf16.msra.mxu0 0
  %2550 = vmatpush.bf16.msra.mxu0 0
  %2551 = vmatpush.bf16.msra.mxu0 0
  %2552 = vmatpush.bf16.msra.mxu0 0
  %2553 = vmatpush.bf16.msra.mxu0 0
  %2554 = vmatpush.bf16.msra.mxu0 %v2502
  %2555 = vmatmul.bf16.gmra.mxu0 %v2494
  %v2556 = vpop.f32.mrf.mxu0
  %v2557 = vadd.f32 %v2455, %v2556
  %v2558 = vpop.f32.mrf.mxu0
  %2559 = vdwg.mxu0
  %2560 = vmatpush.bf16.msra.mxu0 0
  %2561 = vmatpush.bf16.msra.mxu0 0
  %2562 = vmatpush.bf16.msra.mxu0 0
  %2563 = vmatpush.bf16.msra.mxu0 0
  %2564 = vmatpush.bf16.msra.mxu0 0
  %2565 = vmatpush.bf16.msra.mxu0 0
  %2566 = vmatpush.bf16.msra.mxu0 0
  %2567 = vmatpush.bf16.msra.mxu0 %v2504
  %2568 = vmatmul.bf16.gmra.mxu0 %v2494
  %v2569 = vpop.f32.mrf.mxu0
  %v2570 = vadd.f32 %v2468, %v2569
  %v2571 = vpop.f32.mrf.mxu0
  %2572 = vdwg.mxu0
  %2573 = vmatpush.bf16.msra.mxu0 0
  %2574 = vmatpush.bf16.msra.mxu0 0
  %2575 = vmatpush.bf16.msra.mxu0 0
  %2576 = vmatpush.bf16.msra.mxu0 0
  %2577 = vmatpush.bf16.msra.mxu0 0
  %2578 = vmatpush.bf16.msra.mxu0 0
  %2579 = vmatpush.bf16.msra.mxu0 0
  %2580 = vmatpush.bf16.msra.mxu0 %v2506
  %2581 = vmatmul.bf16.gmra.mxu0 %v2494
  %v2582 = vpop.f32.mrf.mxu0
  %v2583 = vadd.f32 %v2481, %v2582
  %v2584 = vpop.f32.mrf.mxu0
  %2585 = vdwg.mxu0
  %v2586 = vld [vmem:[#allocation2] sm:$0xff]
  %v2587 = vld [vmem:[#allocation2 + $0x8] sm:$0xf]
  %s2588 = scalar_lea.vmem %s4, 4
  %v2589 = vld [vmem:[%s2588] sm:$0x3]
  %2591 = vst [vmem:[#allocation1] ss:$4 sm:$0xff] %v2586
  %s2593 = scalar_lea.vmem [#allocation1], 32
  %2594 = vst [vmem:[%s2593] ss:$4 sm:$0xff] %v2587
  %v2595 = vld.sshfl [vmem:[#allocation1] sm:$0xff pattern:$0x73625140]
  %v2597 = vld.sshfl [vmem:[#allocation1 + $0x8] sm:$0xff pattern:$0x73625140]
  %v2599 = vld.sshfl [vmem:[#allocation1 + $0x10] sm:$0xff pattern:$0x73625140]
  %v2601 = vld.sshfl [vmem:[#allocation1 + $0x18] sm:$0xff pattern:$0x73625140]
  %v2603 = vld.sshfl [vmem:[#allocation1 + $0x20] sm:$0xff pattern:$0x73625140]
  %v2605 = vld.sshfl [vmem:[#allocation1 + $0x28] sm:$0xff pattern:$0x73625140]
  %2607 = vrot.lane.b32.xlu0 %v2595, 126
  %v2608 = vpop.permute.xlu0 %2607
  %2609 = vrot.lane.b32.xlu0 %v2597, 126
  %v2610 = vpop.permute.xlu0 %2609
  %2611 = vrot.lane.b32.xlu0 %v2599, 126
  %v2612 = vpop.permute.xlu0 %2611
  %2613 = vrot.lane.b32.xlu0 %v2601, 126
  %v2614 = vpop.permute.xlu0 %2613
  %2615 = vrot.lane.b32.xlu0 %v2603, 126
  %v2616 = vpop.permute.xlu0 %2615
  %2617 = vrot.lane.b32.xlu0 %v2605, 126
  %v2618 = vpop.permute.xlu0 %2617
  %v2619 = vsel %vm632, %v2608, %v2610
  %v2620 = vsel %vm632, %v2610, %v2612
  %v2621 = vsel %vm632, %v2612, %v2614
  %v2622 = vsel %vm632, %v2614, %v2616
  %v2623 = vsel %vm632, %v2616, %v2618
  %v2625 = vsel %vm174, %v2589, 0
  %v2628 = vsel %vm178, %v2619, 0
  %v2631 = vsel %vm178, %v2620, 0
  %v2634 = vsel %vm178, %v2621, 0
  %v2637 = vsel %vm178, %v2622, 0
  %v2640 = vsel %vm178, %v2623, 0
  %v2643 = vsel %vm178, %v2618, 0
  %2645 = vmatpush.bf16.msra.mxu0 0
  %2646 = vmatpush.bf16.msra.mxu0 0
  %2647 = vmatpush.bf16.msra.mxu0 0
  %2648 = vmatpush.bf16.msra.mxu0 0
  %2649 = vmatpush.bf16.msra.mxu0 0
  %2650 = vmatpush.bf16.msra.mxu0 0
  %2651 = vmatpush.bf16.msra.mxu0 0
  %2652 = vmatpush.bf16.msra.mxu0 %v2628
  %2653 = vmatmul.bf16.gmra.mxu0 %v2625
  %v2654 = vpop.f32.mrf.mxu0
  %v2655 = vadd.f32 0.0, %v2654
  %v2656 = vpop.f32.mrf.mxu0
  %2657 = vdwg.mxu0
  %2658 = vmatpush.bf16.msra.mxu0 0
  %2659 = vmatpush.bf16.msra.mxu0 0
  %2660 = vmatpush.bf16.msra.mxu0 0
  %2661 = vmatpush.bf16.msra.mxu0 0
  %2662 = vmatpush.bf16.msra.mxu0 0
  %2663 = vmatpush.bf16.msra.mxu0 0
  %2664 = vmatpush.bf16.msra.mxu0 0
  %2665 = vmatpush.bf16.msra.mxu0 %v2631
  %2666 = vmatmul.bf16.gmra.mxu0 %v2625
  %v2667 = vpop.f32.mrf.mxu0
  %v2668 = vadd.f32 0.0, %v2667
  %v2669 = vpop.f32.mrf.mxu0
  %2670 = vdwg.mxu0
  %2671 = vmatpush.bf16.msra.mxu0 0
  %2672 = vmatpush.bf16.msra.mxu0 0
  %2673 = vmatpush.bf16.msra.mxu0 0
  %2674 = vmatpush.bf16.msra.mxu0 0
  %2675 = vmatpush.bf16.msra.mxu0 0
  %2676 = vmatpush.bf16.msra.mxu0 0
  %2677 = vmatpush.bf16.msra.mxu0 0
  %2678 = vmatpush.bf16.msra.mxu0 %v2634
  %2679 = vmatmul.bf16.gmra.mxu0 %v2625
  %v2680 = vpop.f32.mrf.mxu0
  %v2681 = vadd.f32 0.0, %v2680
  %v2682 = vpop.f32.mrf.mxu0
  %2683 = vdwg.mxu0
  %2684 = vmatpush.bf16.msra.mxu0 0
  %2685 = vmatpush.bf16.msra.mxu0 0
  %2686 = vmatpush.bf16.msra.mxu0 0
  %2687 = vmatpush.bf16.msra.mxu0 0
  %2688 = vmatpush.bf16.msra.mxu0 0
  %2689 = vmatpush.bf16.msra.mxu0 0
  %2690 = vmatpush.bf16.msra.mxu0 0
  %2691 = vmatpush.bf16.msra.mxu0 %v2637
  %2692 = vmatmul.bf16.gmra.mxu0 %v2625
  %v2693 = vpop.f32.mrf.mxu0
  %v2694 = vadd.f32 0.0, %v2693
  %v2695 = vpop.f32.mrf.mxu0
  %2696 = vdwg.mxu0
  %2697 = vmatpush.bf16.msra.mxu0 0
  %2698 = vmatpush.bf16.msra.mxu0 0
  %2699 = vmatpush.bf16.msra.mxu0 0
  %2700 = vmatpush.bf16.msra.mxu0 0
  %2701 = vmatpush.bf16.msra.mxu0 0
  %2702 = vmatpush.bf16.msra.mxu0 0
  %2703 = vmatpush.bf16.msra.mxu0 0
  %2704 = vmatpush.bf16.msra.mxu0 %v2640
  %2705 = vmatmul.bf16.gmra.mxu0 %v2625
  %v2706 = vpop.f32.mrf.mxu0
  %v2707 = vadd.f32 0.0, %v2706
  %v2708 = vpop.f32.mrf.mxu0
  %2709 = vdwg.mxu0
  %2710 = vmatpush.bf16.msra.mxu0 0
  %2711 = vmatpush.bf16.msra.mxu0 0
  %2712 = vmatpush.bf16.msra.mxu0 0
  %2713 = vmatpush.bf16.msra.mxu0 0
  %2714 = vmatpush.bf16.msra.mxu0 0
  %2715 = vmatpush.bf16.msra.mxu0 0
  %2716 = vmatpush.bf16.msra.mxu0 0
  %2717 = vmatpush.bf16.msra.mxu0 %v2643
  %2718 = vmatmul.bf16.gmra.mxu0 %v2625
  %v2719 = vpop.f32.mrf.mxu0
  %v2720 = vadd.f32 0.0, %v2719
  %v2721 = vpop.f32.mrf.mxu0
  %2722 = vdwg.mxu0
  %v2723 = vadd.f32 %v2518, %v2655
  %v2724 = vadd.f32 %v2531, %v2668
  %v2725 = vadd.f32 %v2544, %v2681
  %v2726 = vadd.f32 %v2557, %v2694
  %v2727 = vadd.f32 %v2570, %v2707
  %v2728 = vadd.f32 %v2583, %v2720
  %v2729 = vld [vmem:[#allocation2] sm:$0xff]
  %v2730 = vld [vmem:[#allocation2 + $0x8] sm:$0xf]
  %s2731 = scalar_lea.vmem %s4, 6
  %v2732 = vld [vmem:[%s2731] sm:$0x3]
  %2734 = vst [vmem:[#allocation1] ss:$4 sm:$0xff] %v2729
  %s2736 = scalar_lea.vmem [#allocation1], 32
  %2737 = vst [vmem:[%s2736] ss:$4 sm:$0xff] %v2730
  %v2738 = vld.sshfl [vmem:[#allocation1] sm:$0xff pattern:$0x73625140]
  %v2740 = vld.sshfl [vmem:[#allocation1 + $0x8] sm:$0xff pattern:$0x73625140]
  %v2742 = vld.sshfl [vmem:[#allocation1 + $0x10] sm:$0xff pattern:$0x73625140]
  %v2744 = vld.sshfl [vmem:[#allocation1 + $0x18] sm:$0xff pattern:$0x73625140]
  %v2746 = vld.sshfl [vmem:[#allocation1 + $0x20] sm:$0xff pattern:$0x73625140]
  %v2748 = vld.sshfl [vmem:[#allocation1 + $0x28] sm:$0xff pattern:$0x73625140]
  %2750 = vrot.lane.b32.xlu0 %v2738, 110
  %v2751 = vpop.permute.xlu0 %2750
  %2752 = vrot.lane.b32.xlu0 %v2740, 110
  %v2753 = vpop.permute.xlu0 %2752
  %2754 = vrot.lane.b32.xlu0 %v2742, 110
  %v2755 = vpop.permute.xlu0 %2754
  %2756 = vrot.lane.b32.xlu0 %v2744, 110
  %v2757 = vpop.permute.xlu0 %2756
  %2758 = vrot.lane.b32.xlu0 %v2746, 110
  %v2759 = vpop.permute.xlu0 %2758
  %2760 = vrot.lane.b32.xlu0 %v2748, 110
  %v2761 = vpop.permute.xlu0 %2760
  %v2762 = vsel %vm883, %v2751, %v2753
  %v2763 = vsel %vm883, %v2753, %v2755
  %v2764 = vsel %vm883, %v2755, %v2757
  %v2765 = vsel %vm883, %v2757, %v2759
  %v2766 = vsel %vm883, %v2759, %v2761
  %v2768 = vsel %vm174, %v2732, 0
  %v2771 = vsel %vm178, %v2762, 0
  %v2774 = vsel %vm178, %v2763, 0
  %v2777 = vsel %vm178, %v2764, 0
  %v2780 = vsel %vm178, %v2765, 0
  %v2783 = vsel %vm178, %v2766, 0
  %v2786 = vsel %vm178, %v2761, 0
  %2788 = vmatpush.bf16.msra.mxu0 0
  %2789 = vmatpush.bf16.msra.mxu0 0
  %2790 = vmatpush.bf16.msra.mxu0 0
  %2791 = vmatpush.bf16.msra.mxu0 0
  %2792 = vmatpush.bf16.msra.mxu0 0
  %2793 = vmatpush.bf16.msra.mxu0 0
  %2794 = vmatpush.bf16.msra.mxu0 0
  %2795 = vmatpush.bf16.msra.mxu0 %v2771
  %2796 = vmatmul.bf16.gmra.mxu0 %v2768
  %v2797 = vpop.f32.mrf.mxu0
  %v2798 = vadd.f32 0.0, %v2797
  %v2799 = vpop.f32.mrf.mxu0
  %2800 = vdwg.mxu0
  %2801 = vmatpush.bf16.msra.mxu0 0
  %2802 = vmatpush.bf16.msra.mxu0 0
  %2803 = vmatpush.bf16.msra.mxu0 0
  %2804 = vmatpush.bf16.msra.mxu0 0
  %2805 = vmatpush.bf16.msra.mxu0 0
  %2806 = vmatpush.bf16.msra.mxu0 0
  %2807 = vmatpush.bf16.msra.mxu0 0
  %2808 = vmatpush.bf16.msra.mxu0 %v2774
  %2809 = vmatmul.bf16.gmra.mxu0 %v2768
  %v2810 = vpop.f32.mrf.mxu0
  %v2811 = vadd.f32 0.0, %v2810
  %v2812 = vpop.f32.mrf.mxu0
  %2813 = vdwg.mxu0
  %2814 = vmatpush.bf16.msra.mxu0 0
  %2815 = vmatpush.bf16.msra.mxu0 0
  %2816 = vmatpush.bf16.msra.mxu0 0
  %2817 = vmatpush.bf16.msra.mxu0 0
  %2818 = vmatpush.bf16.msra.mxu0 0
  %2819 = vmatpush.bf16.msra.mxu0 0
  %2820 = vmatpush.bf16.msra.mxu0 0
  %2821 = vmatpush.bf16.msra.mxu0 %v2777
  %2822 = vmatmul.bf16.gmra.mxu0 %v2768
  %v2823 = vpop.f32.mrf.mxu0
  %v2824 = vadd.f32 0.0, %v2823
  %v2825 = vpop.f32.mrf.mxu0
  %2826 = vdwg.mxu0
  %2827 = vmatpush.bf16.msra.mxu0 0
  %2828 = vmatpush.bf16.msra.mxu0 0
  %2829 = vmatpush.bf16.msra.mxu0 0
  %2830 = vmatpush.bf16.msra.mxu0 0
  %2831 = vmatpush.bf16.msra.mxu0 0
  %2832 = vmatpush.bf16.msra.mxu0 0
  %2833 = vmatpush.bf16.msra.mxu0 0
  %2834 = vmatpush.bf16.msra.mxu0 %v2780
  %2835 = vmatmul.bf16.gmra.mxu0 %v2768
  %v2836 = vpop.f32.mrf.mxu0
  %v2837 = vadd.f32 0.0, %v2836
  %v2838 = vpop.f32.mrf.mxu0
  %2839 = vdwg.mxu0
  %2840 = vmatpush.bf16.msra.mxu0 0
  %2841 = vmatpush.bf16.msra.mxu0 0
  %2842 = vmatpush.bf16.msra.mxu0 0
  %2843 = vmatpush.bf16.msra.mxu0 0
  %2844 = vmatpush.bf16.msra.mxu0 0
  %2845 = vmatpush.bf16.msra.mxu0 0
  %2846 = vmatpush.bf16.msra.mxu0 0
  %2847 = vmatpush.bf16.msra.mxu0 %v2783
  %2848 = vmatmul.bf16.gmra.mxu0 %v2768
  %v2849 = vpop.f32.mrf.mxu0
  %v2850 = vadd.f32 0.0, %v2849
  %v2851 = vpop.f32.mrf.mxu0
  %2852 = vdwg.mxu0
  %2853 = vmatpush.bf16.msra.mxu0 0
  %2854 = vmatpush.bf16.msra.mxu0 0
  %2855 = vmatpush.bf16.msra.mxu0 0
  %2856 = vmatpush.bf16.msra.mxu0 0
  %2857 = vmatpush.bf16.msra.mxu0 0
  %2858 = vmatpush.bf16.msra.mxu0 0
  %2859 = vmatpush.bf16.msra.mxu0 0
  %2860 = vmatpush.bf16.msra.mxu0 %v2786
  %2861 = vmatmul.bf16.gmra.mxu0 %v2768
  %v2862 = vpop.f32.mrf.mxu0
  %v2863 = vadd.f32 0.0, %v2862
  %v2864 = vpop.f32.mrf.mxu0
  %2865 = vdwg.mxu0
  %v2866 = vadd.f32 %v2723, %v2798
  %v2867 = vadd.f32 %v2724, %v2811
  %v2868 = vadd.f32 %v2725, %v2824
  %v2869 = vadd.f32 %v2726, %v2837
  %v2870 = vadd.f32 %v2727, %v2850
  %v2871 = vadd.f32 %v2728, %v2863
  %v2872 = vld [vmem:[#allocation2] sm:$0xff]
  %v2873 = vld [vmem:[#allocation2 + $0x8] sm:$0xf]
  %s2874 = scalar_lea.vmem %s4, 8
  %v2875 = vld [vmem:[%s2874] sm:$0x3]
  %2877 = vst [vmem:[#allocation1] ss:$4 sm:$0xff] %v2872
  %s2879 = scalar_lea.vmem [#allocation1], 32
  %2880 = vst [vmem:[%s2879] ss:$4 sm:$0xff] %v2873
  %v2881 = vld.sshfl [vmem:[#allocation1] sm:$0xff pattern:$0x73625140]
  %v2883 = vld.sshfl [vmem:[#allocation1 + $0x8] sm:$0xff pattern:$0x73625140]
  %v2885 = vld.sshfl [vmem:[#allocation1 + $0x10] sm:$0xff pattern:$0x73625140]
  %v2887 = vld.sshfl [vmem:[#allocation1 + $0x18] sm:$0xff pattern:$0x73625140]
  %v2889 = vld.sshfl [vmem:[#allocation1 + $0x20] sm:$0xff pattern:$0x73625140]
  %v2891 = vld.sshfl [vmem:[#allocation1 + $0x28] sm:$0xff pattern:$0x73625140]
  %2893 = vrot.lane.b32.xlu0 %v2881, 109
  %v2894 = vpop.permute.xlu0 %2893
  %2895 = vrot.lane.b32.xlu0 %v2883, 109
  %v2896 = vpop.permute.xlu0 %2895
  %2897 = vrot.lane.b32.xlu0 %v2885, 109
  %v2898 = vpop.permute.xlu0 %2897
  %2899 = vrot.lane.b32.xlu0 %v2887, 109
  %v2900 = vpop.permute.xlu0 %2899
  %2901 = vrot.lane.b32.xlu0 %v2889, 109
  %v2902 = vpop.permute.xlu0 %2901
  %2903 = vrot.lane.b32.xlu0 %v2891, 109
  %v2904 = vpop.permute.xlu0 %2903
  %v2905 = vsel %vm1134, %v2894, %v2896
  %v2906 = vsel %vm1134, %v2896, %v2898
  %v2907 = vsel %vm1134, %v2898, %v2900
  %v2908 = vsel %vm1134, %v2900, %v2902
  %v2909 = vsel %vm1134, %v2902, %v2904
  %v2911 = vsel %vm174, %v2875, 0
  %v2914 = vsel %vm178, %v2905, 0
  %v2917 = vsel %vm178, %v2906, 0
  %v2920 = vsel %vm178, %v2907, 0
  %v2923 = vsel %vm178, %v2908, 0
  %v2926 = vsel %vm178, %v2909, 0
  %v2929 = vsel %vm178, %v2904, 0
  %2931 = vmatpush.bf16.msra.mxu0 0
  %2932 = vmatpush.bf16.msra.mxu0 0
  %2933 = vmatpush.bf16.msra.mxu0 0
  %2934 = vmatpush.bf16.msra.mxu0 0
  %2935 = vmatpush.bf16.msra.mxu0 0
  %2936 = vmatpush.bf16.msra.mxu0 0
  %2937 = vmatpush.bf16.msra.mxu0 0
  %2938 = vmatpush.bf16.msra.mxu0 %v2914
  %2939 = vmatmul.bf16.gmra.mxu0 %v2911
  %v2940 = vpop.f32.mrf.mxu0
  %v2941 = vadd.f32 0.0, %v2940
  %v2942 = vpop.f32.mrf.mxu0
  %2943 = vdwg.mxu0
  %2944 = vmatpush.bf16.msra.mxu0 0
  %2945 = vmatpush.bf16.msra.mxu0 0
  %2946 = vmatpush.bf16.msra.mxu0 0
  %2947 = vmatpush.bf16.msra.mxu0 0
  %2948 = vmatpush.bf16.msra.mxu0 0
  %2949 = vmatpush.bf16.msra.mxu0 0
  %2950 = vmatpush.bf16.msra.mxu0 0
  %2951 = vmatpush.bf16.msra.mxu0 %v2917
  %2952 = vmatmul.bf16.gmra.mxu0 %v2911
  %v2953 = vpop.f32.mrf.mxu0
  %v2954 = vadd.f32 0.0, %v2953
  %v2955 = vpop.f32.mrf.mxu0
  %2956 = vdwg.mxu0
  %2957 = vmatpush.bf16.msra.mxu0 0
  %2958 = vmatpush.bf16.msra.mxu0 0
  %2959 = vmatpush.bf16.msra.mxu0 0
  %2960 = vmatpush.bf16.msra.mxu0 0
  %2961 = vmatpush.bf16.msra.mxu0 0
  %2962 = vmatpush.bf16.msra.mxu0 0
  %2963 = vmatpush.bf16.msra.mxu0 0
  %2964 = vmatpush.bf16.msra.mxu0 %v2920
  %2965 = vmatmul.bf16.gmra.mxu0 %v2911
  %v2966 = vpop.f32.mrf.mxu0
  %v2967 = vadd.f32 0.0, %v2966
  %v2968 = vpop.f32.mrf.mxu0
  %2969 = vdwg.mxu0
  %2970 = vmatpush.bf16.msra.mxu0 0
  %2971 = vmatpush.bf16.msra.mxu0 0
  %2972 = vmatpush.bf16.msra.mxu0 0
  %2973 = vmatpush.bf16.msra.mxu0 0
  %2974 = vmatpush.bf16.msra.mxu0 0
  %2975 = vmatpush.bf16.msra.mxu0 0
  %2976 = vmatpush.bf16.msra.mxu0 0
  %2977 = vmatpush.bf16.msra.mxu0 %v2923
  %2978 = vmatmul.bf16.gmra.mxu0 %v2911
  %v2979 = vpop.f32.mrf.mxu0
  %v2980 = vadd.f32 0.0, %v2979
  %v2981 = vpop.f32.mrf.mxu0
  %2982 = vdwg.mxu0
  %2983 = vmatpush.bf16.msra.mxu0 0
  %2984 = vmatpush.bf16.msra.mxu0 0
  %2985 = vmatpush.bf16.msra.mxu0 0
  %2986 = vmatpush.bf16.msra.mxu0 0
  %2987 = vmatpush.bf16.msra.mxu0 0
  %2988 = vmatpush.bf16.msra.mxu0 0
  %2989 = vmatpush.bf16.msra.mxu0 0
  %2990 = vmatpush.bf16.msra.mxu0 %v2926
  %2991 = vmatmul.bf16.gmra.mxu0 %v2911
  %v2992 = vpop.f32.mrf.mxu0
  %v2993 = vadd.f32 0.0, %v2992
  %v2994 = vpop.f32.mrf.mxu0
  %2995 = vdwg.mxu0
  %2996 = vmatpush.bf16.msra.mxu0 0
  %2997 = vmatpush.bf16.msra.mxu0 0
  %2998 = vmatpush.bf16.msra.mxu0 0
  %2999 = vmatpush.bf16.msra.mxu0 0
  %3000 = vmatpush.bf16.msra.mxu0 0
  %3001 = vmatpush.bf16.msra.mxu0 0
  %3002 = vmatpush.bf16.msra.mxu0 0
  %3003 = vmatpush.bf16.msra.mxu0 %v2929
  %3004 = vmatmul.bf16.gmra.mxu0 %v2911
  %v3005 = vpop.f32.mrf.mxu0
  %v3006 = vadd.f32 0.0, %v3005
  %v3007 = vpop.f32.mrf.mxu0
  %3008 = vdwg.mxu0
  %v3009 = vadd.f32 %v2866, %v2941
  %v3010 = vadd.f32 %v2867, %v2954
  %v3011 = vadd.f32 %v2868, %v2967
  %v3012 = vadd.f32 %v2869, %v2980
  %v3013 = vadd.f32 %v2870, %v2993
  %v3014 = vadd.f32 %v2871, %v3006
  %v3015 = vld [vmem:[#allocation2] sm:$0xff]
  %v3016 = vld [vmem:[#allocation2 + $0x8] sm:$0xf]
  %s3017 = scalar_lea.vmem %s4, 10
  %v3018 = vld [vmem:[%s3017] sm:$0x3]
  %3020 = vst [vmem:[#allocation1] ss:$4 sm:$0xff] %v3015
  %s3022 = scalar_lea.vmem [#allocation1], 32
  %3023 = vst [vmem:[%s3022] ss:$4 sm:$0xff] %v3016
  %v3024 = vld.sshfl [vmem:[#allocation1] sm:$0xff pattern:$0x73625140]
  %v3026 = vld.sshfl [vmem:[#allocation1 + $0x8] sm:$0xff pattern:$0x73625140]
  %v3028 = vld.sshfl [vmem:[#allocation1 + $0x10] sm:$0xff pattern:$0x73625140]
  %v3030 = vld.sshfl [vmem:[#allocation1 + $0x18] sm:$0xff pattern:$0x73625140]
  %v3032 = vld.sshfl [vmem:[#allocation1 + $0x20] sm:$0xff pattern:$0x73625140]
  %v3034 = vld.sshfl [vmem:[#allocation1 + $0x28] sm:$0xff pattern:$0x73625140]
  %3036 = vrot.lane.b32.xlu0 %v3024, 108
  %v3037 = vpop.permute.xlu0 %3036
  %3038 = vrot.lane.b32.xlu0 %v3026, 108
  %v3039 = vpop.permute.xlu0 %3038
  %3040 = vrot.lane.b32.xlu0 %v3028, 108
  %v3041 = vpop.permute.xlu0 %3040
  %3042 = vrot.lane.b32.xlu0 %v3030, 108
  %v3043 = vpop.permute.xlu0 %3042
  %3044 = vrot.lane.b32.xlu0 %v3032, 108
  %v3045 = vpop.permute.xlu0 %3044
  %3046 = vrot.lane.b32.xlu0 %v3034, 108
  %v3047 = vpop.permute.xlu0 %3046
  %v3048 = vsel %vm1385, %v3037, %v3039
  %v3049 = vsel %vm1385, %v3039, %v3041
  %v3050 = vsel %vm1385, %v3041, %v3043
  %v3051 = vsel %vm1385, %v3043, %v3045
  %v3052 = vsel %vm1385, %v3045, %v3047
  %v3054 = vsel %vm174, %v3018, 0
  %v3057 = vsel %vm178, %v3048, 0
  %v3060 = vsel %vm178, %v3049, 0
  %v3063 = vsel %vm178, %v3050, 0
  %v3066 = vsel %vm178, %v3051, 0
  %v3069 = vsel %vm178, %v3052, 0
  %v3072 = vsel %vm178, %v3047, 0
  %3074 = vmatpush.bf16.msra.mxu0 0
  %3075 = vmatpush.bf16.msra.mxu0 0
  %3076 = vmatpush.bf16.msra.mxu0 0
  %3077 = vmatpush.bf16.msra.mxu0 0
  %3078 = vmatpush.bf16.msra.mxu0 0
  %3079 = vmatpush.bf16.msra.mxu0 0
  %3080 = vmatpush.bf16.msra.mxu0 0
  %3081 = vmatpush.bf16.msra.mxu0 %v3057
  %3082 = vmatmul.bf16.gmra.mxu0 %v3054
  %v3083 = vpop.f32.mrf.mxu0
  %v3084 = vadd.f32 0.0, %v3083
  %v3085 = vpop.f32.mrf.mxu0
  %3086 = vdwg.mxu0
  %3087 = vmatpush.bf16.msra.mxu0 0
  %3088 = vmatpush.bf16.msra.mxu0 0
  %3089 = vmatpush.bf16.msra.mxu0 0
  %3090 = vmatpush.bf16.msra.mxu0 0
  %3091 = vmatpush.bf16.msra.mxu0 0
  %3092 = vmatpush.bf16.msra.mxu0 0
  %3093 = vmatpush.bf16.msra.mxu0 0
  %3094 = vmatpush.bf16.msra.mxu0 %v3060
  %3095 = vmatmul.bf16.gmra.mxu0 %v3054
  %v3096 = vpop.f32.mrf.mxu0
  %v3097 = vadd.f32 0.0, %v3096
  %v3098 = vpop.f32.mrf.mxu0
  %3099 = vdwg.mxu0
  %3100 = vmatpush.bf16.msra.mxu0 0
  %3101 = vmatpush.bf16.msra.mxu0 0
  %3102 = vmatpush.bf16.msra.mxu0 0
  %3103 = vmatpush.bf16.msra.mxu0 0
  %3104 = vmatpush.bf16.msra.mxu0 0
  %3105 = vmatpush.bf16.msra.mxu0 0
  %3106 = vmatpush.bf16.msra.mxu0 0
  %3107 = vmatpush.bf16.msra.mxu0 %v3063
  %3108 = vmatmul.bf16.gmra.mxu0 %v3054
  %v3109 = vpop.f32.mrf.mxu0
  %v3110 = vadd.f32 0.0, %v3109
  %v3111 = vpop.f32.mrf.mxu0
  %3112 = vdwg.mxu0
  %3113 = vmatpush.bf16.msra.mxu0 0
  %3114 = vmatpush.bf16.msra.mxu0 0
  %3115 = vmatpush.bf16.msra.mxu0 0
  %3116 = vmatpush.bf16.msra.mxu0 0
  %3117 = vmatpush.bf16.msra.mxu0 0
  %3118 = vmatpush.bf16.msra.mxu0 0
  %3119 = vmatpush.bf16.msra.mxu0 0
  %3120 = vmatpush.bf16.msra.mxu0 %v3066
  %3121 = vmatmul.bf16.gmra.mxu0 %v3054
  %v3122 = vpop.f32.mrf.mxu0
  %v3123 = vadd.f32 0.0, %v3122
  %v3124 = vpop.f32.mrf.mxu0
  %3125 = vdwg.mxu0
  %3126 = vmatpush.bf16.msra.mxu0 0
  %3127 = vmatpush.bf16.msra.mxu0 0
  %3128 = vmatpush.bf16.msra.mxu0 0
  %3129 = vmatpush.bf16.msra.mxu0 0
  %3130 = vmatpush.bf16.msra.mxu0 0
  %3131 = vmatpush.bf16.msra.mxu0 0
  %3132 = vmatpush.bf16.msra.mxu0 0
  %3133 = vmatpush.bf16.msra.mxu0 %v3069
  %3134 = vmatmul.bf16.gmra.mxu0 %v3054
  %v3135 = vpop.f32.mrf.mxu0
  %v3136 = vadd.f32 0.0, %v3135
  %v3137 = vpop.f32.mrf.mxu0
  %3138 = vdwg.mxu0
  %3139 = vmatpush.bf16.msra.mxu0 0
  %3140 = vmatpush.bf16.msra.mxu0 0
  %3141 = vmatpush.bf16.msra.mxu0 0
  %3142 = vmatpush.bf16.msra.mxu0 0
  %3143 = vmatpush.bf16.msra.mxu0 0
  %3144 = vmatpush.bf16.msra.mxu0 0
  %3145 = vmatpush.bf16.msra.mxu0 0
  %3146 = vmatpush.bf16.msra.mxu0 %v3072
  %3147 = vmatmul.bf16.gmra.mxu0 %v3054
  %v3148 = vpop.f32.mrf.mxu0
  %v3149 = vadd.f32 0.0, %v3148
  %v3150 = vpop.f32.mrf.mxu0
  %3151 = vdwg.mxu0
  %v3152 = vadd.f32 %v3009, %v3084
  %v3153 = vadd.f32 %v3010, %v3097
  %v3154 = vadd.f32 %v3011, %v3110
  %v3155 = vadd.f32 %v3012, %v3123
  %v3156 = vadd.f32 %v3013, %v3136
  %v3157 = vadd.f32 %v3014, %v3149
  %v3158 = vld [vmem:[#allocation2] sm:$0xff]
  %v3159 = vld [vmem:[#allocation2 + $0x8] sm:$0xf]
  %s3160 = scalar_lea.vmem %s4, 12
  %v3161 = vld [vmem:[%s3160] sm:$0x3]
  %3163 = vst [vmem:[#allocation1] ss:$4 sm:$0xff] %v3158
  %s3165 = scalar_lea.vmem [#allocation1], 32
  %3166 = vst [vmem:[%s3165] ss:$4 sm:$0xff] %v3159
  %v3167 = vld.sshfl [vmem:[#allocation1] sm:$0xff pattern:$0x73625140]
  %v3169 = vld.sshfl [vmem:[#allocation1 + $0x8] sm:$0xff pattern:$0x73625140]
  %v3171 = vld.sshfl [vmem:[#allocation1 + $0x10] sm:$0xff pattern:$0x73625140]
  %v3173 = vld.sshfl [vmem:[#allocation1 + $0x18] sm:$0xff pattern:$0x73625140]
  %v3175 = vld.sshfl [vmem:[#allocation1 + $0x20] sm:$0xff pattern:$0x73625140]
  %v3177 = vld.sshfl [vmem:[#allocation1 + $0x28] sm:$0xff pattern:$0x73625140]
  %3179 = vrot.lane.b32.xlu0 %v3167, 92
  %v3180 = vpop.permute.xlu0 %3179
  %3181 = vrot.lane.b32.xlu0 %v3169, 92
  %v3182 = vpop.permute.xlu0 %3181
  %3183 = vrot.lane.b32.xlu0 %v3171, 92
  %v3184 = vpop.permute.xlu0 %3183
  %3185 = vrot.lane.b32.xlu0 %v3173, 92
  %v3186 = vpop.permute.xlu0 %3185
  %3187 = vrot.lane.b32.xlu0 %v3175, 92
  %v3188 = vpop.permute.xlu0 %3187
  %3189 = vrot.lane.b32.xlu0 %v3177, 92
  %v3190 = vpop.permute.xlu0 %3189
  %v3191 = vsel %vm1636, %v3180, %v3182
  %v3192 = vsel %vm1636, %v3182, %v3184
  %v3193 = vsel %vm1636, %v3184, %v3186
  %v3194 = vsel %vm1636, %v3186, %v3188
  %v3195 = vsel %vm1636, %v3188, %v3190
  %v3197 = vsel %vm174, %v3161, 0
  %v3200 = vsel %vm178, %v3191, 0
  %v3203 = vsel %vm178, %v3192, 0
  %v3206 = vsel %vm178, %v3193, 0
  %v3209 = vsel %vm178, %v3194, 0
  %v3212 = vsel %vm178, %v3195, 0
  %v3215 = vsel %vm178, %v3190, 0
  %3217 = vmatpush.bf16.msra.mxu0 0
  %3218 = vmatpush.bf16.msra.mxu0 0
  %3219 = vmatpush.bf16.msra.mxu0 0
  %3220 = vmatpush.bf16.msra.mxu0 0
  %3221 = vmatpush.bf16.msra.mxu0 0
  %3222 = vmatpush.bf16.msra.mxu0 0
  %3223 = vmatpush.bf16.msra.mxu0 0
  %3224 = vmatpush.bf16.msra.mxu0 %v3200
  %3225 = vmatmul.bf16.gmra.mxu0 %v3197
  %v3226 = vpop.f32.mrf.mxu0
  %v3227 = vadd.f32 0.0, %v3226
  %v3228 = vpop.f32.mrf.mxu0
  %3229 = vdwg.mxu0
  %3230 = vmatpush.bf16.msra.mxu0 0
  %3231 = vmatpush.bf16.msra.mxu0 0
  %3232 = vmatpush.bf16.msra.mxu0 0
  %3233 = vmatpush.bf16.msra.mxu0 0
  %3234 = vmatpush.bf16.msra.mxu0 0
  %3235 = vmatpush.bf16.msra.mxu0 0
  %3236 = vmatpush.bf16.msra.mxu0 0
  %3237 = vmatpush.bf16.msra.mxu0 %v3203
  %3238 = vmatmul.bf16.gmra.mxu0 %v3197
  %v3239 = vpop.f32.mrf.mxu0
  %v3240 = vadd.f32 0.0, %v3239
  %v3241 = vpop.f32.mrf.mxu0
  %3242 = vdwg.mxu0
  %3243 = vmatpush.bf16.msra.mxu0 0
  %3244 = vmatpush.bf16.msra.mxu0 0
  %3245 = vmatpush.bf16.msra.mxu0 0
  %3246 = vmatpush.bf16.msra.mxu0 0
  %3247 = vmatpush.bf16.msra.mxu0 0
  %3248 = vmatpush.bf16.msra.mxu0 0
  %3249 = vmatpush.bf16.msra.mxu0 0
  %3250 = vmatpush.bf16.msra.mxu0 %v3206
  %3251 = vmatmul.bf16.gmra.mxu0 %v3197
  %v3252 = vpop.f32.mrf.mxu0
  %v3253 = vadd.f32 0.0, %v3252
  %v3254 = vpop.f32.mrf.mxu0
  %3255 = vdwg.mxu0
  %3256 = vmatpush.bf16.msra.mxu0 0
  %3257 = vmatpush.bf16.msra.mxu0 0
  %3258 = vmatpush.bf16.msra.mxu0 0
  %3259 = vmatpush.bf16.msra.mxu0 0
  %3260 = vmatpush.bf16.msra.mxu0 0
  %3261 = vmatpush.bf16.msra.mxu0 0
  %3262 = vmatpush.bf16.msra.mxu0 0
  %3263 = vmatpush.bf16.msra.mxu0 %v3209
  %3264 = vmatmul.bf16.gmra.mxu0 %v3197
  %v3265 = vpop.f32.mrf.mxu0
  %v3266 = vadd.f32 0.0, %v3265
  %v3267 = vpop.f32.mrf.mxu0
  %3268 = vdwg.mxu0
  %3269 = vmatpush.bf16.msra.mxu0 0
  %3270 = vmatpush.bf16.msra.mxu0 0
  %3271 = vmatpush.bf16.msra.mxu0 0
  %3272 = vmatpush.bf16.msra.mxu0 0
  %3273 = vmatpush.bf16.msra.mxu0 0
  %3274 = vmatpush.bf16.msra.mxu0 0
  %3275 = vmatpush.bf16.msra.mxu0 0
  %3276 = vmatpush.bf16.msra.mxu0 %v3212
  %3277 = vmatmul.bf16.gmra.mxu0 %v3197
  %v3278 = vpop.f32.mrf.mxu0
  %v3279 = vadd.f32 0.0, %v3278
  %v3280 = vpop.f32.mrf.mxu0
  %3281 = vdwg.mxu0
  %3282 = vmatpush.bf16.msra.mxu0 0
  %3283 = vmatpush.bf16.msra.mxu0 0
  %3284 = vmatpush.bf16.msra.mxu0 0
  %3285 = vmatpush.bf16.msra.mxu0 0
  %3286 = vmatpush.bf16.msra.mxu0 0
  %3287 = vmatpush.bf16.msra.mxu0 0
  %3288 = vmatpush.bf16.msra.mxu0 0
  %3289 = vmatpush.bf16.msra.mxu0 %v3215
  %3290 = vmatmul.bf16.gmra.mxu0 %v3197
  %v3291 = vpop.f32.mrf.mxu0
  %v3292 = vadd.f32 0.0, %v3291
  %v3293 = vpop.f32.mrf.mxu0
  %3294 = vdwg.mxu0
  %v3295 = vadd.f32 %v3152, %v3227
  %v3296 = vadd.f32 %v3153, %v3240
  %v3297 = vadd.f32 %v3154, %v3253
  %v3298 = vadd.f32 %v3155, %v3266
  %v3299 = vadd.f32 %v3156, %v3279
  %v3300 = vadd.f32 %v3157, %v3292
  %v3301 = vld [vmem:[#allocation2] sm:$0xff]
  %v3302 = vld [vmem:[#allocation2 + $0x8] sm:$0xf]
  %s3303 = scalar_lea.vmem %s4, 14
  %v3304 = vld [vmem:[%s3303] sm:$0x3]
  %3306 = vst [vmem:[#allocation1] ss:$4 sm:$0xff] %v3301
  %s3308 = scalar_lea.vmem [#allocation1], 32
  %3309 = vst [vmem:[%s3308] ss:$4 sm:$0xff] %v3302
  %v3310 = vld.sshfl [vmem:[#allocation1] sm:$0xff pattern:$0x73625140]
  %v3312 = vld.sshfl [vmem:[#allocation1 + $0x8] sm:$0xff pattern:$0x73625140]
  %v3314 = vld.sshfl [vmem:[#allocation1 + $0x10] sm:$0xff pattern:$0x73625140]
  %v3316 = vld.sshfl [vmem:[#allocation1 + $0x18] sm:$0xff pattern:$0x73625140]
  %v3318 = vld.sshfl [vmem:[#allocation1 + $0x20] sm:$0xff pattern:$0x73625140]
  %v3320 = vld.sshfl [vmem:[#allocation1 + $0x28] sm:$0xff pattern:$0x73625140]
  %3322 = vrot.lane.b32.xlu0 %v3310, 91
  %v3323 = vpop.permute.xlu0 %3322
  %3324 = vrot.lane.b32.xlu0 %v3312, 91
  %v3325 = vpop.permute.xlu0 %3324
  %3326 = vrot.lane.b32.xlu0 %v3314, 91
  %v3327 = vpop.permute.xlu0 %3326
  %3328 = vrot.lane.b32.xlu0 %v3316, 91
  %v3329 = vpop.permute.xlu0 %3328
  %3330 = vrot.lane.b32.xlu0 %v3318, 91
  %v3331 = vpop.permute.xlu0 %3330
  %3332 = vrot.lane.b32.xlu0 %v3320, 91
  %v3333 = vpop.permute.xlu0 %3332
  %v3334 = vsel %vm1887, %v3323, %v3325
  %v3335 = vsel %vm1887, %v3325, %v3327
  %v3336 = vsel %vm1887, %v3327, %v3329
  %v3337 = vsel %vm1887, %v3329, %v3331
  %v3338 = vsel %vm1887, %v3331, %v3333
  %v3340 = vsel %vm174, %v3304, 0
  %v3343 = vsel %vm178, %v3334, 0
  %v3346 = vsel %vm178, %v3335, 0
  %v3349 = vsel %vm178, %v3336, 0
  %v3352 = vsel %vm178, %v3337, 0
  %v3355 = vsel %vm178, %v3338, 0
  %v3358 = vsel %vm178, %v3333, 0
  %3360 = vmatpush.bf16.msra.mxu0 0
  %3361 = vmatpush.bf16.msra.mxu0 0
  %3362 = vmatpush.bf16.msra.mxu0 0
  %3363 = vmatpush.bf16.msra.mxu0 0
  %3364 = vmatpush.bf16.msra.mxu0 0
  %3365 = vmatpush.bf16.msra.mxu0 0
  %3366 = vmatpush.bf16.msra.mxu0 0
  %3367 = vmatpush.bf16.msra.mxu0 %v3343
  %3368 = vmatmul.bf16.gmra.mxu0 %v3340
  %v3369 = vpop.f32.mrf.mxu0
  %v3370 = vadd.f32 0.0, %v3369
  %v3371 = vpop.f32.mrf.mxu0
  %3372 = vdwg.mxu0
  %3373 = vmatpush.bf16.msra.mxu0 0
  %3374 = vmatpush.bf16.msra.mxu0 0
  %3375 = vmatpush.bf16.msra.mxu0 0
  %3376 = vmatpush.bf16.msra.mxu0 0
  %3377 = vmatpush.bf16.msra.mxu0 0
  %3378 = vmatpush.bf16.msra.mxu0 0
  %3379 = vmatpush.bf16.msra.mxu0 0
  %3380 = vmatpush.bf16.msra.mxu0 %v3346
  %3381 = vmatmul.bf16.gmra.mxu0 %v3340
  %v3382 = vpop.f32.mrf.mxu0
  %v3383 = vadd.f32 0.0, %v3382
  %v3384 = vpop.f32.mrf.mxu0
  %3385 = vdwg.mxu0
  %3386 = vmatpush.bf16.msra.mxu0 0
  %3387 = vmatpush.bf16.msra.mxu0 0
  %3388 = vmatpush.bf16.msra.mxu0 0
  %3389 = vmatpush.bf16.msra.mxu0 0
  %3390 = vmatpush.bf16.msra.mxu0 0
  %3391 = vmatpush.bf16.msra.mxu0 0
  %3392 = vmatpush.bf16.msra.mxu0 0
  %3393 = vmatpush.bf16.msra.mxu0 %v3349
  %3394 = vmatmul.bf16.gmra.mxu0 %v3340
  %v3395 = vpop.f32.mrf.mxu0
  %v3396 = vadd.f32 0.0, %v3395
  %v3397 = vpop.f32.mrf.mxu0
  %3398 = vdwg.mxu0
  %3399 = vmatpush.bf16.msra.mxu0 0
  %3400 = vmatpush.bf16.msra.mxu0 0
  %3401 = vmatpush.bf16.msra.mxu0 0
  %3402 = vmatpush.bf16.msra.mxu0 0
  %3403 = vmatpush.bf16.msra.mxu0 0
  %3404 = vmatpush.bf16.msra.mxu0 0
  %3405 = vmatpush.bf16.msra.mxu0 0
  %3406 = vmatpush.bf16.msra.mxu0 %v3352
  %3407 = vmatmul.bf16.gmra.mxu0 %v3340
  %v3408 = vpop.f32.mrf.mxu0
  %v3409 = vadd.f32 0.0, %v3408
  %v3410 = vpop.f32.mrf.mxu0
  %3411 = vdwg.mxu0
  %3412 = vmatpush.bf16.msra.mxu0 0
  %3413 = vmatpush.bf16.msra.mxu0 0
  %3414 = vmatpush.bf16.msra.mxu0 0
  %3415 = vmatpush.bf16.msra.mxu0 0
  %3416 = vmatpush.bf16.msra.mxu0 0
  %3417 = vmatpush.bf16.msra.mxu0 0
  %3418 = vmatpush.bf16.msra.mxu0 0
  %3419 = vmatpush.bf16.msra.mxu0 %v3355
  %3420 = vmatmul.bf16.gmra.mxu0 %v3340
  %v3421 = vpop.f32.mrf.mxu0
  %v3422 = vadd.f32 0.0, %v3421
  %v3423 = vpop.f32.mrf.mxu0
  %3424 = vdwg.mxu0
  %3425 = vmatpush.bf16.msra.mxu0 0
  %3426 = vmatpush.bf16.msra.mxu0 0
  %3427 = vmatpush.bf16.msra.mxu0 0
  %3428 = vmatpush.bf16.msra.mxu0 0
  %3429 = vmatpush.bf16.msra.mxu0 0
  %3430 = vmatpush.bf16.msra.mxu0 0
  %3431 = vmatpush.bf16.msra.mxu0 0
  %3432 = vmatpush.bf16.msra.mxu0 %v3358
  %3433 = vmatmul.bf16.gmra.mxu0 %v3340
  %v3434 = vpop.f32.mrf.mxu0
  %v3435 = vadd.f32 0.0, %v3434
  %v3436 = vpop.f32.mrf.mxu0
  %3437 = vdwg.mxu0
  %v3438 = vadd.f32 %v3295, %v3370
  %v3439 = vadd.f32 %v3296, %v3383
  %v3440 = vadd.f32 %v3297, %v3396
  %v3441 = vadd.f32 %v3298, %v3409
  %v3442 = vadd.f32 %v3299, %v3422
  %v3443 = vadd.f32 %v3300, %v3435
  %v3444 = vld [vmem:[#allocation2] sm:$0xff]
  %v3445 = vld [vmem:[#allocation2 + $0x8] sm:$0xf]
  %s3446 = scalar_lea.vmem %s4, 16
  %v3447 = vld [vmem:[%s3446] sm:$0x3]
  %3449 = vst [vmem:[#allocation1] ss:$4 sm:$0xff] %v3444
  %s3451 = scalar_lea.vmem [#allocation1], 32
  %3452 = vst [vmem:[%s3451] ss:$4 sm:$0xff] %v3445
  %v3453 = vld.sshfl [vmem:[#allocation1] sm:$0xff pattern:$0x73625140]
  %v3455 = vld.sshfl [vmem:[#allocation1 + $0x8] sm:$0xff pattern:$0x73625140]
  %v3457 = vld.sshfl [vmem:[#allocation1 + $0x10] sm:$0xff pattern:$0x73625140]
  %v3459 = vld.sshfl [vmem:[#allocation1 + $0x18] sm:$0xff pattern:$0x73625140]
  %v3461 = vld.sshfl [vmem:[#allocation1 + $0x20] sm:$0xff pattern:$0x73625140]
  %v3463 = vld.sshfl [vmem:[#allocation1 + $0x28] sm:$0xff pattern:$0x73625140]
  %3465 = vrot.lane.b32.xlu0 %v3453, 90
  %v3466 = vpop.permute.xlu0 %3465
  %3467 = vrot.lane.b32.xlu0 %v3455, 90
  %v3468 = vpop.permute.xlu0 %3467
  %3469 = vrot.lane.b32.xlu0 %v3457, 90
  %v3470 = vpop.permute.xlu0 %3469
  %3471 = vrot.lane.b32.xlu0 %v3459, 90
  %v3472 = vpop.permute.xlu0 %3471
  %3473 = vrot.lane.b32.xlu0 %v3461, 90
  %v3474 = vpop.permute.xlu0 %3473
  %3475 = vrot.lane.b32.xlu0 %v3463, 90
  %v3476 = vpop.permute.xlu0 %3475
  %v3477 = vsel %vm2138, %v3466, %v3468
  %v3478 = vsel %vm2138, %v3468, %v3470
  %v3479 = vsel %vm2138, %v3470, %v3472
  %v3480 = vsel %vm2138, %v3472, %v3474
  %v3481 = vsel %vm2138, %v3474, %v3476
  %v3483 = vsel %vm174, %v3447, 0
  %v3486 = vsel %vm178, %v3477, 0
  %v3489 = vsel %vm178, %v3478, 0
  %v3492 = vsel %vm178, %v3479, 0
  %v3495 = vsel %vm178, %v3480, 0
  %v3498 = vsel %vm178, %v3481, 0
  %v3501 = vsel %vm178, %v3476, 0
  %3503 = vmatpush.bf16.msra.mxu0 0
  %3504 = vmatpush.bf16.msra.mxu0 0
  %3505 = vmatpush.bf16.msra.mxu0 0
  %3506 = vmatpush.bf16.msra.mxu0 0
  %3507 = vmatpush.bf16.msra.mxu0 0
  %3508 = vmatpush.bf16.msra.mxu0 0
  %3509 = vmatpush.bf16.msra.mxu0 0
  %3510 = vmatpush.bf16.msra.mxu0 %v3486
  %3511 = vmatmul.bf16.gmra.mxu0 %v3483
  %v3512 = vpop.f32.mrf.mxu0
  %v3513 = vadd.f32 0.0, %v3512
  %v3514 = vpop.f32.mrf.mxu0
  %3515 = vdwg.mxu0
  %3516 = vmatpush.bf16.msra.mxu0 0
  %3517 = vmatpush.bf16.msra.mxu0 0
  %3518 = vmatpush.bf16.msra.mxu0 0
  %3519 = vmatpush.bf16.msra.mxu0 0
  %3520 = vmatpush.bf16.msra.mxu0 0
  %3521 = vmatpush.bf16.msra.mxu0 0
  %3522 = vmatpush.bf16.msra.mxu0 0
  %3523 = vmatpush.bf16.msra.mxu0 %v3489
  %3524 = vmatmul.bf16.gmra.mxu0 %v3483
  %v3525 = vpop.f32.mrf.mxu0
  %v3526 = vadd.f32 0.0, %v3525
  %v3527 = vpop.f32.mrf.mxu0
  %3528 = vdwg.mxu0
  %3529 = vmatpush.bf16.msra.mxu0 0
  %3530 = vmatpush.bf16.msra.mxu0 0
  %3531 = vmatpush.bf16.msra.mxu0 0
  %3532 = vmatpush.bf16.msra.mxu0 0
  %3533 = vmatpush.bf16.msra.mxu0 0
  %3534 = vmatpush.bf16.msra.mxu0 0
  %3535 = vmatpush.bf16.msra.mxu0 0
  %3536 = vmatpush.bf16.msra.mxu0 %v3492
  %3537 = vmatmul.bf16.gmra.mxu0 %v3483
  %v3538 = vpop.f32.mrf.mxu0
  %v3539 = vadd.f32 0.0, %v3538
  %v3540 = vpop.f32.mrf.mxu0
  %3541 = vdwg.mxu0
  %3542 = vmatpush.bf16.msra.mxu0 0
  %3543 = vmatpush.bf16.msra.mxu0 0
  %3544 = vmatpush.bf16.msra.mxu0 0
  %3545 = vmatpush.bf16.msra.mxu0 0
  %3546 = vmatpush.bf16.msra.mxu0 0
  %3547 = vmatpush.bf16.msra.mxu0 0
  %3548 = vmatpush.bf16.msra.mxu0 0
  %3549 = vmatpush.bf16.msra.mxu0 %v3495
  %3550 = vmatmul.bf16.gmra.mxu0 %v3483
  %v3551 = vpop.f32.mrf.mxu0
  %v3552 = vadd.f32 0.0, %v3551
  %v3553 = vpop.f32.mrf.mxu0
  %3554 = vdwg.mxu0
  %3555 = vmatpush.bf16.msra.mxu0 0
  %3556 = vmatpush.bf16.msra.mxu0 0
  %3557 = vmatpush.bf16.msra.mxu0 0
  %3558 = vmatpush.bf16.msra.mxu0 0
  %3559 = vmatpush.bf16.msra.mxu0 0
  %3560 = vmatpush.bf16.msra.mxu0 0
  %3561 = vmatpush.bf16.msra.mxu0 0
  %3562 = vmatpush.bf16.msra.mxu0 %v3498
  %3563 = vmatmul.bf16.gmra.mxu0 %v3483
  %v3564 = vpop.f32.mrf.mxu0
  %v3565 = vadd.f32 0.0, %v3564
  %v3566 = vpop.f32.mrf.mxu0
  %3567 = vdwg.mxu0
  %3568 = vmatpush.bf16.msra.mxu0 0
  %3569 = vmatpush.bf16.msra.mxu0 0
  %3570 = vmatpush.bf16.msra.mxu0 0
  %3571 = vmatpush.bf16.msra.mxu0 0
  %3572 = vmatpush.bf16.msra.mxu0 0
  %3573 = vmatpush.bf16.msra.mxu0 0
  %3574 = vmatpush.bf16.msra.mxu0 0
  %3575 = vmatpush.bf16.msra.mxu0 %v3501
  %3576 = vmatmul.bf16.gmra.mxu0 %v3483
  %v3577 = vpop.f32.mrf.mxu0
  %v3578 = vadd.f32 0.0, %v3577
  %v3579 = vpop.f32.mrf.mxu0
  %3580 = vdwg.mxu0
  %v3581 = vadd.f32 %v3438, %v3513
  %v3582 = vadd.f32 %v3439, %v3526
  %v3583 = vadd.f32 %v3440, %v3539
  %v3584 = vadd.f32 %v3441, %v3552
  %v3585 = vadd.f32 %v3442, %v3565
  %v3586 = vadd.f32 %v3443, %v3578
  %v3587 = vld [vmem:[%s5] sm:$0xf]
  %3589 = vset.pattern.permute.xlu0 0
  %3590 = vperm.xlu0 %3589, %v3587
  %v3591 = vpop.permute.xlu0 %3590
  %v3593 = vadd.f32 %v3581, %v3591
  %v3594 = vadd.f32 %v3582, %v3591
  %v3595 = vadd.f32 %v3583, %v3591
  %v3596 = vadd.f32 %v3584, %v3591
  %v3597 = vadd.f32 %v3585, %v3591
  %v3598 = vadd.f32 %v3586, %v3591
  %v3607 = vperm.slane %v2287, 0
  %v3608 = vperm.slane %v2287, 2
  %v3609 = vperm.slane %v2287, 4
  %v3610 = vperm.slane %v2287, 6
  %v3611 = vperm.slane %v2288, 0
  %v3612 = vperm.slane %v2288, 2
  %v3613 = vperm.slane %v2289, 0
  %v3614 = vperm.slane %v2289, 2
  %v3615 = vperm.slane %v2289, 4
  %v3616 = vperm.slane %v2289, 6
  %v3617 = vperm.slane %v2290, 0
  %v3618 = vperm.slane %v2290, 2
  %v3619 = vperm.slane %v2291, 0
  %v3620 = vperm.slane %v2291, 2
  %v3621 = vperm.slane %v2291, 4
  %v3622 = vperm.slane %v2291, 6
  %v3623 = vperm.slane %v2292, 0
  %v3624 = vperm.slane %v2292, 2
  %v3625 = vperm.slane %v2293, 0
  %v3626 = vperm.slane %v2293, 2
  %v3627 = vperm.slane %v2293, 4
  %v3628 = vperm.slane %v2293, 6
  %v3629 = vperm.slane %v2294, 0
  %v3630 = vperm.slane %v2294, 2
  %v3631 = vsel %vm112, %v3613, %v3607
  %v3632 = vsel %vm115, %v3619, %v3631
  %v3633 = vsel %vm118, %v3625, %v3632
  %v3634 = vsel %vm112, %v3614, %v3608
  %v3635 = vsel %vm115, %v3620, %v3634
  %v3636 = vsel %vm118, %v3626, %v3635
  %v3637 = vsel %vm112, %v3615, %v3609
  %v3638 = vsel %vm115, %v3621, %v3637
  %v3639 = vsel %vm118, %v3627, %v3638
  %v3640 = vsel %vm112, %v3616, %v3610
  %v3641 = vsel %vm115, %v3622, %v3640
  %v3642 = vsel %vm118, %v3628, %v3641
  %v3643 = vsel %vm112, %v3617, %v3611
  %v3644 = vsel %vm115, %v3623, %v3643
  %v3645 = vsel %vm118, %v3629, %v3644
  %v3646 = vsel %vm112, %v3618, %v3612
  %v3647 = vsel %vm115, %v3624, %v3646
  %v3648 = vsel %vm118, %v3630, %v3647
  %3649 = vrot.lane.b32.xlu0 %v3633, 109
  %v3650 = vpop.permute.xlu0 %3649
  %3651 = vrot.lane.b32.xlu0 %v3636, 109
  %v3652 = vpop.permute.xlu0 %3651
  %3653 = vrot.lane.b32.xlu0 %v3639, 109
  %v3654 = vpop.permute.xlu0 %3653
  %3655 = vrot.lane.b32.xlu0 %v3642, 109
  %v3656 = vpop.permute.xlu0 %3655
  %3657 = vrot.lane.b32.xlu0 %v3645, 109
  %v3658 = vpop.permute.xlu0 %3657
  %3659 = vrot.lane.b32.xlu0 %v3648, 109
  %v3660 = vpop.permute.xlu0 %3659
  %vm3661 = vcmask 891904
  %v3662 = vsel %vm3661, %v3650, %v3652
  %v3663 = vsel %vm3661, %v3652, %v3654
  %v3664 = vsel %vm3661, %v3654, %v3656
  %v3665 = vsel %vm3661, %v3656, %v3658
  %v3666 = vsel %vm3661, %v3658, %v3660
  %v3673 = vadd.f32 %v3593, %v3662
  %v3674 = vadd.f32 %v3594, %v3663
  %v3675 = vadd.f32 %v3595, %v3664
  %v3676 = vadd.f32 %v3596, %v3665
  %v3677 = vadd.f32 %v3597, %v3666
  %v3678 = vadd.f32 %v3598, %v3660
  %v3679 = vmax.f32 %v3673, 0.0
  %v3680 = vmax.f32 %v3674, 0.0
  %v3681 = vmax.f32 %v3675, 0.0
  %v3682 = vmax.f32 %v3676, 0.0
  %v3683 = vmax.f32 %v3677, 0.0
  %v3684 = vmax.f32 %v3678, 0.0
  %v3685 = vpack.c.bf16 %v3680, %v3679
  %v3686 = vpack.c.bf16 %v3682, %v3681
  %v3687 = vpack.c.bf16 %v3684, %v3683
  %v3691 = vrot.slane %v3685, 2
  %v3692 = vrot.slane %v3686, 4
  %v3693 = vrot.slane %v3686, 6
  %v3694 = vrot.slane %v3687, 2
  %v3697 = vsel %vm178, %v3685, %v3691
  %v3700 = vsel %vm2312, %v3692, %v3693
  %v3701 = vsel %vm2316, %v3697, %v3700
  %v3704 = vsel %vm178, %v3687, %v3694
  %3707 = vst [vmem:[%s6] sm:$0xff] %v3701
  %vm3708 = vcmask 60418
  %vm3709 = vmor %vm3708, %vm178
  %3710 = vst.msk [vmem:[%s6 + $0x8] sm:$0xf] %vm3709, %v3704
  // Predicated region
  $region26: #{basic_block_forward.1} parent=0 // pred_check
    _
  $region27: #{basic_block_forward.1} parent=0 // pred_check_branch
    %3712 = sbr.rel (0) target = $region29
  $region28: #{basic_block_forward.1} parent=0 // pred_region
    _
  $region29: #{basic_block_forward.1} parent=0 // pred_fallthru
    _
  // Predicated region
  $region30: #{basic_block_forward.1} parent=0 // pred_check
    _
  $region31: #{basic_block_forward.1} parent=0 // pred_check_branch
    %3714 = sbr.rel (0) target = $region33
  $region32: #{basic_block_forward.1} parent=0 // pred_region
    _
  $region33: #{basic_block_forward.1} parent=0 // pred_fallthru
    _

</llo_original>
